<compile_context>
chip_gen: v6e
topology: v6e:2x2x1
jax: 0.10.0
libtpu: 0.0.40
codegen_flags: <defaults>
</compile_context>

<pallas_src>
import functools
import math

import jax
import jax.numpy as jnp
from jax.experimental import pallas as pl
from jax.experimental.pallas import tpu as pltpu


def relu6(x):  # activation() in the reference module (ReLU6), also in h_sigmoid
    return jnp.clip(x, 0.0, 6.0)


# ----------------------------------------------------------------------------
# The fused Sea_Attention kernel: one grid step == one image.
#   qkv 1x1 conv (+BN)            -> (HW, 128) matmul on the MXU
#   dwconv3x3+BN+ReLU6 row-strips -> pwconv (computed transposed, (dim, HW))
#   row & column axial attention  -> proj_encode_{row,col}
#   fuse: relu6(v + row + col) -> proj (transposed) -> h_sigmoid -> * pwconv
# ----------------------------------------------------------------------------
def _sea_kernel(x_ref, wqkv_ref, bqkv_ref, wdw_ref, bdw_ref,
                wpwT_ref, bpw_ref,
                prq_ref, prk_ref, pcq_ref, pck_ref,
                wper_ref, bper_ref, wpec_ref, bpec_ref,
                wprojT_ref, bproj_ref,
                o_ref, *, H, W, dim, num_heads, key_dim, d, scale):
    f32, bf16 = jnp.float32, jnp.bfloat16
    nh_kd = num_heads * key_dim
    dh = num_heads * d
    cqkv = 2 * nh_kd + dh
    HW = H * W

    # ---- fused q|k|v 1x1 conv + folded BN (one bf16 MXU matmul) -------------
    x2 = x_ref[0].reshape(HW, dim)                               # (HW, dim)
    qkv = jnp.dot(x2.astype(bf16), wqkv_ref[...],
                  preferred_element_type=f32) + bqkv_ref[...]    # (HW, cqkv) f32
    qkv3 = qkv.reshape(H, W, cqkv)                               # (H, W, cqkv)

    # ---- depthwise 3x3 conv + BN + ReLU6: row-strip accumulation ------------
    # Vertical taps combined first (no shift); dx=0/2 columns shifted along W
    # with pltpu.roll (XLU) + boundary mask.  Zero padding == masked shifts and
    # zero boundary rows, so no padded buffer exists anywhere.
    wdw = wdw_ref[...]                                           # (9, cqkv), BN scale folded
    bdw = bdw_ref[...]                                           # (1, cqkv)
    w_tap = [wdw[i:i + 1, :] for i in range(9)]                  # hoisted (1, cqkv) slices
    zero_row = jnp.zeros((W, cqkv), f32)
    xidx = jax.lax.broadcasted_iota(jnp.int32, (W, 1), 0)
    dw_rows = []
    for y in range(H):
        up = qkv3[y - 1] if y > 0 else zero_row                  # (W, cqkv)
        mid = qkv3[y]
        dn = qkv3[y + 1] if y < H - 1 else zero_row
        cols = [w_tap[0 + dx] * up + w_tap[3 + dx] * mid + w_tap[6 + dx] * dn
                for dx in range(3)]
        acc = cols[1]
        acc = acc + jnp.where(xidx > 0, pltpu.roll(cols[0], 1, axis=0), 0.0)
        acc = acc + jnp.where(xidx < W - 1, pltpu.roll(cols[2], W - 1, axis=0), 0.0)
        dw_rows.append(relu6(acc + bdw).astype(bf16))
    ydw = jnp.concatenate(dw_rows, axis=0)                       # (HW, cqkv) bf16

    # pwconv (1x1 conv + BN), computed TRANSPOSED -> (dim, HW) lane-dense.
    qkv_pw_t = jax.lax.dot_general(
        wpwT_ref[...], ydw, (((1,), (1,)), ((), ())),
        preferred_element_type=f32) + bpw_ref[...]               # (dim, HW)

    # ---- axial attention (pre-dwconv q/k/v, as in the reference) ------------
    mr = jnp.mean(qkv3, axis=1)                                  # (H, cqkv) mean over W
    mc = jnp.mean(qkv3, axis=0)                                  # (W, cqkv) mean over H

    def axial(m, pos_q, pos_k):
        qm = (m[:, :nh_kd] + pos_q).astype(bf16)                 # (L, nh_kd)
        km = (m[:, nh_kd:2 * nh_kd] + pos_k).astype(bf16)
        vm = m[:, 2 * nh_kd:]                                    # (L, dh) f32
        outs = []
        # TODO(synk): per-head lane slicing / lane-axis concat costs a few XLU
        # relayouts; negligible at L=16, nh=2 (review: "minor at test size").
        for h in range(num_heads):
            qh = qm[:, h * key_dim:(h + 1) * key_dim]
            kh = km[:, h * key_dim:(h + 1) * key_dim]
            vh = vm[:, h * d:(h + 1) * d].astype(bf16)
            logits = jax.lax.dot_general(
                qh, kh, (((1,), (1,)), ((), ())),
                preferred_element_type=f32) * scale              # (L, L)
            logits = logits - jnp.max(logits, axis=-1, keepdims=True)
            p = jnp.exp(logits)
            # approx reciprocal (EUP slot); slightly off an exact softmax.
            p = p * pl.reciprocal(jnp.sum(p, axis=-1, keepdims=True), approx=True)
            outs.append(jnp.dot(p.astype(bf16), vh, preferred_element_type=f32))
        return jnp.concatenate(outs, axis=-1)                    # (L, dh) heads-major

    xr = jnp.dot(relu6(axial(mr, prq_ref[...], prk_ref[...])).astype(bf16),
                 wper_ref[...], preferred_element_type=f32) + bper_ref[...]   # (H, dh)
    xc = jnp.dot(relu6(axial(mc, pcq_ref[...], pck_ref[...])).astype(bf16),
                 wpec_ref[...], preferred_element_type=f32) + bpec_ref[...]   # (W, dh)

    # ---- fuse: relu6(v + row + col) -> proj -> h_sigmoid -> * pwconv --------
    v_full = qkv3[:, :, 2 * nh_kd:]                              # (H, W, dh)
    t = relu6(v_full + xr[:, None, :] + xc[None, :, :])          # (H, W, dh)
    t_flat = t.reshape(HW, dh).astype(bf16)
    t2_t = jax.lax.dot_general(
        wprojT_ref[...], t_flat, (((1,), (1,)), ((), ())),
        preferred_element_type=f32) + bproj_ref[...]             # (dim, HW)
    hs = relu6(t2_t + 3.0) * (1.0 / 6.0)                         # h_sigmoid
    o_ref[0] = (hs * qkv_pw_t).astype(o_ref.dtype)               # lane-dense (dim, HW)


def sea_fused(x_nhwc, p, posq_row, posk_row, posq_col, posk_col, *,
              dim, H, W, num_heads, key_dim, d, scale):
    B = x_nhwc.shape[0]
    nh_kd = num_heads * key_dim
    dh = num_heads * d
    cqkv = 2 * nh_kd + dh
    HW = H * W
    bf16 = jnp.bfloat16

    # Host-side weight prep: bf16 for MXU operands, BN scale folded, the two
    # "output-side" 1x1 convs pre-transposed so the kernel writes (dim, HW).
    w_qkv = p["w_qkv"].astype(bf16)                               # (dim, cqkv)
    b_qkv = p["b_qkv"].reshape(1, cqkv)
    w_dw = (p["w_dw"] * p["s_dw"][None, None, :]).reshape(9, cqkv)
    b_dw = p["b_dw"].reshape(1, cqkv)
    w_pw_t = jnp.transpose(p["w_pw"]).astype(bf16)                # (dim, cqkv)
    b_pw = p["b_pw"].reshape(dim, 1)
    w_per = p["w_pe_row"].astype(bf16)                            # (dh, dh)
    b_per = p["b_pe_row"].reshape(1, dh)
    w_pec = p["w_pe_col"].astype(bf16)
    b_pec = p["b_pe_col"].reshape(1, dh)
    w_proj_t = jnp.transpose(p["w_proj"]).astype(bf16)            # (dim, dh)
    b_proj = p["b_proj"].reshape(dim, 1)

    args = (x_nhwc, w_qkv, b_qkv, w_dw, b_dw, w_pw_t, b_pw,
            posq_row, posk_row, posq_col, posk_col,
            w_per, b_per, w_pec, b_pec, w_proj_t, b_proj)

    # Advisory cost estimate so XLA schedules neighbours around the kernel.
    flops = B * (2 * HW * dim * cqkv                 # qkv proj
                 + 18 * HW * cqkv                    # dwconv 3x3
                 + 2 * HW * cqkv * dim               # pwconv
                 + num_heads * 2 * (H * H + W * W) * (key_dim + d)  # axial attn
                 + 2 * (H + W) * dh * dh             # proj_encode row/col
                 + 2 * HW * dh * dim)                # proj
    in_bytes = sum(math.prod(a.shape) * a.dtype.itemsize for a in args)
    cost = pl.CostEstimate(flops=int(flops),
                           transcendentals=int(B * num_heads * (H * H + W * W)),
                           bytes_accessed=int(in_bytes + B * dim * HW * 4))

    kernel = functools.partial(_sea_kernel, H=H, W=W, dim=dim,
                               num_heads=num_heads, key_dim=key_dim, d=d,
                               scale=scale)
    c = lambda *shape: (lambda b: tuple(0 for _ in shape))        # noqa: E731

    return pl.pallas_call(
        kernel,
        out_shape=jax.ShapeDtypeStruct((B, dim, HW), jnp.float32),
        grid_spec=pltpu.PrefetchScalarGridSpec(
            num_scalar_prefetch=0,
            grid=(B,),
            in_specs=[
                pl.BlockSpec((1, H, W, dim), lambda b: (b, 0, 0, 0)),
                pl.BlockSpec((dim, cqkv), lambda b: (0, 0)),
                pl.BlockSpec((1, cqkv), lambda b: (0, 0)),
                pl.BlockSpec((9, cqkv), lambda b: (0, 0)),
                pl.BlockSpec((1, cqkv), lambda b: (0, 0)),
                pl.BlockSpec((dim, cqkv), lambda b: (0, 0)),
                pl.BlockSpec((dim, 1), lambda b: (0, 0)),
                pl.BlockSpec((H, nh_kd), lambda b: (0, 0)),
                pl.BlockSpec((H, nh_kd), lambda b: (0, 0)),
                pl.BlockSpec((W, nh_kd), lambda b: (0, 0)),
                pl.BlockSpec((W, nh_kd), lambda b: (0, 0)),
                pl.BlockSpec((dh, dh), lambda b: (0, 0)),
                pl.BlockSpec((1, dh), lambda b: (0, 0)),
                pl.BlockSpec((dh, dh), lambda b: (0, 0)),
                pl.BlockSpec((1, dh), lambda b: (0, 0)),
                pl.BlockSpec((dim, dh), lambda b: (0, 0)),
                pl.BlockSpec((dim, 1), lambda b: (0, 0)),
            ],
            out_specs=pl.BlockSpec((1, dim, HW), lambda b: (b, 0, 0)),
        ),
        compiler_params=pltpu.CompilerParams(dimension_semantics=("parallel",)),
        cost_estimate=cost,
    )(*args)


# ----------------------------------------------------------------------------
# Host glue: F.interpolate(mode='linear', align_corners=False) for the axial
# positional embeddings (depends only on H/W — plain JAX on tiny arrays).
# ----------------------------------------------------------------------------
def interp_linear(pos, out_size):
    # pos: (C, in_size) -> (C, out_size)
    in_size = pos.shape[1]
    i = jnp.arange(out_size, dtype=jnp.float32)
    src = jnp.clip((i + 0.5) * (in_size / out_size) - 0.5, 0.0, in_size - 1.0)
    lo = jnp.floor(src).astype(jnp.int32)
    hi = jnp.minimum(lo + 1, in_size - 1)
    w = src - lo.astype(jnp.float32)
    return pos[:, lo] * (1.0 - w) + pos[:, hi] * w


# ----------------------------------------------------------------------------
# Parameter init (deterministic, synthetic).  BN folded in eval mode
# (running_mean=0, running_var=1, eps=1e-5).
# NOTE: the module inits some BN gammas to 0 (bn_weight_init=0); we use ~1 so
# those branches carry non-trivial values — forward semantics are unchanged.
# ----------------------------------------------------------------------------
def init_params(key, dim, key_dim, num_heads, attn_ratio):
    nh_kd = key_dim * num_heads
    d = int(attn_ratio * key_dim)
    dh = d * num_heads
    cqkv = 2 * nh_kd + dh
    eps = 1e-5
    keys = iter(jax.random.split(key, 48))

    def conv_bn(cin, cout):
        w = jax.random.normal(next(keys), (cin, cout), jnp.float32) / jnp.sqrt(cin)
        gamma = 1.0 + 0.1 * jax.random.normal(next(keys), (cout,), jnp.float32)
        beta = 0.1 * jax.random.normal(next(keys), (cout,), jnp.float32)
        scale = gamma / jnp.sqrt(1.0 + eps)
        return w * scale[None, :], beta

    p = {}
    wq, bq = conv_bn(dim, nh_kd)
    wk, bk = conv_bn(dim, nh_kd)
    wv, bv = conv_bn(dim, dh)
    p["w_qkv"] = jnp.concatenate([wq, wk, wv], axis=1)            # (dim, cqkv)
    p["b_qkv"] = jnp.concatenate([bq, bk, bv], axis=0)

    p["w_dw"] = jax.random.normal(next(keys), (3, 3, cqkv), jnp.float32) / 3.0
    gamma_dw = 1.0 + 0.1 * jax.random.normal(next(keys), (cqkv,), jnp.float32)
    p["s_dw"] = gamma_dw / jnp.sqrt(1.0 + eps)
    p["b_dw"] = 0.1 * jax.random.normal(next(keys), (cqkv,), jnp.float32)

    p["w_pw"], p["b_pw"] = conv_bn(cqkv, dim)
    p["w_pe_row"], p["b_pe_row"] = conv_bn(dh, dh)
    p["w_pe_col"], p["b_pe_col"] = conv_bn(dh, dh)
    p["w_proj"], p["b_proj"] = conv_bn(dh, dim)

    for name in ("pos_rowq", "pos_rowk", "pos_colq", "pos_colk"):
        p[name] = jax.random.normal(next(keys), (nh_kd, 16), jnp.float32)
    return p


# ----------------------------------------------------------------------------
# Full forward (NCHW in / NCHW out, matching the PyTorch module)
# ----------------------------------------------------------------------------
def sea_attention_forward(x_nchw, params, *, dim, key_dim, num_heads, attn_ratio):
    d = int(attn_ratio * key_dim)
    scale = key_dim ** (-0.5)

    x = jnp.transpose(x_nchw, (0, 2, 3, 1))                       # NHWC (tiny input)
    B, H, W, _ = x.shape

    # Axial positional embeddings (linear interpolation to H / W), host side.
    posq_row = interp_linear(params["pos_rowq"], H).T             # (H, nh_kd)
    posk_row = interp_linear(params["pos_rowk"], H).T
    posq_col = interp_linear(params["pos_colq"], W).T              # (W, nh_kd)
    posk_col = interp_linear(params["pos_colk"], W).T

    out = sea_fused(x, params, posq_row, posk_row, posq_col, posk_col,
                    dim=dim, H=H, W=W, num_heads=num_heads, key_dim=key_dim,
                    d=d, scale=scale)                              # (B, dim, H*W)
    return out.reshape(B, dim, H, W)                               # free reshape, NCHW


if __name__ == "__main__":
    B, dim, H, W = 2, 32, 16, 16
    key_dim, num_heads, attn_ratio = 16, 2, 2

    key = jax.random.PRNGKey(0)
    params = init_params(key, dim, key_dim, num_heads, attn_ratio)
    x = jax.random.normal(jax.random.fold_in(key, 1234), (B, dim, H, W),
                          dtype=jnp.float32)

    fwd = jax.jit(functools.partial(sea_attention_forward, dim=dim,
                                    key_dim=key_dim, num_heads=num_heads,
                                    attn_ratio=attn_ratio))
    out = jax.block_until_ready(fwd(x, params))
    assert out.shape == (B, dim, H, W), out.shape
    assert bool(jnp.all(jnp.isfinite(out)))
    print("KERNEL_OK")
</pallas_src>

<mosaic_0001>
module attributes {stable_mosaic.version = 11 : i64} {
  func.func @_sea_kernel(%arg0: i32, %arg1: memref<1x16x16x32xf32, #tpu.memory_space<vmem>>, %arg2: memref<32x128xbf16, #tpu.memory_space<vmem>>, %arg3: memref<1x128xf32, #tpu.memory_space<vmem>>, %arg4: memref<9x128xf32, #tpu.memory_space<vmem>>, %arg5: memref<1x128xf32, #tpu.memory_space<vmem>>, %arg6: memref<32x128xbf16, #tpu.memory_space<vmem>>, %arg7: memref<32x1xf32, #tpu.memory_space<vmem>>, %arg8: memref<16x32xf32, #tpu.memory_space<vmem>>, %arg9: memref<16x32xf32, #tpu.memory_space<vmem>>, %arg10: memref<16x32xf32, #tpu.memory_space<vmem>>, %arg11: memref<16x32xf32, #tpu.memory_space<vmem>>, %arg12: memref<64x64xbf16, #tpu.memory_space<vmem>>, %arg13: memref<1x64xf32, #tpu.memory_space<vmem>>, %arg14: memref<64x64xbf16, #tpu.memory_space<vmem>>, %arg15: memref<1x64xf32, #tpu.memory_space<vmem>>, %arg16: memref<32x64xbf16, #tpu.memory_space<vmem>>, %arg17: memref<32x1xf32, #tpu.memory_space<vmem>>, %arg18: memref<1x32x256xf32, #tpu.memory_space<vmem>>) attributes {dimension_semantics = [#tpu.dimension_semantics<parallel>], iteration_bounds = array<i64: 2>, scalar_prefetch = 0 : i64, scratch_operands = 0 : i64, tpu.core_type = #tpu.core_type<tc>, window_params = [{transform_indices = @transform_0, window_bounds = array<i64: 1, 16, 16, 32>}, {pipeline_mode = #tpu.pipeline_mode<synchronous>, transform_indices = @transform_1, window_bounds = array<i64: 32, 128>}, {pipeline_mode = #tpu.pipeline_mode<synchronous>, transform_indices = @transform_2, window_bounds = array<i64: 1, 128>}, {pipeline_mode = #tpu.pipeline_mode<synchronous>, transform_indices = @transform_3, window_bounds = array<i64: 9, 128>}, {pipeline_mode = #tpu.pipeline_mode<synchronous>, transform_indices = @transform_4, window_bounds = array<i64: 1, 128>}, {pipeline_mode = #tpu.pipeline_mode<synchronous>, transform_indices = @transform_5, window_bounds = array<i64: 32, 128>}, {pipeline_mode = #tpu.pipeline_mode<synchronous>, transform_indices = @transform_6, window_bounds = array<i64: 32, 1>}, {pipeline_mode = #tpu.pipeline_mode<synchronous>, transform_indices = @transform_7, window_bounds = array<i64: 16, 32>}, {pipeline_mode = #tpu.pipeline_mode<synchronous>, transform_indices = @transform_8, window_bounds = array<i64: 16, 32>}, {pipeline_mode = #tpu.pipeline_mode<synchronous>, transform_indices = @transform_9, window_bounds = array<i64: 16, 32>}, {pipeline_mode = #tpu.pipeline_mode<synchronous>, transform_indices = @transform_10, window_bounds = array<i64: 16, 32>}, {pipeline_mode = #tpu.pipeline_mode<synchronous>, transform_indices = @transform_11, window_bounds = array<i64: 64, 64>}, {pipeline_mode = #tpu.pipeline_mode<synchronous>, transform_indices = @transform_12, window_bounds = array<i64: 1, 64>}, {pipeline_mode = #tpu.pipeline_mode<synchronous>, transform_indices = @transform_13, window_bounds = array<i64: 64, 64>}, {pipeline_mode = #tpu.pipeline_mode<synchronous>, transform_indices = @transform_14, window_bounds = array<i64: 1, 64>}, {pipeline_mode = #tpu.pipeline_mode<synchronous>, transform_indices = @transform_15, window_bounds = array<i64: 32, 64>}, {pipeline_mode = #tpu.pipeline_mode<synchronous>, transform_indices = @transform_16, window_bounds = array<i64: 32, 1>}, {transform_indices = @transform_17, window_bounds = array<i64: 1, 32, 256>}]} {
    %c0 = arith.constant 0 : index
    %c0_0 = arith.constant 0 : index
    %c0_1 = arith.constant 0 : index
    %c0_2 = arith.constant 0 : index
    %0 = vector.load %arg1[%c0, %c0_0, %c0_1, %c0_2] : memref<1x16x16x32xf32, #tpu.memory_space<vmem>>, vector<1x16x16x32xf32>
    %1 = vector.shape_cast %0 : vector<1x16x16x32xf32> to vector<16x16x32xf32>
    %2 = vector.shape_cast %1 : vector<16x16x32xf32> to vector<256x32xf32>
    %3 = arith.truncf %2 : vector<256x32xf32> to vector<256x32xbf16>
    %c0_3 = arith.constant 0 : index
    %c0_4 = arith.constant 0 : index
    %4 = vector.load %arg2[%c0_3, %c0_4] : memref<32x128xbf16, #tpu.memory_space<vmem>>, vector<32x128xbf16>
    %cst = arith.constant dense<0.000000e+00> : vector<256x128xf32>
    %5 = tpu.matmul %3, %4, %cst {dimension_numbers = #tpu.dot_dimension_numbers<[1], [0], [0], [1], [0, 0, 1, 1], [], []>} : vector<256x32xbf16>, vector<32x128xbf16>, vector<256x128xf32> -> vector<256x128xf32>
    %c0_5 = arith.constant 0 : index
    %c0_6 = arith.constant 0 : index
    %6 = vector.load %arg3[%c0_5, %c0_6] : memref<1x128xf32, #tpu.memory_space<vmem>>, vector<1x128xf32>
    %7 = vector.broadcast %6 : vector<1x128xf32> to vector<256x128xf32>
    %8 = arith.addf %5, %7 : vector<256x128xf32>
    %9 = vector.shape_cast %8 : vector<256x128xf32> to vector<16x16x128xf32>
    %c0_7 = arith.constant 0 : index
    %c0_8 = arith.constant 0 : index
    %10 = vector.load %arg4[%c0_7, %c0_8] : memref<9x128xf32, #tpu.memory_space<vmem>>, vector<9x128xf32>
    %c0_9 = arith.constant 0 : index
    %c0_10 = arith.constant 0 : index
    %11 = vector.load %arg5[%c0_9, %c0_10] : memref<1x128xf32, #tpu.memory_space<vmem>>, vector<1x128xf32>
    %12 = vector.extract_strided_slice %10 {offsets = [0, 0], sizes = [1, 128], strides = [1, 1]} : vector<9x128xf32> to vector<1x128xf32>
    %13 = vector.extract_strided_slice %10 {offsets = [1, 0], sizes = [1, 128], strides = [1, 1]} : vector<9x128xf32> to vector<1x128xf32>
    %14 = vector.extract_strided_slice %10 {offsets = [2, 0], sizes = [1, 128], strides = [1, 1]} : vector<9x128xf32> to vector<1x128xf32>
    %15 = vector.extract_strided_slice %10 {offsets = [3, 0], sizes = [1, 128], strides = [1, 1]} : vector<9x128xf32> to vector<1x128xf32>
    %16 = vector.extract_strided_slice %10 {offsets = [4, 0], sizes = [1, 128], strides = [1, 1]} : vector<9x128xf32> to vector<1x128xf32>
    %17 = vector.extract_strided_slice %10 {offsets = [5, 0], sizes = [1, 128], strides = [1, 1]} : vector<9x128xf32> to vector<1x128xf32>
    %18 = vector.extract_strided_slice %10 {offsets = [6, 0], sizes = [1, 128], strides = [1, 1]} : vector<9x128xf32> to vector<1x128xf32>
    %19 = vector.extract_strided_slice %10 {offsets = [7, 0], sizes = [1, 128], strides = [1, 1]} : vector<9x128xf32> to vector<1x128xf32>
    %20 = vector.extract_strided_slice %10 {offsets = [8, 0], sizes = [1, 128], strides = [1, 1]} : vector<9x128xf32> to vector<1x128xf32>
    %cst_11 = arith.constant 0.000000e+00 : f32
    %21 = vector.broadcast %cst_11 : f32 to vector<16x128xf32>
    %22 = tpu.iota {dimensions = array<i32: 0>} : vector<16x1xi32>
    %23 = vector.extract_strided_slice %9 {offsets = [0, 0, 0], sizes = [1, 16, 128], strides = [1, 1, 1]} : vector<16x16x128xf32> to vector<1x16x128xf32>
    %24 = vector.shape_cast %23 : vector<1x16x128xf32> to vector<16x128xf32>
    %25 = vector.extract_strided_slice %9 {offsets = [1, 0, 0], sizes = [1, 16, 128], strides = [1, 1, 1]} : vector<16x16x128xf32> to vector<1x16x128xf32>
    %26 = vector.shape_cast %25 : vector<1x16x128xf32> to vector<16x128xf32>
    %27 = vector.broadcast %12 : vector<1x128xf32> to vector<16x128xf32>
    %28 = arith.mulf %27, %21 : vector<16x128xf32>
    %29 = vector.broadcast %15 : vector<1x128xf32> to vector<16x128xf32>
    %30 = arith.mulf %29, %24 : vector<16x128xf32>
    %31 = arith.addf %28, %30 : vector<16x128xf32>
    %32 = vector.broadcast %18 : vector<1x128xf32> to vector<16x128xf32>
    %33 = arith.mulf %32, %26 : vector<16x128xf32>
    %34 = arith.addf %31, %33 : vector<16x128xf32>
    %35 = vector.broadcast %13 : vector<1x128xf32> to vector<16x128xf32>
    %36 = arith.mulf %35, %21 : vector<16x128xf32>
    %37 = vector.broadcast %16 : vector<1x128xf32> to vector<16x128xf32>
    %38 = arith.mulf %37, %24 : vector<16x128xf32>
    %39 = arith.addf %36, %38 : vector<16x128xf32>
    %40 = vector.broadcast %19 : vector<1x128xf32> to vector<16x128xf32>
    %41 = arith.mulf %40, %26 : vector<16x128xf32>
    %42 = arith.addf %39, %41 : vector<16x128xf32>
    %43 = vector.broadcast %14 : vector<1x128xf32> to vector<16x128xf32>
    %44 = arith.mulf %43, %21 : vector<16x128xf32>
    %45 = vector.broadcast %17 : vector<1x128xf32> to vector<16x128xf32>
    %46 = arith.mulf %45, %24 : vector<16x128xf32>
    %47 = arith.addf %44, %46 : vector<16x128xf32>
    %48 = vector.broadcast %20 : vector<1x128xf32> to vector<16x128xf32>
    %49 = arith.mulf %48, %26 : vector<16x128xf32>
    %50 = arith.addf %47, %49 : vector<16x128xf32>
    %c0_i32 = arith.constant 0 : i32
    %51 = vector.broadcast %c0_i32 : i32 to vector<16x1xi32>
    %52 = arith.cmpi sgt, %22, %51 : vector<16x1xi32>
    %c1_i32 = arith.constant 1 : i32
    %53 = tpu.dynamic_rotate %34 by %c1_i32 dim 0 : vector<16x128xf32>, i32 -> vector<16x128xf32>
    %cst_12 = arith.constant 0.000000e+00 : f32
    %54 = vector.shape_cast %52 : vector<16x1xi1> to vector<16x1xi1>
    %55 = vector.broadcast %54 : vector<16x1xi1> to vector<16x128xi1>
    %56 = vector.broadcast %cst_12 : f32 to vector<16x128xf32>
    %57 = arith.select %55, %53, %56 : vector<16x128xi1>, vector<16x128xf32>
    %58 = arith.addf %42, %57 : vector<16x128xf32>
    %c15_i32 = arith.constant 15 : i32
    %59 = vector.broadcast %c15_i32 : i32 to vector<16x1xi32>
    %60 = arith.cmpi slt, %22, %59 : vector<16x1xi32>
    %c15_i32_13 = arith.constant 15 : i32
    %61 = tpu.dynamic_rotate %50 by %c15_i32_13 dim 0 : vector<16x128xf32>, i32 -> vector<16x128xf32>
    %cst_14 = arith.constant 0.000000e+00 : f32
    %62 = vector.shape_cast %60 : vector<16x1xi1> to vector<16x1xi1>
    %63 = vector.broadcast %62 : vector<16x1xi1> to vector<16x128xi1>
    %64 = vector.broadcast %cst_14 : f32 to vector<16x128xf32>
    %65 = arith.select %63, %61, %64 : vector<16x128xi1>, vector<16x128xf32>
    %66 = arith.addf %58, %65 : vector<16x128xf32>
    %67 = vector.broadcast %11 : vector<1x128xf32> to vector<16x128xf32>
    %68 = arith.addf %66, %67 : vector<16x128xf32>
    %cst_15 = arith.constant 0.000000e+00 : f32
    %cst_16 = arith.constant 6.000000e+00 : f32
    %69 = vector.broadcast %cst_15 : f32 to vector<16x128xf32>
    %70 = arith.maximumf %69, %68 : vector<16x128xf32>
    %71 = vector.broadcast %cst_16 : f32 to vector<16x128xf32>
    %72 = arith.minimumf %71, %70 : vector<16x128xf32>
    %73 = arith.truncf %72 : vector<16x128xf32> to vector<16x128xbf16>
    %74 = vector.extract_strided_slice %9 {offsets = [0, 0, 0], sizes = [1, 16, 128], strides = [1, 1, 1]} : vector<16x16x128xf32> to vector<1x16x128xf32>
    %75 = vector.shape_cast %74 : vector<1x16x128xf32> to vector<16x128xf32>
    %76 = vector.extract_strided_slice %9 {offsets = [1, 0, 0], sizes = [1, 16, 128], strides = [1, 1, 1]} : vector<16x16x128xf32> to vector<1x16x128xf32>
    %77 = vector.shape_cast %76 : vector<1x16x128xf32> to vector<16x128xf32>
    %78 = vector.extract_strided_slice %9 {offsets = [2, 0, 0], sizes = [1, 16, 128], strides = [1, 1, 1]} : vector<16x16x128xf32> to vector<1x16x128xf32>
    %79 = vector.shape_cast %78 : vector<1x16x128xf32> to vector<16x128xf32>
    %80 = vector.broadcast %12 : vector<1x128xf32> to vector<16x128xf32>
    %81 = arith.mulf %80, %75 : vector<16x128xf32>
    %82 = vector.broadcast %15 : vector<1x128xf32> to vector<16x128xf32>
    %83 = arith.mulf %82, %77 : vector<16x128xf32>
    %84 = arith.addf %81, %83 : vector<16x128xf32>
    %85 = vector.broadcast %18 : vector<1x128xf32> to vector<16x128xf32>
    %86 = arith.mulf %85, %79 : vector<16x128xf32>
    %87 = arith.addf %84, %86 : vector<16x128xf32>
    %88 = vector.broadcast %13 : vector<1x128xf32> to vector<16x128xf32>
    %89 = arith.mulf %88, %75 : vector<16x128xf32>
    %90 = vector.broadcast %16 : vector<1x128xf32> to vector<16x128xf32>
    %91 = arith.mulf %90, %77 : vector<16x128xf32>
    %92 = arith.addf %89, %91 : vector<16x128xf32>
    %93 = vector.broadcast %19 : vector<1x128xf32> to vector<16x128xf32>
    %94 = arith.mulf %93, %79 : vector<16x128xf32>
    %95 = arith.addf %92, %94 : vector<16x128xf32>
    %96 = vector.broadcast %14 : vector<1x128xf32> to vector<16x128xf32>
    %97 = arith.mulf %96, %75 : vector<16x128xf32>
    %98 = vector.broadcast %17 : vector<1x128xf32> to vector<16x128xf32>
    %99 = arith.mulf %98, %77 : vector<16x128xf32>
    %100 = arith.addf %97, %99 : vector<16x128xf32>
    %101 = vector.broadcast %20 : vector<1x128xf32> to vector<16x128xf32>
    %102 = arith.mulf %101, %79 : vector<16x128xf32>
    %103 = arith.addf %100, %102 : vector<16x128xf32>
    %c0_i32_17 = arith.constant 0 : i32
    %104 = vector.broadcast %c0_i32_17 : i32 to vector<16x1xi32>
    %105 = arith.cmpi sgt, %22, %104 : vector<16x1xi32>
    %c1_i32_18 = arith.constant 1 : i32
    %106 = tpu.dynamic_rotate %87 by %c1_i32_18 dim 0 : vector<16x128xf32>, i32 -> vector<16x128xf32>
    %cst_19 = arith.constant 0.000000e+00 : f32
    %107 = vector.shape_cast %105 : vector<16x1xi1> to vector<16x1xi1>
    %108 = vector.broadcast %107 : vector<16x1xi1> to vector<16x128xi1>
    %109 = vector.broadcast %cst_19 : f32 to vector<16x128xf32>
    %110 = arith.select %108, %106, %109 : vector<16x128xi1>, vector<16x128xf32>
    %111 = arith.addf %95, %110 : vector<16x128xf32>
    %c15_i32_20 = arith.constant 15 : i32
    %112 = vector.broadcast %c15_i32_20 : i32 to vector<16x1xi32>
    %113 = arith.cmpi slt, %22, %112 : vector<16x1xi32>
    %c15_i32_21 = arith.constant 15 : i32
    %114 = tpu.dynamic_rotate %103 by %c15_i32_21 dim 0 : vector<16x128xf32>, i32 -> vector<16x128xf32>
    %cst_22 = arith.constant 0.000000e+00 : f32
    %115 = vector.shape_cast %113 : vector<16x1xi1> to vector<16x1xi1>
    %116 = vector.broadcast %115 : vector<16x1xi1> to vector<16x128xi1>
    %117 = vector.broadcast %cst_22 : f32 to vector<16x128xf32>
    %118 = arith.select %116, %114, %117 : vector<16x128xi1>, vector<16x128xf32>
    %119 = arith.addf %111, %118 : vector<16x128xf32>
    %120 = vector.broadcast %11 : vector<1x128xf32> to vector<16x128xf32>
    %121 = arith.addf %119, %120 : vector<16x128xf32>
    %cst_23 = arith.constant 0.000000e+00 : f32
    %cst_24 = arith.constant 6.000000e+00 : f32
    %122 = vector.broadcast %cst_23 : f32 to vector<16x128xf32>
    %123 = arith.maximumf %122, %121 : vector<16x128xf32>
    %124 = vector.broadcast %cst_24 : f32 to vector<16x128xf32>
    %125 = arith.minimumf %124, %123 : vector<16x128xf32>
    %126 = arith.truncf %125 : vector<16x128xf32> to vector<16x128xbf16>
    %127 = vector.extract_strided_slice %9 {offsets = [1, 0, 0], sizes = [1, 16, 128], strides = [1, 1, 1]} : vector<16x16x128xf32> to vector<1x16x128xf32>
    %128 = vector.shape_cast %127 : vector<1x16x128xf32> to vector<16x128xf32>
    %129 = vector.extract_strided_slice %9 {offsets = [2, 0, 0], sizes = [1, 16, 128], strides = [1, 1, 1]} : vector<16x16x128xf32> to vector<1x16x128xf32>
    %130 = vector.shape_cast %129 : vector<1x16x128xf32> to vector<16x128xf32>
    %131 = vector.extract_strided_slice %9 {offsets = [3, 0, 0], sizes = [1, 16, 128], strides = [1, 1, 1]} : vector<16x16x128xf32> to vector<1x16x128xf32>
    %132 = vector.shape_cast %131 : vector<1x16x128xf32> to vector<16x128xf32>
    %133 = vector.broadcast %12 : vector<1x128xf32> to vector<16x128xf32>
    %134 = arith.mulf %133, %128 : vector<16x128xf32>
    %135 = vector.broadcast %15 : vector<1x128xf32> to vector<16x128xf32>
    %136 = arith.mulf %135, %130 : vector<16x128xf32>
    %137 = arith.addf %134, %136 : vector<16x128xf32>
    %138 = vector.broadcast %18 : vector<1x128xf32> to vector<16x128xf32>
    %139 = arith.mulf %138, %132 : vector<16x128xf32>
    %140 = arith.addf %137, %139 : vector<16x128xf32>
    %141 = vector.broadcast %13 : vector<1x128xf32> to vector<16x128xf32>
    %142 = arith.mulf %141, %128 : vector<16x128xf32>
    %143 = vector.broadcast %16 : vector<1x128xf32> to vector<16x128xf32>
    %144 = arith.mulf %143, %130 : vector<16x128xf32>
    %145 = arith.addf %142, %144 : vector<16x128xf32>
    %146 = vector.broadcast %19 : vector<1x128xf32> to vector<16x128xf32>
    %147 = arith.mulf %146, %132 : vector<16x128xf32>
    %148 = arith.addf %145, %147 : vector<16x128xf32>
    %149 = vector.broadcast %14 : vector<1x128xf32> to vector<16x128xf32>
    %150 = arith.mulf %149, %128 : vector<16x128xf32>
    %151 = vector.broadcast %17 : vector<1x128xf32> to vector<16x128xf32>
    %152 = arith.mulf %151, %130 : vector<16x128xf32>
    %153 = arith.addf %150, %152 : vector<16x128xf32>
    %154 = vector.broadcast %20 : vector<1x128xf32> to vector<16x128xf32>
    %155 = arith.mulf %154, %132 : vector<16x128xf32>
    %156 = arith.addf %153, %155 : vector<16x128xf32>
    %c0_i32_25 = arith.constant 0 : i32
    %157 = vector.broadcast %c0_i32_25 : i32 to vector<16x1xi32>
    %158 = arith.cmpi sgt, %22, %157 : vector<16x1xi32>
    %c1_i32_26 = arith.constant 1 : i32
    %159 = tpu.dynamic_rotate %140 by %c1_i32_26 dim 0 : vector<16x128xf32>, i32 -> vector<16x128xf32>
    %cst_27 = arith.constant 0.000000e+00 : f32
    %160 = vector.shape_cast %158 : vector<16x1xi1> to vector<16x1xi1>
    %161 = vector.broadcast %160 : vector<16x1xi1> to vector<16x128xi1>
    %162 = vector.broadcast %cst_27 : f32 to vector<16x128xf32>
    %163 = arith.select %161, %159, %162 : vector<16x128xi1>, vector<16x128xf32>
    %164 = arith.addf %148, %163 : vector<16x128xf32>
    %c15_i32_28 = arith.constant 15 : i32
    %165 = vector.broadcast %c15_i32_28 : i32 to vector<16x1xi32>
    %166 = arith.cmpi slt, %22, %165 : vector<16x1xi32>
    %c15_i32_29 = arith.constant 15 : i32
    %167 = tpu.dynamic_rotate %156 by %c15_i32_29 dim 0 : vector<16x128xf32>, i32 -> vector<16x128xf32>
    %cst_30 = arith.constant 0.000000e+00 : f32
    %168 = vector.shape_cast %166 : vector<16x1xi1> to vector<16x1xi1>
    %169 = vector.broadcast %168 : vector<16x1xi1> to vector<16x128xi1>
    %170 = vector.broadcast %cst_30 : f32 to vector<16x128xf32>
    %171 = arith.select %169, %167, %170 : vector<16x128xi1>, vector<16x128xf32>
    %172 = arith.addf %164, %171 : vector<16x128xf32>
    %173 = vector.broadcast %11 : vector<1x128xf32> to vector<16x128xf32>
    %174 = arith.addf %172, %173 : vector<16x128xf32>
    %cst_31 = arith.constant 0.000000e+00 : f32
    %cst_32 = arith.constant 6.000000e+00 : f32
    %175 = vector.broadcast %cst_31 : f32 to vector<16x128xf32>
    %176 = arith.maximumf %175, %174 : vector<16x128xf32>
    %177 = vector.broadcast %cst_32 : f32 to vector<16x128xf32>
    %178 = arith.minimumf %177, %176 : vector<16x128xf32>
    %179 = arith.truncf %178 : vector<16x128xf32> to vector<16x128xbf16>
    %180 = vector.extract_strided_slice %9 {offsets = [2, 0, 0], sizes = [1, 16, 128], strides = [1, 1, 1]} : vector<16x16x128xf32> to vector<1x16x128xf32>
    %181 = vector.shape_cast %180 : vector<1x16x128xf32> to vector<16x128xf32>
    %182 = vector.extract_strided_slice %9 {offsets = [3, 0, 0], sizes = [1, 16, 128], strides = [1, 1, 1]} : vector<16x16x128xf32> to vector<1x16x128xf32>
    %183 = vector.shape_cast %182 : vector<1x16x128xf32> to vector<16x128xf32>
    %184 = vector.extract_strided_slice %9 {offsets = [4, 0, 0], sizes = [1, 16, 128], strides = [1, 1, 1]} : vector<16x16x128xf32> to vector<1x16x128xf32>
    %185 = vector.shape_cast %184 : vector<1x16x128xf32> to vector<16x128xf32>
    %186 = vector.broadcast %12 : vector<1x128xf32> to vector<16x128xf32>
    %187 = arith.mulf %186, %181 : vector<16x128xf32>
    %188 = vector.broadcast %15 : vector<1x128xf32> to vector<16x128xf32>
    %189 = arith.mulf %188, %183 : vector<16x128xf32>
    %190 = arith.addf %187, %189 : vector<16x128xf32>
    %191 = vector.broadcast %18 : vector<1x128xf32> to vector<16x128xf32>
    %192 = arith.mulf %191, %185 : vector<16x128xf32>
    %193 = arith.addf %190, %192 : vector<16x128xf32>
    %194 = vector.broadcast %13 : vector<1x128xf32> to vector<16x128xf32>
    %195 = arith.mulf %194, %181 : vector<16x128xf32>
    %196 = vector.broadcast %16 : vector<1x128xf32> to vector<16x128xf32>
    %197 = arith.mulf %196, %183 : vector<16x128xf32>
    %198 = arith.addf %195, %197 : vector<16x128xf32>
    %199 = vector.broadcast %19 : vector<1x128xf32> to vector<16x128xf32>
    %200 = arith.mulf %199, %185 : vector<16x128xf32>
    %201 = arith.addf %198, %200 : vector<16x128xf32>
    %202 = vector.broadcast %14 : vector<1x128xf32> to vector<16x128xf32>
    %203 = arith.mulf %202, %181 : vector<16x128xf32>
    %204 = vector.broadcast %17 : vector<1x128xf32> to vector<16x128xf32>
    %205 = arith.mulf %204, %183 : vector<16x128xf32>
    %206 = arith.addf %203, %205 : vector<16x128xf32>
    %207 = vector.broadcast %20 : vector<1x128xf32> to vector<16x128xf32>
    %208 = arith.mulf %207, %185 : vector<16x128xf32>
    %209 = arith.addf %206, %208 : vector<16x128xf32>
    %c0_i32_33 = arith.constant 0 : i32
    %210 = vector.broadcast %c0_i32_33 : i32 to vector<16x1xi32>
    %211 = arith.cmpi sgt, %22, %210 : vector<16x1xi32>
    %c1_i32_34 = arith.constant 1 : i32
    %212 = tpu.dynamic_rotate %193 by %c1_i32_34 dim 0 : vector<16x128xf32>, i32 -> vector<16x128xf32>
    %cst_35 = arith.constant 0.000000e+00 : f32
    %213 = vector.shape_cast %211 : vector<16x1xi1> to vector<16x1xi1>
    %214 = vector.broadcast %213 : vector<16x1xi1> to vector<16x128xi1>
    %215 = vector.broadcast %cst_35 : f32 to vector<16x128xf32>
    %216 = arith.select %214, %212, %215 : vector<16x128xi1>, vector<16x128xf32>
    %217 = arith.addf %201, %216 : vector<16x128xf32>
    %c15_i32_36 = arith.constant 15 : i32
    %218 = vector.broadcast %c15_i32_36 : i32 to vector<16x1xi32>
    %219 = arith.cmpi slt, %22, %218 : vector<16x1xi32>
    %c15_i32_37 = arith.constant 15 : i32
    %220 = tpu.dynamic_rotate %209 by %c15_i32_37 dim 0 : vector<16x128xf32>, i32 -> vector<16x128xf32>
    %cst_38 = arith.constant 0.000000e+00 : f32
    %221 = vector.shape_cast %219 : vector<16x1xi1> to vector<16x1xi1>
    %222 = vector.broadcast %221 : vector<16x1xi1> to vector<16x128xi1>
    %223 = vector.broadcast %cst_38 : f32 to vector<16x128xf32>
    %224 = arith.select %222, %220, %223 : vector<16x128xi1>, vector<16x128xf32>
    %225 = arith.addf %217, %224 : vector<16x128xf32>
    %226 = vector.broadcast %11 : vector<1x128xf32> to vector<16x128xf32>
    %227 = arith.addf %225, %226 : vector<16x128xf32>
    %cst_39 = arith.constant 0.000000e+00 : f32
    %cst_40 = arith.constant 6.000000e+00 : f32
    %228 = vector.broadcast %cst_39 : f32 to vector<16x128xf32>
    %229 = arith.maximumf %228, %227 : vector<16x128xf32>
    %230 = vector.broadcast %cst_40 : f32 to vector<16x128xf32>
    %231 = arith.minimumf %230, %229 : vector<16x128xf32>
    %232 = arith.truncf %231 : vector<16x128xf32> to vector<16x128xbf16>
    %233 = vector.extract_strided_slice %9 {offsets = [3, 0, 0], sizes = [1, 16, 128], strides = [1, 1, 1]} : vector<16x16x128xf32> to vector<1x16x128xf32>
    %234 = vector.shape_cast %233 : vector<1x16x128xf32> to vector<16x128xf32>
    %235 = vector.extract_strided_slice %9 {offsets = [4, 0, 0], sizes = [1, 16, 128], strides = [1, 1, 1]} : vector<16x16x128xf32> to vector<1x16x128xf32>
    %236 = vector.shape_cast %235 : vector<1x16x128xf32> to vector<16x128xf32>
    %237 = vector.extract_strided_slice %9 {offsets = [5, 0, 0], sizes = [1, 16, 128], strides = [1, 1, 1]} : vector<16x16x128xf32> to vector<1x16x128xf32>
    %238 = vector.shape_cast %237 : vector<1x16x128xf32> to vector<16x128xf32>
    %239 = vector.broadcast %12 : vector<1x128xf32> to vector<16x128xf32>
    %240 = arith.mulf %239, %234 : vector<16x128xf32>
    %241 = vector.broadcast %15 : vector<1x128xf32> to vector<16x128xf32>
    %242 = arith.mulf %241, %236 : vector<16x128xf32>
    %243 = arith.addf %240, %242 : vector<16x128xf32>
    %244 = vector.broadcast %18 : vector<1x128xf32> to vector<16x128xf32>
    %245 = arith.mulf %244, %238 : vector<16x128xf32>
    %246 = arith.addf %243, %245 : vector<16x128xf32>
    %247 = vector.broadcast %13 : vector<1x128xf32> to vector<16x128xf32>
    %248 = arith.mulf %247, %234 : vector<16x128xf32>
    %249 = vector.broadcast %16 : vector<1x128xf32> to vector<16x128xf32>
    %250 = arith.mulf %249, %236 : vector<16x128xf32>
    %251 = arith.addf %248, %250 : vector<16x128xf32>
    %252 = vector.broadcast %19 : vector<1x128xf32> to vector<16x128xf32>
    %253 = arith.mulf %252, %238 : vector<16x128xf32>
    %254 = arith.addf %251, %253 : vector<16x128xf32>
    %255 = vector.broadcast %14 : vector<1x128xf32> to vector<16x128xf32>
    %256 = arith.mulf %255, %234 : vector<16x128xf32>
    %257 = vector.broadcast %17 : vector<1x128xf32> to vector<16x128xf32>
    %258 = arith.mulf %257, %236 : vector<16x128xf32>
    %259 = arith.addf %256, %258 : vector<16x128xf32>
    %260 = vector.broadcast %20 : vector<1x128xf32> to vector<16x128xf32>
    %261 = arith.mulf %260, %238 : vector<16x128xf32>
    %262 = arith.addf %259, %261 : vector<16x128xf32>
    %c0_i32_41 = arith.constant 0 : i32
    %263 = vector.broadcast %c0_i32_41 : i32 to vector<16x1xi32>
    %264 = arith.cmpi sgt, %22, %263 : vector<16x1xi32>
    %c1_i32_42 = arith.constant 1 : i32
    %265 = tpu.dynamic_rotate %246 by %c1_i32_42 dim 0 : vector<16x128xf32>, i32 -> vector<16x128xf32>
    %cst_43 = arith.constant 0.000000e+00 : f32
    %266 = vector.shape_cast %264 : vector<16x1xi1> to vector<16x1xi1>
    %267 = vector.broadcast %266 : vector<16x1xi1> to vector<16x128xi1>
    %268 = vector.broadcast %cst_43 : f32 to vector<16x128xf32>
    %269 = arith.select %267, %265, %268 : vector<16x128xi1>, vector<16x128xf32>
    %270 = arith.addf %254, %269 : vector<16x128xf32>
    %c15_i32_44 = arith.constant 15 : i32
    %271 = vector.broadcast %c15_i32_44 : i32 to vector<16x1xi32>
    %272 = arith.cmpi slt, %22, %271 : vector<16x1xi32>
    %c15_i32_45 = arith.constant 15 : i32
    %273 = tpu.dynamic_rotate %262 by %c15_i32_45 dim 0 : vector<16x128xf32>, i32 -> vector<16x128xf32>
    %cst_46 = arith.constant 0.000000e+00 : f32
    %274 = vector.shape_cast %272 : vector<16x1xi1> to vector<16x1xi1>
    %275 = vector.broadcast %274 : vector<16x1xi1> to vector<16x128xi1>
    %276 = vector.broadcast %cst_46 : f32 to vector<16x128xf32>
    %277 = arith.select %275, %273, %276 : vector<16x128xi1>, vector<16x128xf32>
    %278 = arith.addf %270, %277 : vector<16x128xf32>
    %279 = vector.broadcast %11 : vector<1x128xf32> to vector<16x128xf32>
    %280 = arith.addf %278, %279 : vector<16x128xf32>
    %cst_47 = arith.constant 0.000000e+00 : f32
    %cst_48 = arith.constant 6.000000e+00 : f32
    %281 = vector.broadcast %cst_47 : f32 to vector<16x128xf32>
    %282 = arith.maximumf %281, %280 : vector<16x128xf32>
    %283 = vector.broadcast %cst_48 : f32 to vector<16x128xf32>
    %284 = arith.minimumf %283, %282 : vector<16x128xf32>
    %285 = arith.truncf %284 : vector<16x128xf32> to vector<16x128xbf16>
    %286 = vector.extract_strided_slice %9 {offsets = [4, 0, 0], sizes = [1, 16, 128], strides = [1, 1, 1]} : vector<16x16x128xf32> to vector<1x16x128xf32>
    %287 = vector.shape_cast %286 : vector<1x16x128xf32> to vector<16x128xf32>
    %288 = vector.extract_strided_slice %9 {offsets = [5, 0, 0], sizes = [1, 16, 128], strides = [1, 1, 1]} : vector<16x16x128xf32> to vector<1x16x128xf32>
    %289 = vector.shape_cast %288 : vector<1x16x128xf32> to vector<16x128xf32>
    %290 = vector.extract_strided_slice %9 {offsets = [6, 0, 0], sizes = [1, 16, 128], strides = [1, 1, 1]} : vector<16x16x128xf32> to vector<1x16x128xf32>
    %291 = vector.shape_cast %290 : vector<1x16x128xf32> to vector<16x128xf32>
    %292 = vector.broadcast %12 : vector<1x128xf32> to vector<16x128xf32>
    %293 = arith.mulf %292, %287 : vector<16x128xf32>
    %294 = vector.broadcast %15 : vector<1x128xf32> to vector<16x128xf32>
    %295 = arith.mulf %294, %289 : vector<16x128xf32>
    %296 = arith.addf %293, %295 : vector<16x128xf32>
    %297 = vector.broadcast %18 : vector<1x128xf32> to vector<16x128xf32>
    %298 = arith.mulf %297, %291 : vector<16x128xf32>
    %299 = arith.addf %296, %298 : vector<16x128xf32>
    %300 = vector.broadcast %13 : vector<1x128xf32> to vector<16x128xf32>
    %301 = arith.mulf %300, %287 : vector<16x128xf32>
    %302 = vector.broadcast %16 : vector<1x128xf32> to vector<16x128xf32>
    %303 = arith.mulf %302, %289 : vector<16x128xf32>
    %304 = arith.addf %301, %303 : vector<16x128xf32>
    %305 = vector.broadcast %19 : vector<1x128xf32> to vector<16x128xf32>
    %306 = arith.mulf %305, %291 : vector<16x128xf32>
    %307 = arith.addf %304, %306 : vector<16x128xf32>
    %308 = vector.broadcast %14 : vector<1x128xf32> to vector<16x128xf32>
    %309 = arith.mulf %308, %287 : vector<16x128xf32>
    %310 = vector.broadcast %17 : vector<1x128xf32> to vector<16x128xf32>
    %311 = arith.mulf %310, %289 : vector<16x128xf32>
    %312 = arith.addf %309, %311 : vector<16x128xf32>
    %313 = vector.broadcast %20 : vector<1x128xf32> to vector<16x128xf32>
    %314 = arith.mulf %313, %291 : vector<16x128xf32>
    %315 = arith.addf %312, %314 : vector<16x128xf32>
    %c0_i32_49 = arith.constant 0 : i32
    %316 = vector.broadcast %c0_i32_49 : i32 to vector<16x1xi32>
    %317 = arith.cmpi sgt, %22, %316 : vector<16x1xi32>
    %c1_i32_50 = arith.constant 1 : i32
    %318 = tpu.dynamic_rotate %299 by %c1_i32_50 dim 0 : vector<16x128xf32>, i32 -> vector<16x128xf32>
    %cst_51 = arith.constant 0.000000e+00 : f32
    %319 = vector.shape_cast %317 : vector<16x1xi1> to vector<16x1xi1>
    %320 = vector.broadcast %319 : vector<16x1xi1> to vector<16x128xi1>
    %321 = vector.broadcast %cst_51 : f32 to vector<16x128xf32>
    %322 = arith.select %320, %318, %321 : vector<16x128xi1>, vector<16x128xf32>
    %323 = arith.addf %307, %322 : vector<16x128xf32>
    %c15_i32_52 = arith.constant 15 : i32
    %324 = vector.broadcast %c15_i32_52 : i32 to vector<16x1xi32>
    %325 = arith.cmpi slt, %22, %324 : vector<16x1xi32>
    %c15_i32_53 = arith.constant 15 : i32
    %326 = tpu.dynamic_rotate %315 by %c15_i32_53 dim 0 : vector<16x128xf32>, i32 -> vector<16x128xf32>
    %cst_54 = arith.constant 0.000000e+00 : f32
    %327 = vector.shape_cast %325 : vector<16x1xi1> to vector<16x1xi1>
    %328 = vector.broadcast %327 : vector<16x1xi1> to vector<16x128xi1>
    %329 = vector.broadcast %cst_54 : f32 to vector<16x128xf32>
    %330 = arith.select %328, %326, %329 : vector<16x128xi1>, vector<16x128xf32>
    %331 = arith.addf %323, %330 : vector<16x128xf32>
    %332 = vector.broadcast %11 : vector<1x128xf32> to vector<16x128xf32>
    %333 = arith.addf %331, %332 : vector<16x128xf32>
    %cst_55 = arith.constant 0.000000e+00 : f32
    %cst_56 = arith.constant 6.000000e+00 : f32
    %334 = vector.broadcast %cst_55 : f32 to vector<16x128xf32>
    %335 = arith.maximumf %334, %333 : vector<16x128xf32>
    %336 = vector.broadcast %cst_56 : f32 to vector<16x128xf32>
    %337 = arith.minimumf %336, %335 : vector<16x128xf32>
    %338 = arith.truncf %337 : vector<16x128xf32> to vector<16x128xbf16>
    %339 = vector.extract_strided_slice %9 {offsets = [5, 0, 0], sizes = [1, 16, 128], strides = [1, 1, 1]} : vector<16x16x128xf32> to vector<1x16x128xf32>
    %340 = vector.shape_cast %339 : vector<1x16x128xf32> to vector<16x128xf32>
    %341 = vector.extract_strided_slice %9 {offsets = [6, 0, 0], sizes = [1, 16, 128], strides = [1, 1, 1]} : vector<16x16x128xf32> to vector<1x16x128xf32>
    %342 = vector.shape_cast %341 : vector<1x16x128xf32> to vector<16x128xf32>
    %343 = vector.extract_strided_slice %9 {offsets = [7, 0, 0], sizes = [1, 16, 128], strides = [1, 1, 1]} : vector<16x16x128xf32> to vector<1x16x128xf32>
    %344 = vector.shape_cast %343 : vector<1x16x128xf32> to vector<16x128xf32>
    %345 = vector.broadcast %12 : vector<1x128xf32> to vector<16x128xf32>
    %346 = arith.mulf %345, %340 : vector<16x128xf32>
    %347 = vector.broadcast %15 : vector<1x128xf32> to vector<16x128xf32>
    %348 = arith.mulf %347, %342 : vector<16x128xf32>
    %349 = arith.addf %346, %348 : vector<16x128xf32>
    %350 = vector.broadcast %18 : vector<1x128xf32> to vector<16x128xf32>
    %351 = arith.mulf %350, %344 : vector<16x128xf32>
    %352 = arith.addf %349, %351 : vector<16x128xf32>
    %353 = vector.broadcast %13 : vector<1x128xf32> to vector<16x128xf32>
    %354 = arith.mulf %353, %340 : vector<16x128xf32>
    %355 = vector.broadcast %16 : vector<1x128xf32> to vector<16x128xf32>
    %356 = arith.mulf %355, %342 : vector<16x128xf32>
    %357 = arith.addf %354, %356 : vector<16x128xf32>
    %358 = vector.broadcast %19 : vector<1x128xf32> to vector<16x128xf32>
    %359 = arith.mulf %358, %344 : vector<16x128xf32>
    %360 = arith.addf %357, %359 : vector<16x128xf32>
    %361 = vector.broadcast %14 : vector<1x128xf32> to vector<16x128xf32>
    %362 = arith.mulf %361, %340 : vector<16x128xf32>
    %363 = vector.broadcast %17 : vector<1x128xf32> to vector<16x128xf32>
    %364 = arith.mulf %363, %342 : vector<16x128xf32>
    %365 = arith.addf %362, %364 : vector<16x128xf32>
    %366 = vector.broadcast %20 : vector<1x128xf32> to vector<16x128xf32>
    %367 = arith.mulf %366, %344 : vector<16x128xf32>
    %368 = arith.addf %365, %367 : vector<16x128xf32>
    %c0_i32_57 = arith.constant 0 : i32
    %369 = vector.broadcast %c0_i32_57 : i32 to vector<16x1xi32>
    %370 = arith.cmpi sgt, %22, %369 : vector<16x1xi32>
    %c1_i32_58 = arith.constant 1 : i32
    %371 = tpu.dynamic_rotate %352 by %c1_i32_58 dim 0 : vector<16x128xf32>, i32 -> vector<16x128xf32>
    %cst_59 = arith.constant 0.000000e+00 : f32
    %372 = vector.shape_cast %370 : vector<16x1xi1> to vector<16x1xi1>
    %373 = vector.broadcast %372 : vector<16x1xi1> to vector<16x128xi1>
    %374 = vector.broadcast %cst_59 : f32 to vector<16x128xf32>
    %375 = arith.select %373, %371, %374 : vector<16x128xi1>, vector<16x128xf32>
    %376 = arith.addf %360, %375 : vector<16x128xf32>
    %c15_i32_60 = arith.constant 15 : i32
    %377 = vector.broadcast %c15_i32_60 : i32 to vector<16x1xi32>
    %378 = arith.cmpi slt, %22, %377 : vector<16x1xi32>
    %c15_i32_61 = arith.constant 15 : i32
    %379 = tpu.dynamic_rotate %368 by %c15_i32_61 dim 0 : vector<16x128xf32>, i32 -> vector<16x128xf32>
    %cst_62 = arith.constant 0.000000e+00 : f32
    %380 = vector.shape_cast %378 : vector<16x1xi1> to vector<16x1xi1>
    %381 = vector.broadcast %380 : vector<16x1xi1> to vector<16x128xi1>
    %382 = vector.broadcast %cst_62 : f32 to vector<16x128xf32>
    %383 = arith.select %381, %379, %382 : vector<16x128xi1>, vector<16x128xf32>
    %384 = arith.addf %376, %383 : vector<16x128xf32>
    %385 = vector.broadcast %11 : vector<1x128xf32> to vector<16x128xf32>
    %386 = arith.addf %384, %385 : vector<16x128xf32>
    %cst_63 = arith.constant 0.000000e+00 : f32
    %cst_64 = arith.constant 6.000000e+00 : f32
    %387 = vector.broadcast %cst_63 : f32 to vector<16x128xf32>
    %388 = arith.maximumf %387, %386 : vector<16x128xf32>
    %389 = vector.broadcast %cst_64 : f32 to vector<16x128xf32>
    %390 = arith.minimumf %389, %388 : vector<16x128xf32>
    %391 = arith.truncf %390 : vector<16x128xf32> to vector<16x128xbf16>
    %392 = vector.extract_strided_slice %9 {offsets = [6, 0, 0], sizes = [1, 16, 128], strides = [1, 1, 1]} : vector<16x16x128xf32> to vector<1x16x128xf32>
    %393 = vector.shape_cast %392 : vector<1x16x128xf32> to vector<16x128xf32>
    %394 = vector.extract_strided_slice %9 {offsets = [7, 0, 0], sizes = [1, 16, 128], strides = [1, 1, 1]} : vector<16x16x128xf32> to vector<1x16x128xf32>
    %395 = vector.shape_cast %394 : vector<1x16x128xf32> to vector<16x128xf32>
    %396 = vector.extract_strided_slice %9 {offsets = [8, 0, 0], sizes = [1, 16, 128], strides = [1, 1, 1]} : vector<16x16x128xf32> to vector<1x16x128xf32>
    %397 = vector.shape_cast %396 : vector<1x16x128xf32> to vector<16x128xf32>
    %398 = vector.broadcast %12 : vector<1x128xf32> to vector<16x128xf32>
    %399 = arith.mulf %398, %393 : vector<16x128xf32>
    %400 = vector.broadcast %15 : vector<1x128xf32> to vector<16x128xf32>
    %401 = arith.mulf %400, %395 : vector<16x128xf32>
    %402 = arith.addf %399, %401 : vector<16x128xf32>
    %403 = vector.broadcast %18 : vector<1x128xf32> to vector<16x128xf32>
    %404 = arith.mulf %403, %397 : vector<16x128xf32>
    %405 = arith.addf %402, %404 : vector<16x128xf32>
    %406 = vector.broadcast %13 : vector<1x128xf32> to vector<16x128xf32>
    %407 = arith.mulf %406, %393 : vector<16x128xf32>
    %408 = vector.broadcast %16 : vector<1x128xf32> to vector<16x128xf32>
    %409 = arith.mulf %408, %395 : vector<16x128xf32>
    %410 = arith.addf %407, %409 : vector<16x128xf32>
    %411 = vector.broadcast %19 : vector<1x128xf32> to vector<16x128xf32>
    %412 = arith.mulf %411, %397 : vector<16x128xf32>
    %413 = arith.addf %410, %412 : vector<16x128xf32>
    %414 = vector.broadcast %14 : vector<1x128xf32> to vector<16x128xf32>
    %415 = arith.mulf %414, %393 : vector<16x128xf32>
    %416 = vector.broadcast %17 : vector<1x128xf32> to vector<16x128xf32>
    %417 = arith.mulf %416, %395 : vector<16x128xf32>
    %418 = arith.addf %415, %417 : vector<16x128xf32>
    %419 = vector.broadcast %20 : vector<1x128xf32> to vector<16x128xf32>
    %420 = arith.mulf %419, %397 : vector<16x128xf32>
    %421 = arith.addf %418, %420 : vector<16x128xf32>
    %c0_i32_65 = arith.constant 0 : i32
    %422 = vector.broadcast %c0_i32_65 : i32 to vector<16x1xi32>
    %423 = arith.cmpi sgt, %22, %422 : vector<16x1xi32>
    %c1_i32_66 = arith.constant 1 : i32
    %424 = tpu.dynamic_rotate %405 by %c1_i32_66 dim 0 : vector<16x128xf32>, i32 -> vector<16x128xf32>
    %cst_67 = arith.constant 0.000000e+00 : f32
    %425 = vector.shape_cast %423 : vector<16x1xi1> to vector<16x1xi1>
    %426 = vector.broadcast %425 : vector<16x1xi1> to vector<16x128xi1>
    %427 = vector.broadcast %cst_67 : f32 to vector<16x128xf32>
    %428 = arith.select %426, %424, %427 : vector<16x128xi1>, vector<16x128xf32>
    %429 = arith.addf %413, %428 : vector<16x128xf32>
    %c15_i32_68 = arith.constant 15 : i32
    %430 = vector.broadcast %c15_i32_68 : i32 to vector<16x1xi32>
    %431 = arith.cmpi slt, %22, %430 : vector<16x1xi32>
    %c15_i32_69 = arith.constant 15 : i32
    %432 = tpu.dynamic_rotate %421 by %c15_i32_69 dim 0 : vector<16x128xf32>, i32 -> vector<16x128xf32>
    %cst_70 = arith.constant 0.000000e+00 : f32
    %433 = vector.shape_cast %431 : vector<16x1xi1> to vector<16x1xi1>
    %434 = vector.broadcast %433 : vector<16x1xi1> to vector<16x128xi1>
    %435 = vector.broadcast %cst_70 : f32 to vector<16x128xf32>
    %436 = arith.select %434, %432, %435 : vector<16x128xi1>, vector<16x128xf32>
    %437 = arith.addf %429, %436 : vector<16x128xf32>
    %438 = vector.broadcast %11 : vector<1x128xf32> to vector<16x128xf32>
    %439 = arith.addf %437, %438 : vector<16x128xf32>
    %cst_71 = arith.constant 0.000000e+00 : f32
    %cst_72 = arith.constant 6.000000e+00 : f32
    %440 = vector.broadcast %cst_71 : f32 to vector<16x128xf32>
    %441 = arith.maximumf %440, %439 : vector<16x128xf32>
    %442 = vector.broadcast %cst_72 : f32 to vector<16x128xf32>
    %443 = arith.minimumf %442, %441 : vector<16x128xf32>
    %444 = arith.truncf %443 : vector<16x128xf32> to vector<16x128xbf16>
    %445 = vector.extract_strided_slice %9 {offsets = [7, 0, 0], sizes = [1, 16, 128], strides = [1, 1, 1]} : vector<16x16x128xf32> to vector<1x16x128xf32>
    %446 = vector.shape_cast %445 : vector<1x16x128xf32> to vector<16x128xf32>
    %447 = vector.extract_strided_slice %9 {offsets = [8, 0, 0], sizes = [1, 16, 128], strides = [1, 1, 1]} : vector<16x16x128xf32> to vector<1x16x128xf32>
    %448 = vector.shape_cast %447 : vector<1x16x128xf32> to vector<16x128xf32>
    %449 = vector.extract_strided_slice %9 {offsets = [9, 0, 0], sizes = [1, 16, 128], strides = [1, 1, 1]} : vector<16x16x128xf32> to vector<1x16x128xf32>
    %450 = vector.shape_cast %449 : vector<1x16x128xf32> to vector<16x128xf32>
    %451 = vector.broadcast %12 : vector<1x128xf32> to vector<16x128xf32>
    %452 = arith.mulf %451, %446 : vector<16x128xf32>
    %453 = vector.broadcast %15 : vector<1x128xf32> to vector<16x128xf32>
    %454 = arith.mulf %453, %448 : vector<16x128xf32>
    %455 = arith.addf %452, %454 : vector<16x128xf32>
    %456 = vector.broadcast %18 : vector<1x128xf32> to vector<16x128xf32>
    %457 = arith.mulf %456, %450 : vector<16x128xf32>
    %458 = arith.addf %455, %457 : vector<16x128xf32>
    %459 = vector.broadcast %13 : vector<1x128xf32> to vector<16x128xf32>
    %460 = arith.mulf %459, %446 : vector<16x128xf32>
    %461 = vector.broadcast %16 : vector<1x128xf32> to vector<16x128xf32>
    %462 = arith.mulf %461, %448 : vector<16x128xf32>
    %463 = arith.addf %460, %462 : vector<16x128xf32>
    %464 = vector.broadcast %19 : vector<1x128xf32> to vector<16x128xf32>
    %465 = arith.mulf %464, %450 : vector<16x128xf32>
    %466 = arith.addf %463, %465 : vector<16x128xf32>
    %467 = vector.broadcast %14 : vector<1x128xf32> to vector<16x128xf32>
    %468 = arith.mulf %467, %446 : vector<16x128xf32>
    %469 = vector.broadcast %17 : vector<1x128xf32> to vector<16x128xf32>
    %470 = arith.mulf %469, %448 : vector<16x128xf32>
    %471 = arith.addf %468, %470 : vector<16x128xf32>
    %472 = vector.broadcast %20 : vector<1x128xf32> to vector<16x128xf32>
    %473 = arith.mulf %472, %450 : vector<16x128xf32>
    %474 = arith.addf %471, %473 : vector<16x128xf32>
    %c0_i32_73 = arith.constant 0 : i32
    %475 = vector.broadcast %c0_i32_73 : i32 to vector<16x1xi32>
    %476 = arith.cmpi sgt, %22, %475 : vector<16x1xi32>
    %c1_i32_74 = arith.constant 1 : i32
    %477 = tpu.dynamic_rotate %458 by %c1_i32_74 dim 0 : vector<16x128xf32>, i32 -> vector<16x128xf32>
    %cst_75 = arith.constant 0.000000e+00 : f32
    %478 = vector.shape_cast %476 : vector<16x1xi1> to vector<16x1xi1>
    %479 = vector.broadcast %478 : vector<16x1xi1> to vector<16x128xi1>
    %480 = vector.broadcast %cst_75 : f32 to vector<16x128xf32>
    %481 = arith.select %479, %477, %480 : vector<16x128xi1>, vector<16x128xf32>
    %482 = arith.addf %466, %481 : vector<16x128xf32>
    %c15_i32_76 = arith.constant 15 : i32
    %483 = vector.broadcast %c15_i32_76 : i32 to vector<16x1xi32>
    %484 = arith.cmpi slt, %22, %483 : vector<16x1xi32>
    %c15_i32_77 = arith.constant 15 : i32
    %485 = tpu.dynamic_rotate %474 by %c15_i32_77 dim 0 : vector<16x128xf32>, i32 -> vector<16x128xf32>
    %cst_78 = arith.constant 0.000000e+00 : f32
    %486 = vector.shape_cast %484 : vector<16x1xi1> to vector<16x1xi1>
    %487 = vector.broadcast %486 : vector<16x1xi1> to vector<16x128xi1>
    %488 = vector.broadcast %cst_78 : f32 to vector<16x128xf32>
    %489 = arith.select %487, %485, %488 : vector<16x128xi1>, vector<16x128xf32>
    %490 = arith.addf %482, %489 : vector<16x128xf32>
    %491 = vector.broadcast %11 : vector<1x128xf32> to vector<16x128xf32>
    %492 = arith.addf %490, %491 : vector<16x128xf32>
    %cst_79 = arith.constant 0.000000e+00 : f32
    %cst_80 = arith.constant 6.000000e+00 : f32
    %493 = vector.broadcast %cst_79 : f32 to vector<16x128xf32>
    %494 = arith.maximumf %493, %492 : vector<16x128xf32>
    %495 = vector.broadcast %cst_80 : f32 to vector<16x128xf32>
    %496 = arith.minimumf %495, %494 : vector<16x128xf32>
    %497 = arith.truncf %496 : vector<16x128xf32> to vector<16x128xbf16>
    %498 = vector.extract_strided_slice %9 {offsets = [8, 0, 0], sizes = [1, 16, 128], strides = [1, 1, 1]} : vector<16x16x128xf32> to vector<1x16x128xf32>
    %499 = vector.shape_cast %498 : vector<1x16x128xf32> to vector<16x128xf32>
    %500 = vector.extract_strided_slice %9 {offsets = [9, 0, 0], sizes = [1, 16, 128], strides = [1, 1, 1]} : vector<16x16x128xf32> to vector<1x16x128xf32>
    %501 = vector.shape_cast %500 : vector<1x16x128xf32> to vector<16x128xf32>
    %502 = vector.extract_strided_slice %9 {offsets = [10, 0, 0], sizes = [1, 16, 128], strides = [1, 1, 1]} : vector<16x16x128xf32> to vector<1x16x128xf32>
    %503 = vector.shape_cast %502 : vector<1x16x128xf32> to vector<16x128xf32>
    %504 = vector.broadcast %12 : vector<1x128xf32> to vector<16x128xf32>
    %505 = arith.mulf %504, %499 : vector<16x128xf32>
    %506 = vector.broadcast %15 : vector<1x128xf32> to vector<16x128xf32>
    %507 = arith.mulf %506, %501 : vector<16x128xf32>
    %508 = arith.addf %505, %507 : vector<16x128xf32>
    %509 = vector.broadcast %18 : vector<1x128xf32> to vector<16x128xf32>
    %510 = arith.mulf %509, %503 : vector<16x128xf32>
    %511 = arith.addf %508, %510 : vector<16x128xf32>
    %512 = vector.broadcast %13 : vector<1x128xf32> to vector<16x128xf32>
    %513 = arith.mulf %512, %499 : vector<16x128xf32>
    %514 = vector.broadcast %16 : vector<1x128xf32> to vector<16x128xf32>
    %515 = arith.mulf %514, %501 : vector<16x128xf32>
    %516 = arith.addf %513, %515 : vector<16x128xf32>
    %517 = vector.broadcast %19 : vector<1x128xf32> to vector<16x128xf32>
    %518 = arith.mulf %517, %503 : vector<16x128xf32>
    %519 = arith.addf %516, %518 : vector<16x128xf32>
    %520 = vector.broadcast %14 : vector<1x128xf32> to vector<16x128xf32>
    %521 = arith.mulf %520, %499 : vector<16x128xf32>
    %522 = vector.broadcast %17 : vector<1x128xf32> to vector<16x128xf32>
    %523 = arith.mulf %522, %501 : vector<16x128xf32>
    %524 = arith.addf %521, %523 : vector<16x128xf32>
    %525 = vector.broadcast %20 : vector<1x128xf32> to vector<16x128xf32>
    %526 = arith.mulf %525, %503 : vector<16x128xf32>
    %527 = arith.addf %524, %526 : vector<16x128xf32>
    %c0_i32_81 = arith.constant 0 : i32
    %528 = vector.broadcast %c0_i32_81 : i32 to vector<16x1xi32>
    %529 = arith.cmpi sgt, %22, %528 : vector<16x1xi32>
    %c1_i32_82 = arith.constant 1 : i32
    %530 = tpu.dynamic_rotate %511 by %c1_i32_82 dim 0 : vector<16x128xf32>, i32 -> vector<16x128xf32>
    %cst_83 = arith.constant 0.000000e+00 : f32
    %531 = vector.shape_cast %529 : vector<16x1xi1> to vector<16x1xi1>
    %532 = vector.broadcast %531 : vector<16x1xi1> to vector<16x128xi1>
    %533 = vector.broadcast %cst_83 : f32 to vector<16x128xf32>
    %534 = arith.select %532, %530, %533 : vector<16x128xi1>, vector<16x128xf32>
    %535 = arith.addf %519, %534 : vector<16x128xf32>
    %c15_i32_84 = arith.constant 15 : i32
    %536 = vector.broadcast %c15_i32_84 : i32 to vector<16x1xi32>
    %537 = arith.cmpi slt, %22, %536 : vector<16x1xi32>
    %c15_i32_85 = arith.constant 15 : i32
    %538 = tpu.dynamic_rotate %527 by %c15_i32_85 dim 0 : vector<16x128xf32>, i32 -> vector<16x128xf32>
    %cst_86 = arith.constant 0.000000e+00 : f32
    %539 = vector.shape_cast %537 : vector<16x1xi1> to vector<16x1xi1>
    %540 = vector.broadcast %539 : vector<16x1xi1> to vector<16x128xi1>
    %541 = vector.broadcast %cst_86 : f32 to vector<16x128xf32>
    %542 = arith.select %540, %538, %541 : vector<16x128xi1>, vector<16x128xf32>
    %543 = arith.addf %535, %542 : vector<16x128xf32>
    %544 = vector.broadcast %11 : vector<1x128xf32> to vector<16x128xf32>
    %545 = arith.addf %543, %544 : vector<16x128xf32>
    %cst_87 = arith.constant 0.000000e+00 : f32
    %cst_88 = arith.constant 6.000000e+00 : f32
    %546 = vector.broadcast %cst_87 : f32 to vector<16x128xf32>
    %547 = arith.maximumf %546, %545 : vector<16x128xf32>
    %548 = vector.broadcast %cst_88 : f32 to vector<16x128xf32>
    %549 = arith.minimumf %548, %547 : vector<16x128xf32>
    %550 = arith.truncf %549 : vector<16x128xf32> to vector<16x128xbf16>
    %551 = vector.extract_strided_slice %9 {offsets = [9, 0, 0], sizes = [1, 16, 128], strides = [1, 1, 1]} : vector<16x16x128xf32> to vector<1x16x128xf32>
    %552 = vector.shape_cast %551 : vector<1x16x128xf32> to vector<16x128xf32>
    %553 = vector.extract_strided_slice %9 {offsets = [10, 0, 0], sizes = [1, 16, 128], strides = [1, 1, 1]} : vector<16x16x128xf32> to vector<1x16x128xf32>
    %554 = vector.shape_cast %553 : vector<1x16x128xf32> to vector<16x128xf32>
    %555 = vector.extract_strided_slice %9 {offsets = [11, 0, 0], sizes = [1, 16, 128], strides = [1, 1, 1]} : vector<16x16x128xf32> to vector<1x16x128xf32>
    %556 = vector.shape_cast %555 : vector<1x16x128xf32> to vector<16x128xf32>
    %557 = vector.broadcast %12 : vector<1x128xf32> to vector<16x128xf32>
    %558 = arith.mulf %557, %552 : vector<16x128xf32>
    %559 = vector.broadcast %15 : vector<1x128xf32> to vector<16x128xf32>
    %560 = arith.mulf %559, %554 : vector<16x128xf32>
    %561 = arith.addf %558, %560 : vector<16x128xf32>
    %562 = vector.broadcast %18 : vector<1x128xf32> to vector<16x128xf32>
    %563 = arith.mulf %562, %556 : vector<16x128xf32>
    %564 = arith.addf %561, %563 : vector<16x128xf32>
    %565 = vector.broadcast %13 : vector<1x128xf32> to vector<16x128xf32>
    %566 = arith.mulf %565, %552 : vector<16x128xf32>
    %567 = vector.broadcast %16 : vector<1x128xf32> to vector<16x128xf32>
    %568 = arith.mulf %567, %554 : vector<16x128xf32>
    %569 = arith.addf %566, %568 : vector<16x128xf32>
    %570 = vector.broadcast %19 : vector<1x128xf32> to vector<16x128xf32>
    %571 = arith.mulf %570, %556 : vector<16x128xf32>
    %572 = arith.addf %569, %571 : vector<16x128xf32>
    %573 = vector.broadcast %14 : vector<1x128xf32> to vector<16x128xf32>
    %574 = arith.mulf %573, %552 : vector<16x128xf32>
    %575 = vector.broadcast %17 : vector<1x128xf32> to vector<16x128xf32>
    %576 = arith.mulf %575, %554 : vector<16x128xf32>
    %577 = arith.addf %574, %576 : vector<16x128xf32>
    %578 = vector.broadcast %20 : vector<1x128xf32> to vector<16x128xf32>
    %579 = arith.mulf %578, %556 : vector<16x128xf32>
    %580 = arith.addf %577, %579 : vector<16x128xf32>
    %c0_i32_89 = arith.constant 0 : i32
    %581 = vector.broadcast %c0_i32_89 : i32 to vector<16x1xi32>
    %582 = arith.cmpi sgt, %22, %581 : vector<16x1xi32>
    %c1_i32_90 = arith.constant 1 : i32
    %583 = tpu.dynamic_rotate %564 by %c1_i32_90 dim 0 : vector<16x128xf32>, i32 -> vector<16x128xf32>
    %cst_91 = arith.constant 0.000000e+00 : f32
    %584 = vector.shape_cast %582 : vector<16x1xi1> to vector<16x1xi1>
    %585 = vector.broadcast %584 : vector<16x1xi1> to vector<16x128xi1>
    %586 = vector.broadcast %cst_91 : f32 to vector<16x128xf32>
    %587 = arith.select %585, %583, %586 : vector<16x128xi1>, vector<16x128xf32>
    %588 = arith.addf %572, %587 : vector<16x128xf32>
    %c15_i32_92 = arith.constant 15 : i32
    %589 = vector.broadcast %c15_i32_92 : i32 to vector<16x1xi32>
    %590 = arith.cmpi slt, %22, %589 : vector<16x1xi32>
    %c15_i32_93 = arith.constant 15 : i32
    %591 = tpu.dynamic_rotate %580 by %c15_i32_93 dim 0 : vector<16x128xf32>, i32 -> vector<16x128xf32>
    %cst_94 = arith.constant 0.000000e+00 : f32
    %592 = vector.shape_cast %590 : vector<16x1xi1> to vector<16x1xi1>
    %593 = vector.broadcast %592 : vector<16x1xi1> to vector<16x128xi1>
    %594 = vector.broadcast %cst_94 : f32 to vector<16x128xf32>
    %595 = arith.select %593, %591, %594 : vector<16x128xi1>, vector<16x128xf32>
    %596 = arith.addf %588, %595 : vector<16x128xf32>
    %597 = vector.broadcast %11 : vector<1x128xf32> to vector<16x128xf32>
    %598 = arith.addf %596, %597 : vector<16x128xf32>
    %cst_95 = arith.constant 0.000000e+00 : f32
    %cst_96 = arith.constant 6.000000e+00 : f32
    %599 = vector.broadcast %cst_95 : f32 to vector<16x128xf32>
    %600 = arith.maximumf %599, %598 : vector<16x128xf32>
    %601 = vector.broadcast %cst_96 : f32 to vector<16x128xf32>
    %602 = arith.minimumf %601, %600 : vector<16x128xf32>
    %603 = arith.truncf %602 : vector<16x128xf32> to vector<16x128xbf16>
    %604 = vector.extract_strided_slice %9 {offsets = [10, 0, 0], sizes = [1, 16, 128], strides = [1, 1, 1]} : vector<16x16x128xf32> to vector<1x16x128xf32>
    %605 = vector.shape_cast %604 : vector<1x16x128xf32> to vector<16x128xf32>
    %606 = vector.extract_strided_slice %9 {offsets = [11, 0, 0], sizes = [1, 16, 128], strides = [1, 1, 1]} : vector<16x16x128xf32> to vector<1x16x128xf32>
    %607 = vector.shape_cast %606 : vector<1x16x128xf32> to vector<16x128xf32>
    %608 = vector.extract_strided_slice %9 {offsets = [12, 0, 0], sizes = [1, 16, 128], strides = [1, 1, 1]} : vector<16x16x128xf32> to vector<1x16x128xf32>
    %609 = vector.shape_cast %608 : vector<1x16x128xf32> to vector<16x128xf32>
    %610 = vector.broadcast %12 : vector<1x128xf32> to vector<16x128xf32>
    %611 = arith.mulf %610, %605 : vector<16x128xf32>
    %612 = vector.broadcast %15 : vector<1x128xf32> to vector<16x128xf32>
    %613 = arith.mulf %612, %607 : vector<16x128xf32>
    %614 = arith.addf %611, %613 : vector<16x128xf32>
    %615 = vector.broadcast %18 : vector<1x128xf32> to vector<16x128xf32>
    %616 = arith.mulf %615, %609 : vector<16x128xf32>
    %617 = arith.addf %614, %616 : vector<16x128xf32>
    %618 = vector.broadcast %13 : vector<1x128xf32> to vector<16x128xf32>
    %619 = arith.mulf %618, %605 : vector<16x128xf32>
    %620 = vector.broadcast %16 : vector<1x128xf32> to vector<16x128xf32>
    %621 = arith.mulf %620, %607 : vector<16x128xf32>
    %622 = arith.addf %619, %621 : vector<16x128xf32>
    %623 = vector.broadcast %19 : vector<1x128xf32> to vector<16x128xf32>
    %624 = arith.mulf %623, %609 : vector<16x128xf32>
    %625 = arith.addf %622, %624 : vector<16x128xf32>
    %626 = vector.broadcast %14 : vector<1x128xf32> to vector<16x128xf32>
    %627 = arith.mulf %626, %605 : vector<16x128xf32>
    %628 = vector.broadcast %17 : vector<1x128xf32> to vector<16x128xf32>
    %629 = arith.mulf %628, %607 : vector<16x128xf32>
    %630 = arith.addf %627, %629 : vector<16x128xf32>
    %631 = vector.broadcast %20 : vector<1x128xf32> to vector<16x128xf32>
    %632 = arith.mulf %631, %609 : vector<16x128xf32>
    %633 = arith.addf %630, %632 : vector<16x128xf32>
    %c0_i32_97 = arith.constant 0 : i32
    %634 = vector.broadcast %c0_i32_97 : i32 to vector<16x1xi32>
    %635 = arith.cmpi sgt, %22, %634 : vector<16x1xi32>
    %c1_i32_98 = arith.constant 1 : i32
    %636 = tpu.dynamic_rotate %617 by %c1_i32_98 dim 0 : vector<16x128xf32>, i32 -> vector<16x128xf32>
    %cst_99 = arith.constant 0.000000e+00 : f32
    %637 = vector.shape_cast %635 : vector<16x1xi1> to vector<16x1xi1>
    %638 = vector.broadcast %637 : vector<16x1xi1> to vector<16x128xi1>
    %639 = vector.broadcast %cst_99 : f32 to vector<16x128xf32>
    %640 = arith.select %638, %636, %639 : vector<16x128xi1>, vector<16x128xf32>
    %641 = arith.addf %625, %640 : vector<16x128xf32>
    %c15_i32_100 = arith.constant 15 : i32
    %642 = vector.broadcast %c15_i32_100 : i32 to vector<16x1xi32>
    %643 = arith.cmpi slt, %22, %642 : vector<16x1xi32>
    %c15_i32_101 = arith.constant 15 : i32
    %644 = tpu.dynamic_rotate %633 by %c15_i32_101 dim 0 : vector<16x128xf32>, i32 -> vector<16x128xf32>
    %cst_102 = arith.constant 0.000000e+00 : f32
    %645 = vector.shape_cast %643 : vector<16x1xi1> to vector<16x1xi1>
    %646 = vector.broadcast %645 : vector<16x1xi1> to vector<16x128xi1>
    %647 = vector.broadcast %cst_102 : f32 to vector<16x128xf32>
    %648 = arith.select %646, %644, %647 : vector<16x128xi1>, vector<16x128xf32>
    %649 = arith.addf %641, %648 : vector<16x128xf32>
    %650 = vector.broadcast %11 : vector<1x128xf32> to vector<16x128xf32>
    %651 = arith.addf %649, %650 : vector<16x128xf32>
    %cst_103 = arith.constant 0.000000e+00 : f32
    %cst_104 = arith.constant 6.000000e+00 : f32
    %652 = vector.broadcast %cst_103 : f32 to vector<16x128xf32>
    %653 = arith.maximumf %652, %651 : vector<16x128xf32>
    %654 = vector.broadcast %cst_104 : f32 to vector<16x128xf32>
    %655 = arith.minimumf %654, %653 : vector<16x128xf32>
    %656 = arith.truncf %655 : vector<16x128xf32> to vector<16x128xbf16>
    %657 = vector.extract_strided_slice %9 {offsets = [11, 0, 0], sizes = [1, 16, 128], strides = [1, 1, 1]} : vector<16x16x128xf32> to vector<1x16x128xf32>
    %658 = vector.shape_cast %657 : vector<1x16x128xf32> to vector<16x128xf32>
    %659 = vector.extract_strided_slice %9 {offsets = [12, 0, 0], sizes = [1, 16, 128], strides = [1, 1, 1]} : vector<16x16x128xf32> to vector<1x16x128xf32>
    %660 = vector.shape_cast %659 : vector<1x16x128xf32> to vector<16x128xf32>
    %661 = vector.extract_strided_slice %9 {offsets = [13, 0, 0], sizes = [1, 16, 128], strides = [1, 1, 1]} : vector<16x16x128xf32> to vector<1x16x128xf32>
    %662 = vector.shape_cast %661 : vector<1x16x128xf32> to vector<16x128xf32>
    %663 = vector.broadcast %12 : vector<1x128xf32> to vector<16x128xf32>
    %664 = arith.mulf %663, %658 : vector<16x128xf32>
    %665 = vector.broadcast %15 : vector<1x128xf32> to vector<16x128xf32>
    %666 = arith.mulf %665, %660 : vector<16x128xf32>
    %667 = arith.addf %664, %666 : vector<16x128xf32>
    %668 = vector.broadcast %18 : vector<1x128xf32> to vector<16x128xf32>
    %669 = arith.mulf %668, %662 : vector<16x128xf32>
    %670 = arith.addf %667, %669 : vector<16x128xf32>
    %671 = vector.broadcast %13 : vector<1x128xf32> to vector<16x128xf32>
    %672 = arith.mulf %671, %658 : vector<16x128xf32>
    %673 = vector.broadcast %16 : vector<1x128xf32> to vector<16x128xf32>
    %674 = arith.mulf %673, %660 : vector<16x128xf32>
    %675 = arith.addf %672, %674 : vector<16x128xf32>
    %676 = vector.broadcast %19 : vector<1x128xf32> to vector<16x128xf32>
    %677 = arith.mulf %676, %662 : vector<16x128xf32>
    %678 = arith.addf %675, %677 : vector<16x128xf32>
    %679 = vector.broadcast %14 : vector<1x128xf32> to vector<16x128xf32>
    %680 = arith.mulf %679, %658 : vector<16x128xf32>
    %681 = vector.broadcast %17 : vector<1x128xf32> to vector<16x128xf32>
    %682 = arith.mulf %681, %660 : vector<16x128xf32>
    %683 = arith.addf %680, %682 : vector<16x128xf32>
    %684 = vector.broadcast %20 : vector<1x128xf32> to vector<16x128xf32>
    %685 = arith.mulf %684, %662 : vector<16x128xf32>
    %686 = arith.addf %683, %685 : vector<16x128xf32>
    %c0_i32_105 = arith.constant 0 : i32
    %687 = vector.broadcast %c0_i32_105 : i32 to vector<16x1xi32>
    %688 = arith.cmpi sgt, %22, %687 : vector<16x1xi32>
    %c1_i32_106 = arith.constant 1 : i32
    %689 = tpu.dynamic_rotate %670 by %c1_i32_106 dim 0 : vector<16x128xf32>, i32 -> vector<16x128xf32>
    %cst_107 = arith.constant 0.000000e+00 : f32
    %690 = vector.shape_cast %688 : vector<16x1xi1> to vector<16x1xi1>
    %691 = vector.broadcast %690 : vector<16x1xi1> to vector<16x128xi1>
    %692 = vector.broadcast %cst_107 : f32 to vector<16x128xf32>
    %693 = arith.select %691, %689, %692 : vector<16x128xi1>, vector<16x128xf32>
    %694 = arith.addf %678, %693 : vector<16x128xf32>
    %c15_i32_108 = arith.constant 15 : i32
    %695 = vector.broadcast %c15_i32_108 : i32 to vector<16x1xi32>
    %696 = arith.cmpi slt, %22, %695 : vector<16x1xi32>
    %c15_i32_109 = arith.constant 15 : i32
    %697 = tpu.dynamic_rotate %686 by %c15_i32_109 dim 0 : vector<16x128xf32>, i32 -> vector<16x128xf32>
    %cst_110 = arith.constant 0.000000e+00 : f32
    %698 = vector.shape_cast %696 : vector<16x1xi1> to vector<16x1xi1>
    %699 = vector.broadcast %698 : vector<16x1xi1> to vector<16x128xi1>
    %700 = vector.broadcast %cst_110 : f32 to vector<16x128xf32>
    %701 = arith.select %699, %697, %700 : vector<16x128xi1>, vector<16x128xf32>
    %702 = arith.addf %694, %701 : vector<16x128xf32>
    %703 = vector.broadcast %11 : vector<1x128xf32> to vector<16x128xf32>
    %704 = arith.addf %702, %703 : vector<16x128xf32>
    %cst_111 = arith.constant 0.000000e+00 : f32
    %cst_112 = arith.constant 6.000000e+00 : f32
    %705 = vector.broadcast %cst_111 : f32 to vector<16x128xf32>
    %706 = arith.maximumf %705, %704 : vector<16x128xf32>
    %707 = vector.broadcast %cst_112 : f32 to vector<16x128xf32>
    %708 = arith.minimumf %707, %706 : vector<16x128xf32>
    %709 = arith.truncf %708 : vector<16x128xf32> to vector<16x128xbf16>
    %710 = vector.extract_strided_slice %9 {offsets = [12, 0, 0], sizes = [1, 16, 128], strides = [1, 1, 1]} : vector<16x16x128xf32> to vector<1x16x128xf32>
    %711 = vector.shape_cast %710 : vector<1x16x128xf32> to vector<16x128xf32>
    %712 = vector.extract_strided_slice %9 {offsets = [13, 0, 0], sizes = [1, 16, 128], strides = [1, 1, 1]} : vector<16x16x128xf32> to vector<1x16x128xf32>
    %713 = vector.shape_cast %712 : vector<1x16x128xf32> to vector<16x128xf32>
    %714 = vector.extract_strided_slice %9 {offsets = [14, 0, 0], sizes = [1, 16, 128], strides = [1, 1, 1]} : vector<16x16x128xf32> to vector<1x16x128xf32>
    %715 = vector.shape_cast %714 : vector<1x16x128xf32> to vector<16x128xf32>
    %716 = vector.broadcast %12 : vector<1x128xf32> to vector<16x128xf32>
    %717 = arith.mulf %716, %711 : vector<16x128xf32>
    %718 = vector.broadcast %15 : vector<1x128xf32> to vector<16x128xf32>
    %719 = arith.mulf %718, %713 : vector<16x128xf32>
    %720 = arith.addf %717, %719 : vector<16x128xf32>
    %721 = vector.broadcast %18 : vector<1x128xf32> to vector<16x128xf32>
    %722 = arith.mulf %721, %715 : vector<16x128xf32>
    %723 = arith.addf %720, %722 : vector<16x128xf32>
    %724 = vector.broadcast %13 : vector<1x128xf32> to vector<16x128xf32>
    %725 = arith.mulf %724, %711 : vector<16x128xf32>
    %726 = vector.broadcast %16 : vector<1x128xf32> to vector<16x128xf32>
    %727 = arith.mulf %726, %713 : vector<16x128xf32>
    %728 = arith.addf %725, %727 : vector<16x128xf32>
    %729 = vector.broadcast %19 : vector<1x128xf32> to vector<16x128xf32>
    %730 = arith.mulf %729, %715 : vector<16x128xf32>
    %731 = arith.addf %728, %730 : vector<16x128xf32>
    %732 = vector.broadcast %14 : vector<1x128xf32> to vector<16x128xf32>
    %733 = arith.mulf %732, %711 : vector<16x128xf32>
    %734 = vector.broadcast %17 : vector<1x128xf32> to vector<16x128xf32>
    %735 = arith.mulf %734, %713 : vector<16x128xf32>
    %736 = arith.addf %733, %735 : vector<16x128xf32>
    %737 = vector.broadcast %20 : vector<1x128xf32> to vector<16x128xf32>
    %738 = arith.mulf %737, %715 : vector<16x128xf32>
    %739 = arith.addf %736, %738 : vector<16x128xf32>
    %c0_i32_113 = arith.constant 0 : i32
    %740 = vector.broadcast %c0_i32_113 : i32 to vector<16x1xi32>
    %741 = arith.cmpi sgt, %22, %740 : vector<16x1xi32>
    %c1_i32_114 = arith.constant 1 : i32
    %742 = tpu.dynamic_rotate %723 by %c1_i32_114 dim 0 : vector<16x128xf32>, i32 -> vector<16x128xf32>
    %cst_115 = arith.constant 0.000000e+00 : f32
    %743 = vector.shape_cast %741 : vector<16x1xi1> to vector<16x1xi1>
    %744 = vector.broadcast %743 : vector<16x1xi1> to vector<16x128xi1>
    %745 = vector.broadcast %cst_115 : f32 to vector<16x128xf32>
    %746 = arith.select %744, %742, %745 : vector<16x128xi1>, vector<16x128xf32>
    %747 = arith.addf %731, %746 : vector<16x128xf32>
    %c15_i32_116 = arith.constant 15 : i32
    %748 = vector.broadcast %c15_i32_116 : i32 to vector<16x1xi32>
    %749 = arith.cmpi slt, %22, %748 : vector<16x1xi32>
    %c15_i32_117 = arith.constant 15 : i32
    %750 = tpu.dynamic_rotate %739 by %c15_i32_117 dim 0 : vector<16x128xf32>, i32 -> vector<16x128xf32>
    %cst_118 = arith.constant 0.000000e+00 : f32
    %751 = vector.shape_cast %749 : vector<16x1xi1> to vector<16x1xi1>
    %752 = vector.broadcast %751 : vector<16x1xi1> to vector<16x128xi1>
    %753 = vector.broadcast %cst_118 : f32 to vector<16x128xf32>
    %754 = arith.select %752, %750, %753 : vector<16x128xi1>, vector<16x128xf32>
    %755 = arith.addf %747, %754 : vector<16x128xf32>
    %756 = vector.broadcast %11 : vector<1x128xf32> to vector<16x128xf32>
    %757 = arith.addf %755, %756 : vector<16x128xf32>
    %cst_119 = arith.constant 0.000000e+00 : f32
    %cst_120 = arith.constant 6.000000e+00 : f32
    %758 = vector.broadcast %cst_119 : f32 to vector<16x128xf32>
    %759 = arith.maximumf %758, %757 : vector<16x128xf32>
    %760 = vector.broadcast %cst_120 : f32 to vector<16x128xf32>
    %761 = arith.minimumf %760, %759 : vector<16x128xf32>
    %762 = arith.truncf %761 : vector<16x128xf32> to vector<16x128xbf16>
    %763 = vector.extract_strided_slice %9 {offsets = [13, 0, 0], sizes = [1, 16, 128], strides = [1, 1, 1]} : vector<16x16x128xf32> to vector<1x16x128xf32>
    %764 = vector.shape_cast %763 : vector<1x16x128xf32> to vector<16x128xf32>
    %765 = vector.extract_strided_slice %9 {offsets = [14, 0, 0], sizes = [1, 16, 128], strides = [1, 1, 1]} : vector<16x16x128xf32> to vector<1x16x128xf32>
    %766 = vector.shape_cast %765 : vector<1x16x128xf32> to vector<16x128xf32>
    %767 = vector.extract_strided_slice %9 {offsets = [15, 0, 0], sizes = [1, 16, 128], strides = [1, 1, 1]} : vector<16x16x128xf32> to vector<1x16x128xf32>
    %768 = vector.shape_cast %767 : vector<1x16x128xf32> to vector<16x128xf32>
    %769 = vector.broadcast %12 : vector<1x128xf32> to vector<16x128xf32>
    %770 = arith.mulf %769, %764 : vector<16x128xf32>
    %771 = vector.broadcast %15 : vector<1x128xf32> to vector<16x128xf32>
    %772 = arith.mulf %771, %766 : vector<16x128xf32>
    %773 = arith.addf %770, %772 : vector<16x128xf32>
    %774 = vector.broadcast %18 : vector<1x128xf32> to vector<16x128xf32>
    %775 = arith.mulf %774, %768 : vector<16x128xf32>
    %776 = arith.addf %773, %775 : vector<16x128xf32>
    %777 = vector.broadcast %13 : vector<1x128xf32> to vector<16x128xf32>
    %778 = arith.mulf %777, %764 : vector<16x128xf32>
    %779 = vector.broadcast %16 : vector<1x128xf32> to vector<16x128xf32>
    %780 = arith.mulf %779, %766 : vector<16x128xf32>
    %781 = arith.addf %778, %780 : vector<16x128xf32>
    %782 = vector.broadcast %19 : vector<1x128xf32> to vector<16x128xf32>
    %783 = arith.mulf %782, %768 : vector<16x128xf32>
    %784 = arith.addf %781, %783 : vector<16x128xf32>
    %785 = vector.broadcast %14 : vector<1x128xf32> to vector<16x128xf32>
    %786 = arith.mulf %785, %764 : vector<16x128xf32>
    %787 = vector.broadcast %17 : vector<1x128xf32> to vector<16x128xf32>
    %788 = arith.mulf %787, %766 : vector<16x128xf32>
    %789 = arith.addf %786, %788 : vector<16x128xf32>
    %790 = vector.broadcast %20 : vector<1x128xf32> to vector<16x128xf32>
    %791 = arith.mulf %790, %768 : vector<16x128xf32>
    %792 = arith.addf %789, %791 : vector<16x128xf32>
    %c0_i32_121 = arith.constant 0 : i32
    %793 = vector.broadcast %c0_i32_121 : i32 to vector<16x1xi32>
    %794 = arith.cmpi sgt, %22, %793 : vector<16x1xi32>
    %c1_i32_122 = arith.constant 1 : i32
    %795 = tpu.dynamic_rotate %776 by %c1_i32_122 dim 0 : vector<16x128xf32>, i32 -> vector<16x128xf32>
    %cst_123 = arith.constant 0.000000e+00 : f32
    %796 = vector.shape_cast %794 : vector<16x1xi1> to vector<16x1xi1>
    %797 = vector.broadcast %796 : vector<16x1xi1> to vector<16x128xi1>
    %798 = vector.broadcast %cst_123 : f32 to vector<16x128xf32>
    %799 = arith.select %797, %795, %798 : vector<16x128xi1>, vector<16x128xf32>
    %800 = arith.addf %784, %799 : vector<16x128xf32>
    %c15_i32_124 = arith.constant 15 : i32
    %801 = vector.broadcast %c15_i32_124 : i32 to vector<16x1xi32>
    %802 = arith.cmpi slt, %22, %801 : vector<16x1xi32>
    %c15_i32_125 = arith.constant 15 : i32
    %803 = tpu.dynamic_rotate %792 by %c15_i32_125 dim 0 : vector<16x128xf32>, i32 -> vector<16x128xf32>
    %cst_126 = arith.constant 0.000000e+00 : f32
    %804 = vector.shape_cast %802 : vector<16x1xi1> to vector<16x1xi1>
    %805 = vector.broadcast %804 : vector<16x1xi1> to vector<16x128xi1>
    %806 = vector.broadcast %cst_126 : f32 to vector<16x128xf32>
    %807 = arith.select %805, %803, %806 : vector<16x128xi1>, vector<16x128xf32>
    %808 = arith.addf %800, %807 : vector<16x128xf32>
    %809 = vector.broadcast %11 : vector<1x128xf32> to vector<16x128xf32>
    %810 = arith.addf %808, %809 : vector<16x128xf32>
    %cst_127 = arith.constant 0.000000e+00 : f32
    %cst_128 = arith.constant 6.000000e+00 : f32
    %811 = vector.broadcast %cst_127 : f32 to vector<16x128xf32>
    %812 = arith.maximumf %811, %810 : vector<16x128xf32>
    %813 = vector.broadcast %cst_128 : f32 to vector<16x128xf32>
    %814 = arith.minimumf %813, %812 : vector<16x128xf32>
    %815 = arith.truncf %814 : vector<16x128xf32> to vector<16x128xbf16>
    %816 = vector.extract_strided_slice %9 {offsets = [14, 0, 0], sizes = [1, 16, 128], strides = [1, 1, 1]} : vector<16x16x128xf32> to vector<1x16x128xf32>
    %817 = vector.shape_cast %816 : vector<1x16x128xf32> to vector<16x128xf32>
    %818 = vector.extract_strided_slice %9 {offsets = [15, 0, 0], sizes = [1, 16, 128], strides = [1, 1, 1]} : vector<16x16x128xf32> to vector<1x16x128xf32>
    %819 = vector.shape_cast %818 : vector<1x16x128xf32> to vector<16x128xf32>
    %820 = vector.broadcast %12 : vector<1x128xf32> to vector<16x128xf32>
    %821 = arith.mulf %820, %817 : vector<16x128xf32>
    %822 = vector.broadcast %15 : vector<1x128xf32> to vector<16x128xf32>
    %823 = arith.mulf %822, %819 : vector<16x128xf32>
    %824 = arith.addf %821, %823 : vector<16x128xf32>
    %825 = vector.broadcast %18 : vector<1x128xf32> to vector<16x128xf32>
    %826 = arith.mulf %825, %21 : vector<16x128xf32>
    %827 = arith.addf %824, %826 : vector<16x128xf32>
    %828 = vector.broadcast %13 : vector<1x128xf32> to vector<16x128xf32>
    %829 = arith.mulf %828, %817 : vector<16x128xf32>
    %830 = vector.broadcast %16 : vector<1x128xf32> to vector<16x128xf32>
    %831 = arith.mulf %830, %819 : vector<16x128xf32>
    %832 = arith.addf %829, %831 : vector<16x128xf32>
    %833 = vector.broadcast %19 : vector<1x128xf32> to vector<16x128xf32>
    %834 = arith.mulf %833, %21 : vector<16x128xf32>
    %835 = arith.addf %832, %834 : vector<16x128xf32>
    %836 = vector.broadcast %14 : vector<1x128xf32> to vector<16x128xf32>
    %837 = arith.mulf %836, %817 : vector<16x128xf32>
    %838 = vector.broadcast %17 : vector<1x128xf32> to vector<16x128xf32>
    %839 = arith.mulf %838, %819 : vector<16x128xf32>
    %840 = arith.addf %837, %839 : vector<16x128xf32>
    %841 = vector.broadcast %20 : vector<1x128xf32> to vector<16x128xf32>
    %842 = arith.mulf %841, %21 : vector<16x128xf32>
    %843 = arith.addf %840, %842 : vector<16x128xf32>
    %c0_i32_129 = arith.constant 0 : i32
    %844 = vector.broadcast %c0_i32_129 : i32 to vector<16x1xi32>
    %845 = arith.cmpi sgt, %22, %844 : vector<16x1xi32>
    %c1_i32_130 = arith.constant 1 : i32
    %846 = tpu.dynamic_rotate %827 by %c1_i32_130 dim 0 : vector<16x128xf32>, i32 -> vector<16x128xf32>
    %cst_131 = arith.constant 0.000000e+00 : f32
    %847 = vector.shape_cast %845 : vector<16x1xi1> to vector<16x1xi1>
    %848 = vector.broadcast %847 : vector<16x1xi1> to vector<16x128xi1>
    %849 = vector.broadcast %cst_131 : f32 to vector<16x128xf32>
    %850 = arith.select %848, %846, %849 : vector<16x128xi1>, vector<16x128xf32>
    %851 = arith.addf %835, %850 : vector<16x128xf32>
    %c15_i32_132 = arith.constant 15 : i32
    %852 = vector.broadcast %c15_i32_132 : i32 to vector<16x1xi32>
    %853 = arith.cmpi slt, %22, %852 : vector<16x1xi32>
    %c15_i32_133 = arith.constant 15 : i32
    %854 = tpu.dynamic_rotate %843 by %c15_i32_133 dim 0 : vector<16x128xf32>, i32 -> vector<16x128xf32>
    %cst_134 = arith.constant 0.000000e+00 : f32
    %855 = vector.shape_cast %853 : vector<16x1xi1> to vector<16x1xi1>
    %856 = vector.broadcast %855 : vector<16x1xi1> to vector<16x128xi1>
    %857 = vector.broadcast %cst_134 : f32 to vector<16x128xf32>
    %858 = arith.select %856, %854, %857 : vector<16x128xi1>, vector<16x128xf32>
    %859 = arith.addf %851, %858 : vector<16x128xf32>
    %860 = vector.broadcast %11 : vector<1x128xf32> to vector<16x128xf32>
    %861 = arith.addf %859, %860 : vector<16x128xf32>
    %cst_135 = arith.constant 0.000000e+00 : f32
    %cst_136 = arith.constant 6.000000e+00 : f32
    %862 = vector.broadcast %cst_135 : f32 to vector<16x128xf32>
    %863 = arith.maximumf %862, %861 : vector<16x128xf32>
    %864 = vector.broadcast %cst_136 : f32 to vector<16x128xf32>
    %865 = arith.minimumf %864, %863 : vector<16x128xf32>
    %866 = arith.truncf %865 : vector<16x128xf32> to vector<16x128xbf16>
    %867 = tpu.concatenate %73, %126, %179, %232, %285, %338, %391, %444, %497, %550, %603, %656, %709, %762, %815, %866 in 0 : vector<16x128xbf16>, vector<16x128xbf16>, vector<16x128xbf16>, vector<16x128xbf16>, vector<16x128xbf16>, vector<16x128xbf16>, vector<16x128xbf16>, vector<16x128xbf16>, vector<16x128xbf16>, vector<16x128xbf16>, vector<16x128xbf16>, vector<16x128xbf16>, vector<16x128xbf16>, vector<16x128xbf16>, vector<16x128xbf16>, vector<16x128xbf16> -> vector<256x128xbf16>
    %c0_137 = arith.constant 0 : index
    %c0_138 = arith.constant 0 : index
    %868 = vector.load %arg6[%c0_137, %c0_138] : memref<32x128xbf16, #tpu.memory_space<vmem>>, vector<32x128xbf16>
    %cst_139 = arith.constant dense<0.000000e+00> : vector<32x256xf32>
    %869 = tpu.matmul %868, %867, %cst_139 {dimension_numbers = #tpu.dot_dimension_numbers<[1], [1], [0], [0], [0, 0, 1, 0], [], []>} : vector<32x128xbf16>, vector<256x128xbf16>, vector<32x256xf32> -> vector<32x256xf32>
    %c0_140 = arith.constant 0 : index
    %c0_141 = arith.constant 0 : index
    %870 = vector.load %arg7[%c0_140, %c0_141] : memref<32x1xf32, #tpu.memory_space<vmem>>, vector<32x1xf32>
    %871 = vector.broadcast %870 : vector<32x1xf32> to vector<32x256xf32>
    %872 = arith.addf %869, %871 : vector<32x256xf32>
    %cst_142 = arith.constant dense<0.000000e+00> : vector<16x128xf32>
    %873 = vector.multi_reduction <add>, %9, %cst_142 [1] : vector<16x16x128xf32> to vector<16x128xf32>
    %cst_143 = arith.constant 1.600000e+01 : f32
    %874 = vector.broadcast %cst_143 : f32 to vector<16x128xf32>
    %875 = arith.divf %873, %874 : vector<16x128xf32>
    %cst_144 = arith.constant dense<0.000000e+00> : vector<16x128xf32>
    %876 = vector.multi_reduction <add>, %9, %cst_144 [0] : vector<16x16x128xf32> to vector<16x128xf32>
    %cst_145 = arith.constant 1.600000e+01 : f32
    %877 = vector.broadcast %cst_145 : f32 to vector<16x128xf32>
    %878 = arith.divf %876, %877 : vector<16x128xf32>
    %c0_146 = arith.constant 0 : index
    %c0_147 = arith.constant 0 : index
    %879 = vector.load %arg8[%c0_146, %c0_147] : memref<16x32xf32, #tpu.memory_space<vmem>>, vector<16x32xf32>
    %c0_148 = arith.constant 0 : index
    %c0_149 = arith.constant 0 : index
    %880 = vector.load %arg9[%c0_148, %c0_149] : memref<16x32xf32, #tpu.memory_space<vmem>>, vector<16x32xf32>
    %881 = vector.extract_strided_slice %875 {offsets = [0, 0], sizes = [16, 32], strides = [1, 1]} : vector<16x128xf32> to vector<16x32xf32>
    %882 = arith.addf %881, %879 : vector<16x32xf32>
    %883 = arith.truncf %882 : vector<16x32xf32> to vector<16x32xbf16>
    %884 = vector.extract_strided_slice %875 {offsets = [0, 32], sizes = [16, 32], strides = [1, 1]} : vector<16x128xf32> to vector<16x32xf32>
    %885 = arith.addf %884, %880 : vector<16x32xf32>
    %886 = arith.truncf %885 : vector<16x32xf32> to vector<16x32xbf16>
    %887 = vector.extract_strided_slice %875 {offsets = [0, 64], sizes = [16, 64], strides = [1, 1]} : vector<16x128xf32> to vector<16x64xf32>
    %888 = vector.extract_strided_slice %883 {offsets = [0, 0], sizes = [16, 16], strides = [1, 1]} : vector<16x32xbf16> to vector<16x16xbf16>
    %889 = vector.extract_strided_slice %886 {offsets = [0, 0], sizes = [16, 16], strides = [1, 1]} : vector<16x32xbf16> to vector<16x16xbf16>
    %890 = vector.extract_strided_slice %887 {offsets = [0, 0], sizes = [16, 32], strides = [1, 1]} : vector<16x64xf32> to vector<16x32xf32>
    %891 = arith.truncf %890 : vector<16x32xf32> to vector<16x32xbf16>
    %cst_150 = arith.constant dense<0.000000e+00> : vector<16x16xf32>
    %892 = tpu.matmul %888, %889, %cst_150 {dimension_numbers = #tpu.dot_dimension_numbers<[1], [1], [0], [0], [0, 0, 1, 0], [], []>} : vector<16x16xbf16>, vector<16x16xbf16>, vector<16x16xf32> -> vector<16x16xf32>
    %cst_151 = arith.constant 2.500000e-01 : f32
    %893 = vector.broadcast %cst_151 : f32 to vector<16x16xf32>
    %894 = arith.mulf %892, %893 : vector<16x16xf32>
    %cst_152 = arith.constant dense<0xFF800000> : vector<16xf32>
    %895 = vector.multi_reduction <maximumf>, %894, %cst_152 [1] : vector<16x16xf32> to vector<16xf32>
    %896 = vector.shape_cast %895 : vector<16xf32> to vector<16x1xf32>
    %897 = vector.broadcast %896 : vector<16x1xf32> to vector<16x16xf32>
    %898 = arith.subf %894, %897 : vector<16x16xf32>
    %899 = math.exp %898 : vector<16x16xf32>
    %cst_153 = arith.constant dense<0.000000e+00> : vector<16xf32>
    %900 = vector.multi_reduction <add>, %899, %cst_153 [1] : vector<16x16xf32> to vector<16xf32>
    %901 = vector.shape_cast %900 : vector<16xf32> to vector<16x1xf32>
    %902 = tpu.reciprocal %901 {approx = true} : vector<16x1xf32> -> vector<16x1xf32>
    %903 = vector.broadcast %902 : vector<16x1xf32> to vector<16x16xf32>
    %904 = arith.mulf %899, %903 : vector<16x16xf32>
    %905 = arith.truncf %904 : vector<16x16xf32> to vector<16x16xbf16>
    %cst_154 = arith.constant dense<0.000000e+00> : vector<16x32xf32>
    %906 = tpu.matmul %905, %891, %cst_154 {dimension_numbers = #tpu.dot_dimension_numbers<[1], [0], [0], [1], [0, 0, 1, 1], [], []>} : vector<16x16xbf16>, vector<16x32xbf16>, vector<16x32xf32> -> vector<16x32xf32>
    %907 = vector.extract_strided_slice %883 {offsets = [0, 16], sizes = [16, 16], strides = [1, 1]} : vector<16x32xbf16> to vector<16x16xbf16>
    %908 = vector.extract_strided_slice %886 {offsets = [0, 16], sizes = [16, 16], strides = [1, 1]} : vector<16x32xbf16> to vector<16x16xbf16>
    %909 = vector.extract_strided_slice %887 {offsets = [0, 32], sizes = [16, 32], strides = [1, 1]} : vector<16x64xf32> to vector<16x32xf32>
    %910 = arith.truncf %909 : vector<16x32xf32> to vector<16x32xbf16>
    %cst_155 = arith.constant dense<0.000000e+00> : vector<16x16xf32>
    %911 = tpu.matmul %907, %908, %cst_155 {dimension_numbers = #tpu.dot_dimension_numbers<[1], [1], [0], [0], [0, 0, 1, 0], [], []>} : vector<16x16xbf16>, vector<16x16xbf16>, vector<16x16xf32> -> vector<16x16xf32>
    %cst_156 = arith.constant 2.500000e-01 : f32
    %912 = vector.broadcast %cst_156 : f32 to vector<16x16xf32>
    %913 = arith.mulf %911, %912 : vector<16x16xf32>
    %cst_157 = arith.constant dense<0xFF800000> : vector<16xf32>
    %914 = vector.multi_reduction <maximumf>, %913, %cst_157 [1] : vector<16x16xf32> to vector<16xf32>
    %915 = vector.shape_cast %914 : vector<16xf32> to vector<16x1xf32>
    %916 = vector.broadcast %915 : vector<16x1xf32> to vector<16x16xf32>
    %917 = arith.subf %913, %916 : vector<16x16xf32>
    %918 = math.exp %917 : vector<16x16xf32>
    %cst_158 = arith.constant dense<0.000000e+00> : vector<16xf32>
    %919 = vector.multi_reduction <add>, %918, %cst_158 [1] : vector<16x16xf32> to vector<16xf32>
    %920 = vector.shape_cast %919 : vector<16xf32> to vector<16x1xf32>
    %921 = tpu.reciprocal %920 {approx = true} : vector<16x1xf32> -> vector<16x1xf32>
    %922 = vector.broadcast %921 : vector<16x1xf32> to vector<16x16xf32>
    %923 = arith.mulf %918, %922 : vector<16x16xf32>
    %924 = arith.truncf %923 : vector<16x16xf32> to vector<16x16xbf16>
    %cst_159 = arith.constant dense<0.000000e+00> : vector<16x32xf32>
    %925 = tpu.matmul %924, %910, %cst_159 {dimension_numbers = #tpu.dot_dimension_numbers<[1], [0], [0], [1], [0, 0, 1, 1], [], []>} : vector<16x16xbf16>, vector<16x32xbf16>, vector<16x32xf32> -> vector<16x32xf32>
    %926 = tpu.concatenate %906, %925 in 1 : vector<16x32xf32>, vector<16x32xf32> -> vector<16x64xf32>
    %cst_160 = arith.constant 0.000000e+00 : f32
    %cst_161 = arith.constant 6.000000e+00 : f32
    %927 = vector.broadcast %cst_160 : f32 to vector<16x64xf32>
    %928 = arith.maximumf %927, %926 : vector<16x64xf32>
    %929 = vector.broadcast %cst_161 : f32 to vector<16x64xf32>
    %930 = arith.minimumf %929, %928 : vector<16x64xf32>
    %931 = arith.truncf %930 : vector<16x64xf32> to vector<16x64xbf16>
    %c0_162 = arith.constant 0 : index
    %c0_163 = arith.constant 0 : index
    %932 = vector.load %arg12[%c0_162, %c0_163] : memref<64x64xbf16, #tpu.memory_space<vmem>>, vector<64x64xbf16>
    %cst_164 = arith.constant dense<0.000000e+00> : vector<16x64xf32>
    %933 = tpu.matmul %931, %932, %cst_164 {dimension_numbers = #tpu.dot_dimension_numbers<[1], [0], [0], [1], [0, 0, 1, 1], [], []>} : vector<16x64xbf16>, vector<64x64xbf16>, vector<16x64xf32> -> vector<16x64xf32>
    %c0_165 = arith.constant 0 : index
    %c0_166 = arith.constant 0 : index
    %934 = vector.load %arg13[%c0_165, %c0_166] : memref<1x64xf32, #tpu.memory_space<vmem>>, vector<1x64xf32>
    %935 = vector.broadcast %934 : vector<1x64xf32> to vector<16x64xf32>
    %936 = arith.addf %933, %935 : vector<16x64xf32>
    %c0_167 = arith.constant 0 : index
    %c0_168 = arith.constant 0 : index
    %937 = vector.load %arg10[%c0_167, %c0_168] : memref<16x32xf32, #tpu.memory_space<vmem>>, vector<16x32xf32>
    %c0_169 = arith.constant 0 : index
    %c0_170 = arith.constant 0 : index
    %938 = vector.load %arg11[%c0_169, %c0_170] : memref<16x32xf32, #tpu.memory_space<vmem>>, vector<16x32xf32>
    %939 = vector.extract_strided_slice %878 {offsets = [0, 0], sizes = [16, 32], strides = [1, 1]} : vector<16x128xf32> to vector<16x32xf32>
    %940 = arith.addf %939, %937 : vector<16x32xf32>
    %941 = arith.truncf %940 : vector<16x32xf32> to vector<16x32xbf16>
    %942 = vector.extract_strided_slice %878 {offsets = [0, 32], sizes = [16, 32], strides = [1, 1]} : vector<16x128xf32> to vector<16x32xf32>
    %943 = arith.addf %942, %938 : vector<16x32xf32>
    %944 = arith.truncf %943 : vector<16x32xf32> to vector<16x32xbf16>
    %945 = vector.extract_strided_slice %878 {offsets = [0, 64], sizes = [16, 64], strides = [1, 1]} : vector<16x128xf32> to vector<16x64xf32>
    %946 = vector.extract_strided_slice %941 {offsets = [0, 0], sizes = [16, 16], strides = [1, 1]} : vector<16x32xbf16> to vector<16x16xbf16>
    %947 = vector.extract_strided_slice %944 {offsets = [0, 0], sizes = [16, 16], strides = [1, 1]} : vector<16x32xbf16> to vector<16x16xbf16>
    %948 = vector.extract_strided_slice %945 {offsets = [0, 0], sizes = [16, 32], strides = [1, 1]} : vector<16x64xf32> to vector<16x32xf32>
    %949 = arith.truncf %948 : vector<16x32xf32> to vector<16x32xbf16>
    %cst_171 = arith.constant dense<0.000000e+00> : vector<16x16xf32>
    %950 = tpu.matmul %946, %947, %cst_171 {dimension_numbers = #tpu.dot_dimension_numbers<[1], [1], [0], [0], [0, 0, 1, 0], [], []>} : vector<16x16xbf16>, vector<16x16xbf16>, vector<16x16xf32> -> vector<16x16xf32>
    %cst_172 = arith.constant 2.500000e-01 : f32
    %951 = vector.broadcast %cst_172 : f32 to vector<16x16xf32>
    %952 = arith.mulf %950, %951 : vector<16x16xf32>
    %cst_173 = arith.constant dense<0xFF800000> : vector<16xf32>
    %953 = vector.multi_reduction <maximumf>, %952, %cst_173 [1] : vector<16x16xf32> to vector<16xf32>
    %954 = vector.shape_cast %953 : vector<16xf32> to vector<16x1xf32>
    %955 = vector.broadcast %954 : vector<16x1xf32> to vector<16x16xf32>
    %956 = arith.subf %952, %955 : vector<16x16xf32>
    %957 = math.exp %956 : vector<16x16xf32>
    %cst_174 = arith.constant dense<0.000000e+00> : vector<16xf32>
    %958 = vector.multi_reduction <add>, %957, %cst_174 [1] : vector<16x16xf32> to vector<16xf32>
    %959 = vector.shape_cast %958 : vector<16xf32> to vector<16x1xf32>
    %960 = tpu.reciprocal %959 {approx = true} : vector<16x1xf32> -> vector<16x1xf32>
    %961 = vector.broadcast %960 : vector<16x1xf32> to vector<16x16xf32>
    %962 = arith.mulf %957, %961 : vector<16x16xf32>
    %963 = arith.truncf %962 : vector<16x16xf32> to vector<16x16xbf16>
    %cst_175 = arith.constant dense<0.000000e+00> : vector<16x32xf32>
    %964 = tpu.matmul %963, %949, %cst_175 {dimension_numbers = #tpu.dot_dimension_numbers<[1], [0], [0], [1], [0, 0, 1, 1], [], []>} : vector<16x16xbf16>, vector<16x32xbf16>, vector<16x32xf32> -> vector<16x32xf32>
    %965 = vector.extract_strided_slice %941 {offsets = [0, 16], sizes = [16, 16], strides = [1, 1]} : vector<16x32xbf16> to vector<16x16xbf16>
    %966 = vector.extract_strided_slice %944 {offsets = [0, 16], sizes = [16, 16], strides = [1, 1]} : vector<16x32xbf16> to vector<16x16xbf16>
    %967 = vector.extract_strided_slice %945 {offsets = [0, 32], sizes = [16, 32], strides = [1, 1]} : vector<16x64xf32> to vector<16x32xf32>
    %968 = arith.truncf %967 : vector<16x32xf32> to vector<16x32xbf16>
    %cst_176 = arith.constant dense<0.000000e+00> : vector<16x16xf32>
    %969 = tpu.matmul %965, %966, %cst_176 {dimension_numbers = #tpu.dot_dimension_numbers<[1], [1], [0], [0], [0, 0, 1, 0], [], []>} : vector<16x16xbf16>, vector<16x16xbf16>, vector<16x16xf32> -> vector<16x16xf32>
    %cst_177 = arith.constant 2.500000e-01 : f32
    %970 = vector.broadcast %cst_177 : f32 to vector<16x16xf32>
    %971 = arith.mulf %969, %970 : vector<16x16xf32>
    %cst_178 = arith.constant dense<0xFF800000> : vector<16xf32>
    %972 = vector.multi_reduction <maximumf>, %971, %cst_178 [1] : vector<16x16xf32> to vector<16xf32>
    %973 = vector.shape_cast %972 : vector<16xf32> to vector<16x1xf32>
    %974 = vector.broadcast %973 : vector<16x1xf32> to vector<16x16xf32>
    %975 = arith.subf %971, %974 : vector<16x16xf32>
    %976 = math.exp %975 : vector<16x16xf32>
    %cst_179 = arith.constant dense<0.000000e+00> : vector<16xf32>
    %977 = vector.multi_reduction <add>, %976, %cst_179 [1] : vector<16x16xf32> to vector<16xf32>
    %978 = vector.shape_cast %977 : vector<16xf32> to vector<16x1xf32>
    %979 = tpu.reciprocal %978 {approx = true} : vector<16x1xf32> -> vector<16x1xf32>
    %980 = vector.broadcast %979 : vector<16x1xf32> to vector<16x16xf32>
    %981 = arith.mulf %976, %980 : vector<16x16xf32>
    %982 = arith.truncf %981 : vector<16x16xf32> to vector<16x16xbf16>
    %cst_180 = arith.constant dense<0.000000e+00> : vector<16x32xf32>
    %983 = tpu.matmul %982, %968, %cst_180 {dimension_numbers = #tpu.dot_dimension_numbers<[1], [0], [0], [1], [0, 0, 1, 1], [], []>} : vector<16x16xbf16>, vector<16x32xbf16>, vector<16x32xf32> -> vector<16x32xf32>
    %984 = tpu.concatenate %964, %983 in 1 : vector<16x32xf32>, vector<16x32xf32> -> vector<16x64xf32>
    %cst_181 = arith.constant 0.000000e+00 : f32
    %cst_182 = arith.constant 6.000000e+00 : f32
    %985 = vector.broadcast %cst_181 : f32 to vector<16x64xf32>
    %986 = arith.maximumf %985, %984 : vector<16x64xf32>
    %987 = vector.broadcast %cst_182 : f32 to vector<16x64xf32>
    %988 = arith.minimumf %987, %986 : vector<16x64xf32>
    %989 = arith.truncf %988 : vector<16x64xf32> to vector<16x64xbf16>
    %c0_183 = arith.constant 0 : index
    %c0_184 = arith.constant 0 : index
    %990 = vector.load %arg14[%c0_183, %c0_184] : memref<64x64xbf16, #tpu.memory_space<vmem>>, vector<64x64xbf16>
    %cst_185 = arith.constant dense<0.000000e+00> : vector<16x64xf32>
    %991 = tpu.matmul %989, %990, %cst_185 {dimension_numbers = #tpu.dot_dimension_numbers<[1], [0], [0], [1], [0, 0, 1, 1], [], []>} : vector<16x64xbf16>, vector<64x64xbf16>, vector<16x64xf32> -> vector<16x64xf32>
    %c0_186 = arith.constant 0 : index
    %c0_187 = arith.constant 0 : index
    %992 = vector.load %arg15[%c0_186, %c0_187] : memref<1x64xf32, #tpu.memory_space<vmem>>, vector<1x64xf32>
    %993 = vector.broadcast %992 : vector<1x64xf32> to vector<16x64xf32>
    %994 = arith.addf %991, %993 : vector<16x64xf32>
    %995 = vector.extract_strided_slice %9 {offsets = [0, 0, 64], sizes = [16, 16, 64], strides = [1, 1, 1]} : vector<16x16x128xf32> to vector<16x16x64xf32>
    %996 = vector.shape_cast %936 : vector<16x64xf32> to vector<16x1x64xf32>
    %997 = vector.broadcast %996 : vector<16x1x64xf32> to vector<16x16x64xf32>
    %998 = arith.addf %995, %997 : vector<16x16x64xf32>
    %999 = vector.shape_cast %994 : vector<16x64xf32> to vector<1x16x64xf32>
    %1000 = vector.broadcast %999 : vector<1x16x64xf32> to vector<16x16x64xf32>
    %1001 = arith.addf %998, %1000 : vector<16x16x64xf32>
    %cst_188 = arith.constant 0.000000e+00 : f32
    %cst_189 = arith.constant 6.000000e+00 : f32
    %1002 = vector.broadcast %cst_188 : f32 to vector<16x16x64xf32>
    %1003 = arith.maximumf %1002, %1001 : vector<16x16x64xf32>
    %1004 = vector.broadcast %cst_189 : f32 to vector<16x16x64xf32>
    %1005 = arith.minimumf %1004, %1003 : vector<16x16x64xf32>
    %1006 = vector.shape_cast %1005 : vector<16x16x64xf32> to vector<256x64xf32>
    %1007 = arith.truncf %1006 : vector<256x64xf32> to vector<256x64xbf16>
    %c0_190 = arith.constant 0 : index
    %c0_191 = arith.constant 0 : index
    %1008 = vector.load %arg16[%c0_190, %c0_191] : memref<32x64xbf16, #tpu.memory_space<vmem>>, vector<32x64xbf16>
    %cst_192 = arith.constant dense<0.000000e+00> : vector<32x256xf32>
    %1009 = tpu.matmul %1008, %1007, %cst_192 {dimension_numbers = #tpu.dot_dimension_numbers<[1], [1], [0], [0], [0, 0, 1, 0], [], []>} : vector<32x64xbf16>, vector<256x64xbf16>, vector<32x256xf32> -> vector<32x256xf32>
    %c0_193 = arith.constant 0 : index
    %c0_194 = arith.constant 0 : index
    %1010 = vector.load %arg17[%c0_193, %c0_194] : memref<32x1xf32, #tpu.memory_space<vmem>>, vector<32x1xf32>
    %1011 = vector.broadcast %1010 : vector<32x1xf32> to vector<32x256xf32>
    %1012 = arith.addf %1009, %1011 : vector<32x256xf32>
    %cst_195 = arith.constant 3.000000e+00 : f32
    %1013 = vector.broadcast %cst_195 : f32 to vector<32x256xf32>
    %1014 = arith.addf %1012, %1013 : vector<32x256xf32>
    %cst_196 = arith.constant 0.000000e+00 : f32
    %cst_197 = arith.constant 6.000000e+00 : f32
    %1015 = vector.broadcast %cst_196 : f32 to vector<32x256xf32>
    %1016 = arith.maximumf %1015, %1014 : vector<32x256xf32>
    %1017 = vector.broadcast %cst_197 : f32 to vector<32x256xf32>
    %1018 = arith.minimumf %1017, %1016 : vector<32x256xf32>
    %cst_198 = arith.constant 0.166666672 : f32
    %1019 = vector.broadcast %cst_198 : f32 to vector<32x256xf32>
    %1020 = arith.mulf %1018, %1019 : vector<32x256xf32>
    %1021 = arith.mulf %1020, %872 : vector<32x256xf32>
    %c0_199 = arith.constant 0 : index
    %c0_200 = arith.constant 0 : index
    %c0_201 = arith.constant 0 : index
    %1022 = vector.load %arg18[%c0_199, %c0_200, %c0_201] : memref<1x32x256xf32, #tpu.memory_space<vmem>>, vector<1x32x256xf32>
    %1023 = vector.shape_cast %1022 : vector<1x32x256xf32> to vector<32x256xf32>
    %1024 = vector.shape_cast %1021 : vector<32x256xf32> to vector<1x32x256xf32>
    tpu.vector_store %arg18[%c0_199, %c0_200, %c0_201], %1024 {strides = array<i32>} : memref<1x32x256xf32, #tpu.memory_space<vmem>>, vector<1x32x256xf32>,
    return
  }
  func.func @transform_0(%arg0: i32) -> (i32, i32, i32, i32) {
    %c0_i32 = arith.constant 0 : i32
    %c0_i32_0 = arith.constant 0 : i32
    %c0_i32_1 = arith.constant 0 : i32
    %c0_i32_2 = arith.constant 0 : i32
    return %arg0, %c0_i32, %c0_i32_0, %c0_i32_1 : i32, i32, i32, i32
  }
  func.func @transform_1(%arg0: i32) -> (i32, i32) {
    %c0_i32 = arith.constant 0 : i32
    %c0_i32_0 = arith.constant 0 : i32
    %c0_i32_1 = arith.constant 0 : i32
    return %c0_i32, %c0_i32_0 : i32, i32
  }
  func.func @transform_2(%arg0: i32) -> (i32, i32) {
    %c0_i32 = arith.constant 0 : i32
    %c0_i32_0 = arith.constant 0 : i32
    %c0_i32_1 = arith.constant 0 : i32
    return %c0_i32, %c0_i32_0 : i32, i32
  }
  func.func @transform_3(%arg0: i32) -> (i32, i32) {
    %c0_i32 = arith.constant 0 : i32
    %c0_i32_0 = arith.constant 0 : i32
    %c0_i32_1 = arith.constant 0 : i32
    return %c0_i32, %c0_i32_0 : i32, i32
  }
  func.func @transform_4(%arg0: i32) -> (i32, i32) {
    %c0_i32 = arith.constant 0 : i32
    %c0_i32_0 = arith.constant 0 : i32
    %c0_i32_1 = arith.constant 0 : i32
    return %c0_i32, %c0_i32_0 : i32, i32
  }
  func.func @transform_5(%arg0: i32) -> (i32, i32) {
    %c0_i32 = arith.constant 0 : i32
    %c0_i32_0 = arith.constant 0 : i32
    %c0_i32_1 = arith.constant 0 : i32
    return %c0_i32, %c0_i32_0 : i32, i32
  }
  func.func @transform_6(%arg0: i32) -> (i32, i32) {
    %c0_i32 = arith.constant 0 : i32
    %c0_i32_0 = arith.constant 0 : i32
    %c0_i32_1 = arith.constant 0 : i32
    return %c0_i32, %c0_i32_0 : i32, i32
  }
  func.func @transform_7(%arg0: i32) -> (i32, i32) {
    %c0_i32 = arith.constant 0 : i32
    %c0_i32_0 = arith.constant 0 : i32
    %c0_i32_1 = arith.constant 0 : i32
    return %c0_i32, %c0_i32_0 : i32, i32
  }
  func.func @transform_8(%arg0: i32) -> (i32, i32) {
    %c0_i32 = arith.constant 0 : i32
    %c0_i32_0 = arith.constant 0 : i32
    %c0_i32_1 = arith.constant 0 : i32
    return %c0_i32, %c0_i32_0 : i32, i32
  }
  func.func @transform_9(%arg0: i32) -> (i32, i32) {
    %c0_i32 = arith.constant 0 : i32
    %c0_i32_0 = arith.constant 0 : i32
    %c0_i32_1 = arith.constant 0 : i32
    return %c0_i32, %c0_i32_0 : i32, i32
  }
  func.func @transform_10(%arg0: i32) -> (i32, i32) {
    %c0_i32 = arith.constant 0 : i32
    %c0_i32_0 = arith.constant 0 : i32
    %c0_i32_1 = arith.constant 0 : i32
    return %c0_i32, %c0_i32_0 : i32, i32
  }
  func.func @transform_11(%arg0: i32) -> (i32, i32) {
    %c0_i32 = arith.constant 0 : i32
    %c0_i32_0 = arith.constant 0 : i32
    %c0_i32_1 = arith.constant 0 : i32
    return %c0_i32, %c0_i32_0 : i32, i32
  }
  func.func @transform_12(%arg0: i32) -> (i32, i32) {
    %c0_i32 = arith.constant 0 : i32
    %c0_i32_0 = arith.constant 0 : i32
    %c0_i32_1 = arith.constant 0 : i32
    return %c0_i32, %c0_i32_0 : i32, i32
  }
  func.func @transform_13(%arg0: i32) -> (i32, i32) {
    %c0_i32 = arith.constant 0 : i32
    %c0_i32_0 = arith.constant 0 : i32
    %c0_i32_1 = arith.constant 0 : i32
    return %c0_i32, %c0_i32_0 : i32, i32
  }
  func.func @transform_14(%arg0: i32) -> (i32, i32) {
    %c0_i32 = arith.constant 0 : i32
    %c0_i32_0 = arith.constant 0 : i32
    %c0_i32_1 = arith.constant 0 : i32
    return %c0_i32, %c0_i32_0 : i32, i32
  }
  func.func @transform_15(%arg0: i32) -> (i32, i32) {
    %c0_i32 = arith.constant 0 : i32
    %c0_i32_0 = arith.constant 0 : i32
    %c0_i32_1 = arith.constant 0 : i32
    return %c0_i32, %c0_i32_0 : i32, i32
  }
  func.func @transform_16(%arg0: i32) -> (i32, i32) {
    %c0_i32 = arith.constant 0 : i32
    %c0_i32_0 = arith.constant 0 : i32
    %c0_i32_1 = arith.constant 0 : i32
    return %c0_i32, %c0_i32_0 : i32, i32
  }
  func.func @transform_17(%arg0: i32) -> (i32, i32, i32) {
    %c0_i32 = arith.constant 0 : i32
    %c0_i32_0 = arith.constant 0 : i32
    %c0_i32_1 = arith.constant 0 : i32
    return %arg0, %c0_i32, %c0_i32_0 : i32, i32, i32
  }
}

</mosaic_0001>

<llo_original>
// kernel: sea_attention_forward.1
$region0: #{sea_attention_forward.1}
  #allocation0 [shape = 'u32[]', space=smem, size = 0x4, offset = 0x4, fixed_abs, tag = 'smem constant byte address 0x4 - core index']
  #allocation1 [shape = 'u32[144,128]{1,0:T(1,128)}', space=vmem, size = 0x12000, scoped, tag = 'internal scratch']
  %s0 = inlined_call_operand.vmem [shape: f32[2,16,16,32], index: 0, kind: input, shape index: {}]
  %s1 = inlined_call_operand.vmem [shape: bf16[32,128], index: 1, kind: input, shape index: {}]
  %s2 = inlined_call_operand.vmem [shape: f32[1,128], index: 2, kind: input, shape index: {}]
  %s3 = inlined_call_operand.vmem [shape: f32[9,128], index: 3, kind: input, shape index: {}]
  %s4 = inlined_call_operand.vmem [shape: f32[1,128], index: 4, kind: input, shape index: {}]
  %s5 = inlined_call_operand.vmem [shape: bf16[32,128], index: 5, kind: input, shape index: {}]
  %s6 = inlined_call_operand.vmem [shape: f32[32,1], index: 6, kind: input, shape index: {}]
  %s7 = inlined_call_operand.vmem [shape: f32[16,32], index: 7, kind: input, shape index: {}]
  %s8 = inlined_call_operand.vmem [shape: f32[16,32], index: 8, kind: input, shape index: {}]
  %s9 = inlined_call_operand.vmem [shape: f32[16,32], index: 9, kind: input, shape index: {}]
  %s10 = inlined_call_operand.vmem [shape: f32[16,32], index: 10, kind: input, shape index: {}]
  %s11 = inlined_call_operand.vmem [shape: bf16[64,64], index: 11, kind: input, shape index: {}]
  %s12 = inlined_call_operand.vmem [shape: f32[1,64], index: 12, kind: input, shape index: {}]
  %s13 = inlined_call_operand.vmem [shape: bf16[64,64], index: 13, kind: input, shape index: {}]
  %s14 = inlined_call_operand.vmem [shape: f32[1,64], index: 14, kind: input, shape index: {}]
  %s15 = inlined_call_operand.vmem [shape: bf16[32,64], index: 15, kind: input, shape index: {}]
  %s16 = inlined_call_operand.vmem [shape: f32[32,1], index: 16, kind: input, shape index: {}]
  %s17 = inlined_call_operand.vmem [shape: f32[2,32,256], index: 17, kind: output, shape index: {}]
  %s18 = sld [smem:[#allocation0]]
  $region101: #{sea_attention_forward.1} parent=0
    _
  %s20 = ssub.s32 1, %s18
  %s21 = scalar_select 0, %s20, %s18
  loop: start=0, step=1, limit=4
  $region2: #{sea_attention_forward.1} parent=0 // loop_pre_header
    _
  $region3: #{sea_attention_forward.1} parent=0 // loop_header
    %s23 = sphi 0, %s27
    %p24 = scmp.ge.s32.totalorder %s23, 4
    %s33 = sphi 0, %s35
    %s36 = sphi 0, %s33
    %s37 = sphi 0, %s36
    %s53 = sphi 0, %s37
    %s57 = sphi 0, %s57
    %s59 = sphi 0, %s57
    %s60 = sphi 0, %s59
    %s74 = sphi 0, %s60
    %s78 = sphi 0, %s78
    %s80 = sphi 0, %s78
    %s81 = sphi 0, %s80
    %s95 = sphi 0, %s81
    %s99 = sphi 0, %s99
    %s101 = sphi 0, %s99
    %s102 = sphi 0, %s101
    %s116 = sphi 0, %s102
    %s120 = sphi 0, %s120
    %s122 = sphi 0, %s120
    %s123 = sphi 0, %s122
    %s137 = sphi 0, %s123
    %s141 = sphi 0, %s141
    %s143 = sphi 0, %s141
    %s144 = sphi 0, %s143
    %s158 = sphi 0, %s144
    %s162 = sphi 0, %s162
    %s164 = sphi 0, %s162
    %s165 = sphi 0, %s164
    %s179 = sphi 0, %s165
    %s183 = sphi 0, %s183
    %s185 = sphi 0, %s183
    %s186 = sphi 0, %s185
    %s200 = sphi 0, %s186
    %s204 = sphi 0, %s204
    %s206 = sphi 0, %s204
    %s207 = sphi 0, %s206
    %s221 = sphi 0, %s207
    %s225 = sphi 0, %s225
    %s227 = sphi 0, %s225
    %s228 = sphi 0, %s227
    %s242 = sphi 0, %s228
    %s246 = sphi 0, %s246
    %s248 = sphi 0, %s246
    %s249 = sphi 0, %s248
    %s263 = sphi 0, %s249
    %s267 = sphi 0, %s267
    %s269 = sphi 0, %s267
    %s270 = sphi 0, %s269
    %s284 = sphi 0, %s270
    %s288 = sphi 0, %s288
    %s290 = sphi 0, %s288
    %s291 = sphi 0, %s290
    %s305 = sphi 0, %s291
    %s309 = sphi 0, %s309
    %s311 = sphi 0, %s309
    %s312 = sphi 0, %s311
    %s326 = sphi 0, %s312
    %s330 = sphi 0, %s330
    %s332 = sphi 0, %s330
    %s333 = sphi 0, %s332
    %s347 = sphi 0, %s333
    %s351 = sphi 0, %s351
    %s353 = sphi 0, %s351
    %s354 = sphi 0, %s353
    %s368 = sphi 0, %s354
    %s372 = sphi 0, %s372
    %s374 = sphi 0, %s372
    %s375 = sphi 0, %s374
    %s389 = sphi 0, %s375
    %s395 = sphi 0, %s397
    %s398 = sphi 0, %s395
    %s399 = sphi 0, %s398
    %s415 = sphi 0, %s399
  $region4: #{sea_attention_forward.1} parent=0 // loop_header_branch
    %26 = sbr.rel (%p24) target = $region8
  $region5: #{sea_attention_forward.1} parent=0 // loop_body
    %s28 = ssub.s32 %s23, 1
    %s29 = ssub.s32 %s23, 2
    %s30 = sadd.s32 %s23, 1
    %s31 = ssub.s32 %s23, %s30
    %p32 = scmp.eq.s32.totalorder %s31, 0
    %s34 = sadd.s32 %s33, 1
    %s35 = scalar_select %p32, %s33, %s34
    %p38 = pneg %p32
    %p39 = scmp.eq.s32.totalorder %s23, 1
    %p40 = por %p38, %p39
    %p41 = scmp.ne.s32.totalorder %s33, %s36
    %p42 = scmp.eq.s32.totalorder %s23, 0
    %p43 = por %p41, %p42
    %p44 = scmp.ne.s32.totalorder %s33, %s36
    %p45 = scmp.eq.s32.totalorder %s28, 1
    %p46 = por %p44, %p45
    %p47 = scmp.ne.s32.totalorder %s36, %s37
    %p48 = scmp.eq.s32.totalorder %s28, 0
    %p49 = por %p47, %p48
    %p50 = scmp.ne.s32.totalorder %s36, %s37
    %p51 = scmp.eq.s32.totalorder %s29, 1
    %p52 = por %p50, %p51
    %p54 = scmp.ne.s32.totalorder %s37, %s53
    %p55 = scmp.eq.s32.totalorder %s29, 0
    %p56 = por %p54, %p55
    %s58 = sadd.s32 %s57, 1
    %p61 = scmp.eq.s32.totalorder %s23, 1
    %p62 = scmp.ne.s32.totalorder %s57, %s59
    %p63 = scmp.eq.s32.totalorder %s23, 0
    %p64 = por %p62, %p63
    %p65 = scmp.ne.s32.totalorder %s57, %s59
    %p66 = scmp.eq.s32.totalorder %s28, 1
    %p67 = por %p65, %p66
    %p68 = scmp.ne.s32.totalorder %s59, %s60
    %p69 = scmp.eq.s32.totalorder %s28, 0
    %p70 = por %p68, %p69
    %p71 = scmp.ne.s32.totalorder %s59, %s60
    %p72 = scmp.eq.s32.totalorder %s29, 1
    %p73 = por %p71, %p72
    %p75 = scmp.ne.s32.totalorder %s60, %s74
    %p76 = scmp.eq.s32.totalorder %s29, 0
    %p77 = por %p75, %p76
    %s79 = sadd.s32 %s78, 1
    %p82 = scmp.eq.s32.totalorder %s23, 1
    %p83 = scmp.ne.s32.totalorder %s78, %s80
    %p84 = scmp.eq.s32.totalorder %s23, 0
    %p85 = por %p83, %p84
    %p86 = scmp.ne.s32.totalorder %s78, %s80
    %p87 = scmp.eq.s32.totalorder %s28, 1
    %p88 = por %p86, %p87
    %p89 = scmp.ne.s32.totalorder %s80, %s81
    %p90 = scmp.eq.s32.totalorder %s28, 0
    %p91 = por %p89, %p90
    %p92 = scmp.ne.s32.totalorder %s80, %s81
    %p93 = scmp.eq.s32.totalorder %s29, 1
    %p94 = por %p92, %p93
    %p96 = scmp.ne.s32.totalorder %s81, %s95
    %p97 = scmp.eq.s32.totalorder %s29, 0
    %p98 = por %p96, %p97
    %s100 = sadd.s32 %s99, 1
    %p103 = scmp.eq.s32.totalorder %s23, 1
    %p104 = scmp.ne.s32.totalorder %s99, %s101
    %p105 = scmp.eq.s32.totalorder %s23, 0
    %p106 = por %p104, %p105
    %p107 = scmp.ne.s32.totalorder %s99, %s101
    %p108 = scmp.eq.s32.totalorder %s28, 1
    %p109 = por %p107, %p108
    %p110 = scmp.ne.s32.totalorder %s101, %s102
    %p111 = scmp.eq.s32.totalorder %s28, 0
    %p112 = por %p110, %p111
    %p113 = scmp.ne.s32.totalorder %s101, %s102
    %p114 = scmp.eq.s32.totalorder %s29, 1
    %p115 = por %p113, %p114
    %p117 = scmp.ne.s32.totalorder %s102, %s116
    %p118 = scmp.eq.s32.totalorder %s29, 0
    %p119 = por %p117, %p118
    %s121 = sadd.s32 %s120, 1
    %p124 = scmp.eq.s32.totalorder %s23, 1
    %p125 = scmp.ne.s32.totalorder %s120, %s122
    %p126 = scmp.eq.s32.totalorder %s23, 0
    %p127 = por %p125, %p126
    %p128 = scmp.ne.s32.totalorder %s120, %s122
    %p129 = scmp.eq.s32.totalorder %s28, 1
    %p130 = por %p128, %p129
    %p131 = scmp.ne.s32.totalorder %s122, %s123
    %p132 = scmp.eq.s32.totalorder %s28, 0
    %p133 = por %p131, %p132
    %p134 = scmp.ne.s32.totalorder %s122, %s123
    %p135 = scmp.eq.s32.totalorder %s29, 1
    %p136 = por %p134, %p135
    %p138 = scmp.ne.s32.totalorder %s123, %s137
    %p139 = scmp.eq.s32.totalorder %s29, 0
    %p140 = por %p138, %p139
    %s142 = sadd.s32 %s141, 1
    %p145 = scmp.eq.s32.totalorder %s23, 1
    %p146 = scmp.ne.s32.totalorder %s141, %s143
    %p147 = scmp.eq.s32.totalorder %s23, 0
    %p148 = por %p146, %p147
    %p149 = scmp.ne.s32.totalorder %s141, %s143
    %p150 = scmp.eq.s32.totalorder %s28, 1
    %p151 = por %p149, %p150
    %p152 = scmp.ne.s32.totalorder %s143, %s144
    %p153 = scmp.eq.s32.totalorder %s28, 0
    %p154 = por %p152, %p153
    %p155 = scmp.ne.s32.totalorder %s143, %s144
    %p156 = scmp.eq.s32.totalorder %s29, 1
    %p157 = por %p155, %p156
    %p159 = scmp.ne.s32.totalorder %s144, %s158
    %p160 = scmp.eq.s32.totalorder %s29, 0
    %p161 = por %p159, %p160
    %s163 = sadd.s32 %s162, 1
    %p166 = scmp.eq.s32.totalorder %s23, 1
    %p167 = scmp.ne.s32.totalorder %s162, %s164
    %p168 = scmp.eq.s32.totalorder %s23, 0
    %p169 = por %p167, %p168
    %p170 = scmp.ne.s32.totalorder %s162, %s164
    %p171 = scmp.eq.s32.totalorder %s28, 1
    %p172 = por %p170, %p171
    %p173 = scmp.ne.s32.totalorder %s164, %s165
    %p174 = scmp.eq.s32.totalorder %s28, 0
    %p175 = por %p173, %p174
    %p176 = scmp.ne.s32.totalorder %s164, %s165
    %p177 = scmp.eq.s32.totalorder %s29, 1
    %p178 = por %p176, %p177
    %p180 = scmp.ne.s32.totalorder %s165, %s179
    %p181 = scmp.eq.s32.totalorder %s29, 0
    %p182 = por %p180, %p181
    %s184 = sadd.s32 %s183, 1
    %p187 = scmp.eq.s32.totalorder %s23, 1
    %p188 = scmp.ne.s32.totalorder %s183, %s185
    %p189 = scmp.eq.s32.totalorder %s23, 0
    %p190 = por %p188, %p189
    %p191 = scmp.ne.s32.totalorder %s183, %s185
    %p192 = scmp.eq.s32.totalorder %s28, 1
    %p193 = por %p191, %p192
    %p194 = scmp.ne.s32.totalorder %s185, %s186
    %p195 = scmp.eq.s32.totalorder %s28, 0
    %p196 = por %p194, %p195
    %p197 = scmp.ne.s32.totalorder %s185, %s186
    %p198 = scmp.eq.s32.totalorder %s29, 1
    %p199 = por %p197, %p198
    %p201 = scmp.ne.s32.totalorder %s186, %s200
    %p202 = scmp.eq.s32.totalorder %s29, 0
    %p203 = por %p201, %p202
    %s205 = sadd.s32 %s204, 1
    %p208 = scmp.eq.s32.totalorder %s23, 1
    %p209 = scmp.ne.s32.totalorder %s204, %s206
    %p210 = scmp.eq.s32.totalorder %s23, 0
    %p211 = por %p209, %p210
    %p212 = scmp.ne.s32.totalorder %s204, %s206
    %p213 = scmp.eq.s32.totalorder %s28, 1
    %p214 = por %p212, %p213
    %p215 = scmp.ne.s32.totalorder %s206, %s207
    %p216 = scmp.eq.s32.totalorder %s28, 0
    %p217 = por %p215, %p216
    %p218 = scmp.ne.s32.totalorder %s206, %s207
    %p219 = scmp.eq.s32.totalorder %s29, 1
    %p220 = por %p218, %p219
    %p222 = scmp.ne.s32.totalorder %s207, %s221
    %p223 = scmp.eq.s32.totalorder %s29, 0
    %p224 = por %p222, %p223
    %s226 = sadd.s32 %s225, 1
    %p229 = scmp.eq.s32.totalorder %s23, 1
    %p230 = scmp.ne.s32.totalorder %s225, %s227
    %p231 = scmp.eq.s32.totalorder %s23, 0
    %p232 = por %p230, %p231
    %p233 = scmp.ne.s32.totalorder %s225, %s227
    %p234 = scmp.eq.s32.totalorder %s28, 1
    %p235 = por %p233, %p234
    %p236 = scmp.ne.s32.totalorder %s227, %s228
    %p237 = scmp.eq.s32.totalorder %s28, 0
    %p238 = por %p236, %p237
    %p239 = scmp.ne.s32.totalorder %s227, %s228
    %p240 = scmp.eq.s32.totalorder %s29, 1
    %p241 = por %p239, %p240
    %p243 = scmp.ne.s32.totalorder %s228, %s242
    %p244 = scmp.eq.s32.totalorder %s29, 0
    %p245 = por %p243, %p244
    %s247 = sadd.s32 %s246, 1
    %p250 = scmp.eq.s32.totalorder %s23, 1
    %p251 = scmp.ne.s32.totalorder %s246, %s248
    %p252 = scmp.eq.s32.totalorder %s23, 0
    %p253 = por %p251, %p252
    %p254 = scmp.ne.s32.totalorder %s246, %s248
    %p255 = scmp.eq.s32.totalorder %s28, 1
    %p256 = por %p254, %p255
    %p257 = scmp.ne.s32.totalorder %s248, %s249
    %p258 = scmp.eq.s32.totalorder %s28, 0
    %p259 = por %p257, %p258
    %p260 = scmp.ne.s32.totalorder %s248, %s249
    %p261 = scmp.eq.s32.totalorder %s29, 1
    %p262 = por %p260, %p261
    %p264 = scmp.ne.s32.totalorder %s249, %s263
    %p265 = scmp.eq.s32.totalorder %s29, 0
    %p266 = por %p264, %p265
    %s268 = sadd.s32 %s267, 1
    %p271 = scmp.eq.s32.totalorder %s23, 1
    %p272 = scmp.ne.s32.totalorder %s267, %s269
    %p273 = scmp.eq.s32.totalorder %s23, 0
    %p274 = por %p272, %p273
    %p275 = scmp.ne.s32.totalorder %s267, %s269
    %p276 = scmp.eq.s32.totalorder %s28, 1
    %p277 = por %p275, %p276
    %p278 = scmp.ne.s32.totalorder %s269, %s270
    %p279 = scmp.eq.s32.totalorder %s28, 0
    %p280 = por %p278, %p279
    %p281 = scmp.ne.s32.totalorder %s269, %s270
    %p282 = scmp.eq.s32.totalorder %s29, 1
    %p283 = por %p281, %p282
    %p285 = scmp.ne.s32.totalorder %s270, %s284
    %p286 = scmp.eq.s32.totalorder %s29, 0
    %p287 = por %p285, %p286
    %s289 = sadd.s32 %s288, 1
    %p292 = scmp.eq.s32.totalorder %s23, 1
    %p293 = scmp.ne.s32.totalorder %s288, %s290
    %p294 = scmp.eq.s32.totalorder %s23, 0
    %p295 = por %p293, %p294
    %p296 = scmp.ne.s32.totalorder %s288, %s290
    %p297 = scmp.eq.s32.totalorder %s28, 1
    %p298 = por %p296, %p297
    %p299 = scmp.ne.s32.totalorder %s290, %s291
    %p300 = scmp.eq.s32.totalorder %s28, 0
    %p301 = por %p299, %p300
    %p302 = scmp.ne.s32.totalorder %s290, %s291
    %p303 = scmp.eq.s32.totalorder %s29, 1
    %p304 = por %p302, %p303
    %p306 = scmp.ne.s32.totalorder %s291, %s305
    %p307 = scmp.eq.s32.totalorder %s29, 0
    %p308 = por %p306, %p307
    %s310 = sadd.s32 %s309, 1
    %p313 = scmp.eq.s32.totalorder %s23, 1
    %p314 = scmp.ne.s32.totalorder %s309, %s311
    %p315 = scmp.eq.s32.totalorder %s23, 0
    %p316 = por %p314, %p315
    %p317 = scmp.ne.s32.totalorder %s309, %s311
    %p318 = scmp.eq.s32.totalorder %s28, 1
    %p319 = por %p317, %p318
    %p320 = scmp.ne.s32.totalorder %s311, %s312
    %p321 = scmp.eq.s32.totalorder %s28, 0
    %p322 = por %p320, %p321
    %p323 = scmp.ne.s32.totalorder %s311, %s312
    %p324 = scmp.eq.s32.totalorder %s29, 1
    %p325 = por %p323, %p324
    %p327 = scmp.ne.s32.totalorder %s312, %s326
    %p328 = scmp.eq.s32.totalorder %s29, 0
    %p329 = por %p327, %p328
    %s331 = sadd.s32 %s330, 1
    %p334 = scmp.eq.s32.totalorder %s23, 1
    %p335 = scmp.ne.s32.totalorder %s330, %s332
    %p336 = scmp.eq.s32.totalorder %s23, 0
    %p337 = por %p335, %p336
    %p338 = scmp.ne.s32.totalorder %s330, %s332
    %p339 = scmp.eq.s32.totalorder %s28, 1
    %p340 = por %p338, %p339
    %p341 = scmp.ne.s32.totalorder %s332, %s333
    %p342 = scmp.eq.s32.totalorder %s28, 0
    %p343 = por %p341, %p342
    %p344 = scmp.ne.s32.totalorder %s332, %s333
    %p345 = scmp.eq.s32.totalorder %s29, 1
    %p346 = por %p344, %p345
    %p348 = scmp.ne.s32.totalorder %s333, %s347
    %p349 = scmp.eq.s32.totalorder %s29, 0
    %p350 = por %p348, %p349
    %s352 = sadd.s32 %s351, 1
    %p355 = scmp.eq.s32.totalorder %s23, 1
    %p356 = scmp.ne.s32.totalorder %s351, %s353
    %p357 = scmp.eq.s32.totalorder %s23, 0
    %p358 = por %p356, %p357
    %p359 = scmp.ne.s32.totalorder %s351, %s353
    %p360 = scmp.eq.s32.totalorder %s28, 1
    %p361 = por %p359, %p360
    %p362 = scmp.ne.s32.totalorder %s353, %s354
    %p363 = scmp.eq.s32.totalorder %s28, 0
    %p364 = por %p362, %p363
    %p365 = scmp.ne.s32.totalorder %s353, %s354
    %p366 = scmp.eq.s32.totalorder %s29, 1
    %p367 = por %p365, %p366
    %p369 = scmp.ne.s32.totalorder %s354, %s368
    %p370 = scmp.eq.s32.totalorder %s29, 0
    %p371 = por %p369, %p370
    %s373 = sadd.s32 %s372, 1
    %p376 = scmp.eq.s32.totalorder %s23, 1
    %p377 = scmp.ne.s32.totalorder %s372, %s374
    %p378 = scmp.eq.s32.totalorder %s23, 0
    %p379 = por %p377, %p378
    %p380 = scmp.ne.s32.totalorder %s372, %s374
    %p381 = scmp.eq.s32.totalorder %s28, 1
    %p382 = por %p380, %p381
    %p383 = scmp.ne.s32.totalorder %s374, %s375
    %p384 = scmp.eq.s32.totalorder %s28, 0
    %p385 = por %p383, %p384
    %p386 = scmp.ne.s32.totalorder %s374, %s375
    %p387 = scmp.eq.s32.totalorder %s29, 1
    %p388 = por %p386, %p387
    %p390 = scmp.ne.s32.totalorder %s375, %s389
    %p391 = scmp.eq.s32.totalorder %s29, 0
    %p392 = por %p390, %p391
    %s393 = ssub.s32 %s23, %s30
    %p394 = scmp.eq.s32.totalorder %s393, 0
    %s396 = sadd.s32 %s395, 1
    %s397 = scalar_select %p394, %s395, %s396
    %p400 = pneg %p394
    %p401 = scmp.eq.s32.totalorder %s23, 1
    %p402 = por %p400, %p401
    %p403 = scmp.ne.s32.totalorder %s395, %s398
    %p404 = scmp.eq.s32.totalorder %s23, 0
    %p405 = por %p403, %p404
    %p406 = scmp.ne.s32.totalorder %s395, %s398
    %p407 = scmp.eq.s32.totalorder %s28, 1
    %p408 = por %p406, %p407
    %p409 = scmp.ne.s32.totalorder %s398, %s399
    %p410 = scmp.eq.s32.totalorder %s28, 0
    %p411 = por %p409, %p410
    %p412 = scmp.ne.s32.totalorder %s398, %s399
    %p413 = scmp.eq.s32.totalorder %s29, 1
    %p414 = por %p412, %p413
    %p416 = scmp.ne.s32.totalorder %s399, %s415
    %p417 = scmp.eq.s32.totalorder %s29, 0
    %p418 = por %p416, %p417
    %p419 = scmp.le.s32.totalorder 1, %s23
    %p420 = scmp.lt.s32.totalorder %s23, 3
    %p421 = pnand %p419, %p420
    %p422 = pneg %p421
    // Predicated region
    $region9: #{sea_attention_forward.1} parent=5 // pred_check
      _
    $region10: #{sea_attention_forward.1} parent=5 // pred_check_branch
      %424 = sbr.rel (%p421) target = $region12
    $region11: #{sea_attention_forward.1} parent=5 // pred_region
      %s425 = ssub.s32 %s23, 1
      // Predicated region
      $region13: #{sea_attention_forward.1} parent=11 // pred_check
        %p426 = pneg %p70
      $region14: #{sea_attention_forward.1} parent=11 // pred_check_branch
        %428 = sbr.rel (%p426) target = $region16
      $region15: #{sea_attention_forward.1} parent=11 // pred_region
        _
      $region16: #{sea_attention_forward.1} parent=11 // pred_fallthru
        _
      // Predicated region
      $region17: #{sea_attention_forward.1} parent=11 // pred_check
        %p429 = pneg %p91
      $region18: #{sea_attention_forward.1} parent=11 // pred_check_branch
        %431 = sbr.rel (%p429) target = $region20
      $region19: #{sea_attention_forward.1} parent=11 // pred_region
        _
      $region20: #{sea_attention_forward.1} parent=11 // pred_fallthru
        _
      // Predicated region
      $region21: #{sea_attention_forward.1} parent=11 // pred_check
        %p432 = pneg %p112
      $region22: #{sea_attention_forward.1} parent=11 // pred_check_branch
        %434 = sbr.rel (%p432) target = $region24
      $region23: #{sea_attention_forward.1} parent=11 // pred_region
        _
      $region24: #{sea_attention_forward.1} parent=11 // pred_fallthru
        _
      // Predicated region
      $region25: #{sea_attention_forward.1} parent=11 // pred_check
        %p435 = pneg %p133
      $region26: #{sea_attention_forward.1} parent=11 // pred_check_branch
        %437 = sbr.rel (%p435) target = $region28
      $region27: #{sea_attention_forward.1} parent=11 // pred_region
        _
      $region28: #{sea_attention_forward.1} parent=11 // pred_fallthru
        _
      // Predicated region
      $region29: #{sea_attention_forward.1} parent=11 // pred_check
        %p438 = pneg %p154
      $region30: #{sea_attention_forward.1} parent=11 // pred_check_branch
        %440 = sbr.rel (%p438) target = $region32
      $region31: #{sea_attention_forward.1} parent=11 // pred_region
        _
      $region32: #{sea_attention_forward.1} parent=11 // pred_fallthru
        _
      // Predicated region
      $region33: #{sea_attention_forward.1} parent=11 // pred_check
        %p441 = pneg %p175
      $region34: #{sea_attention_forward.1} parent=11 // pred_check_branch
        %443 = sbr.rel (%p441) target = $region36
      $region35: #{sea_attention_forward.1} parent=11 // pred_region
        _
      $region36: #{sea_attention_forward.1} parent=11 // pred_fallthru
        _
      // Predicated region
      $region37: #{sea_attention_forward.1} parent=11 // pred_check
        %p444 = pneg %p196
      $region38: #{sea_attention_forward.1} parent=11 // pred_check_branch
        %446 = sbr.rel (%p444) target = $region40
      $region39: #{sea_attention_forward.1} parent=11 // pred_region
        _
      $region40: #{sea_attention_forward.1} parent=11 // pred_fallthru
        _
      // Predicated region
      $region41: #{sea_attention_forward.1} parent=11 // pred_check
        %p447 = pneg %p217
      $region42: #{sea_attention_forward.1} parent=11 // pred_check_branch
        %449 = sbr.rel (%p447) target = $region44
      $region43: #{sea_attention_forward.1} parent=11 // pred_region
        _
      $region44: #{sea_attention_forward.1} parent=11 // pred_fallthru
        _
      // Predicated region
      $region45: #{sea_attention_forward.1} parent=11 // pred_check
        %p450 = pneg %p238
      $region46: #{sea_attention_forward.1} parent=11 // pred_check_branch
        %452 = sbr.rel (%p450) target = $region48
      $region47: #{sea_attention_forward.1} parent=11 // pred_region
        _
      $region48: #{sea_attention_forward.1} parent=11 // pred_fallthru
        _
      // Predicated region
      $region49: #{sea_attention_forward.1} parent=11 // pred_check
        %p453 = pneg %p259
      $region50: #{sea_attention_forward.1} parent=11 // pred_check_branch
        %455 = sbr.rel (%p453) target = $region52
      $region51: #{sea_attention_forward.1} parent=11 // pred_region
        _
      $region52: #{sea_attention_forward.1} parent=11 // pred_fallthru
        _
      // Predicated region
      $region53: #{sea_attention_forward.1} parent=11 // pred_check
        %p456 = pneg %p280
      $region54: #{sea_attention_forward.1} parent=11 // pred_check_branch
        %458 = sbr.rel (%p456) target = $region56
      $region55: #{sea_attention_forward.1} parent=11 // pred_region
        _
      $region56: #{sea_attention_forward.1} parent=11 // pred_fallthru
        _
      // Predicated region
      $region57: #{sea_attention_forward.1} parent=11 // pred_check
        %p459 = pneg %p301
      $region58: #{sea_attention_forward.1} parent=11 // pred_check_branch
        %461 = sbr.rel (%p459) target = $region60
      $region59: #{sea_attention_forward.1} parent=11 // pred_region
        _
      $region60: #{sea_attention_forward.1} parent=11 // pred_fallthru
        _
      // Predicated region
      $region61: #{sea_attention_forward.1} parent=11 // pred_check
        %p462 = pneg %p322
      $region62: #{sea_attention_forward.1} parent=11 // pred_check_branch
        %464 = sbr.rel (%p462) target = $region64
      $region63: #{sea_attention_forward.1} parent=11 // pred_region
        _
      $region64: #{sea_attention_forward.1} parent=11 // pred_fallthru
        _
      // Predicated region
      $region65: #{sea_attention_forward.1} parent=11 // pred_check
        %p465 = pneg %p343
      $region66: #{sea_attention_forward.1} parent=11 // pred_check_branch
        %467 = sbr.rel (%p465) target = $region68
      $region67: #{sea_attention_forward.1} parent=11 // pred_region
        _
      $region68: #{sea_attention_forward.1} parent=11 // pred_fallthru
        _
      // Predicated region
      $region69: #{sea_attention_forward.1} parent=11 // pred_check
        %p468 = pneg %p364
      $region70: #{sea_attention_forward.1} parent=11 // pred_check_branch
        %470 = sbr.rel (%p468) target = $region72
      $region71: #{sea_attention_forward.1} parent=11 // pred_region
        _
      $region72: #{sea_attention_forward.1} parent=11 // pred_fallthru
        _
      // Predicated region
      $region73: #{sea_attention_forward.1} parent=11 // pred_check
        %p471 = pneg %p385
      $region74: #{sea_attention_forward.1} parent=11 // pred_check_branch
        %473 = sbr.rel (%p471) target = $region76
      $region75: #{sea_attention_forward.1} parent=11 // pred_region
        _
      $region76: #{sea_attention_forward.1} parent=11 // pred_fallthru
        _
    $region12: #{sea_attention_forward.1} parent=5 // pred_fallthru
      _
    %p474 = scmp.lt.s32.totalorder %s23, 2
    // Predicated region
    $region77: #{sea_attention_forward.1} parent=5 // pred_check
      %p475 = pneg %p474
    $region78: #{sea_attention_forward.1} parent=5 // pred_check_branch
      %477 = sbr.rel (%p475) target = $region80
    $region79: #{sea_attention_forward.1} parent=5 // pred_region
      // Predicated region
      $region81: #{sea_attention_forward.1} parent=79 // pred_check
        %p478 = pneg %p43
      $region82: #{sea_attention_forward.1} parent=79 // pred_check_branch
        %480 = sbr.rel (%p478) target = $region84
      $region83: #{sea_attention_forward.1} parent=79 // pred_region
        %p481 = scmp.lt.s32.totalorder %s23, 1
        %s482 = scalar_select %p481, %s23, 1
        %s483 = smul.addr %s482, 32
        %s484 = smul.addr %s483, 8
        %s485 = scalar_lea.vmem %s0, %s484
      $region84: #{sea_attention_forward.1} parent=79 // pred_fallthru
        _
    $region80: #{sea_attention_forward.1} parent=5 // pred_fallthru
      _
    %p486 = scmp.le.s32.totalorder 1, %s23
    %p487 = scmp.lt.s32.totalorder %s23, 3
    %p488 = pnand %p486, %p487
    %p489 = pneg %p488
    // Predicated region
    $region85: #{sea_attention_forward.1} parent=5 // pred_check
      _
    $region86: #{sea_attention_forward.1} parent=5 // pred_check_branch
      %491 = sbr.rel (%p488) target = $region88
    $region87: #{sea_attention_forward.1} parent=5 // pred_region
      %s492 = ssub.s32 %s23, 1
      %p493 = scmp.lt.s32.totalorder %s28, 1
      %s494 = scalar_select %p493, %s28, 1
      %s495 = smul.addr %s494, 32
      %s496 = smul.addr %s495, 8
      %s497 = scalar_lea.vmem %s0, %s496
      %p498 = pneg %p49
      %p499 = pneg %p46
      %p500 = pneg %p70
      %p501 = pneg %p67
      %p502 = pneg %p91
      %p503 = pneg %p88
      %p504 = pneg %p112
      %p505 = pneg %p109
      %p506 = pneg %p133
      %p507 = pneg %p130
      %p508 = pneg %p154
      %p509 = pneg %p151
      %p510 = pneg %p175
      %p511 = pneg %p172
      %p512 = pneg %p196
      %p513 = pneg %p193
      %p514 = pneg %p217
      %p515 = pneg %p214
      %p516 = pneg %p238
      %p517 = pneg %p235
      %p518 = pneg %p259
      %p519 = pneg %p256
      %p520 = pneg %p280
      %p521 = pneg %p277
      %p522 = pneg %p301
      %p523 = pneg %p298
      %p524 = pneg %p322
      %p525 = pneg %p319
      %p526 = pneg %p343
      %p527 = pneg %p340
      %p528 = pneg %p364
      %p529 = pneg %p361
      %p530 = pneg %p385
      %p531 = pneg %p382
      %p532 = pneg %p411
      %p533 = pneg %p408
      %p534 = scmp.lt.s32.totalorder %s28, 1
      %s535 = scalar_select %p534, %s28, 1
      %s536 = smul.addr %s535, 8
      %s537 = smul.addr %s536, 8
      %s538 = scalar_lea.vmem %s17, %s537
      %p539 = scmp.lt.s32.totalorder %s28, 1
      %s540 = scalar_select %p539, %s28, 1
      %s541 = smul.addr %s540, 32
      %s542 = smul.addr %s541, 8
      %s543 = scalar_lea.vmem %s0, %s542
      %p544 = scmp.lt.s32.totalorder %s28, 1
      %s545 = scalar_select %p544, %s28, 1
      %s546 = smul.addr %s545, 8
      %s547 = smul.addr %s546, 8
      %s548 = scalar_lea.vmem %s17, %s547
      %v550 = vld [vmem:[%s543] sm:$0xff]
      %v551 = vld [vmem:[%s543 + $0x8] sm:$0xff]
      %v552 = vld [vmem:[%s543 + $0x10] sm:$0xff]
      %v553 = vld [vmem:[%s543 + $0x18] sm:$0xff]
      %v554 = vld [vmem:[%s543 + $0x20] sm:$0xff]
      %v555 = vld [vmem:[%s543 + $0x28] sm:$0xff]
      %v556 = vld [vmem:[%s543 + $0x30] sm:$0xff]
      %v557 = vld [vmem:[%s543 + $0x38] sm:$0xff]
      %v558 = vld [vmem:[%s543 + $0x40] sm:$0xff]
      %v559 = vld [vmem:[%s543 + $0x48] sm:$0xff]
      %v560 = vld [vmem:[%s543 + $0x50] sm:$0xff]
      %v561 = vld [vmem:[%s543 + $0x58] sm:$0xff]
      %v562 = vld [vmem:[%s543 + $0x60] sm:$0xff]
      %v563 = vld [vmem:[%s543 + $0x68] sm:$0xff]
      %v564 = vld [vmem:[%s543 + $0x70] sm:$0xff]
      %v565 = vld [vmem:[%s543 + $0x78] sm:$0xff]
      %v566 = vld [vmem:[%s543 + $0x80] sm:$0xff]
      %v567 = vld [vmem:[%s543 + $0x88] sm:$0xff]
      %v568 = vld [vmem:[%s543 + $0x90] sm:$0xff]
      %v569 = vld [vmem:[%s543 + $0x98] sm:$0xff]
      %v570 = vld [vmem:[%s543 + $0xa0] sm:$0xff]
      %v571 = vld [vmem:[%s543 + $0xa8] sm:$0xff]
      %v572 = vld [vmem:[%s543 + $0xb0] sm:$0xff]
      %v573 = vld [vmem:[%s543 + $0xb8] sm:$0xff]
      %v574 = vld [vmem:[%s543 + $0xc0] sm:$0xff]
      %v575 = vld [vmem:[%s543 + $0xc8] sm:$0xff]
      %v576 = vld [vmem:[%s543 + $0xd0] sm:$0xff]
      %v577 = vld [vmem:[%s543 + $0xd8] sm:$0xff]
      %v578 = vld [vmem:[%s543 + $0xe0] sm:$0xff]
      %v579 = vld [vmem:[%s543 + $0xe8] sm:$0xff]
      %v580 = vld [vmem:[%s543 + $0xf0] sm:$0xff]
      %v581 = vld [vmem:[%s543 + $0xf8] sm:$0xff]
      %v582 = vpack.c.bf16 %v551, %v550
      %v583 = vpack.c.bf16 %v553, %v552
      %v584 = vpack.c.bf16 %v555, %v554
      %v585 = vpack.c.bf16 %v557, %v556
      %v586 = vpack.c.bf16 %v559, %v558
      %v587 = vpack.c.bf16 %v561, %v560
      %v588 = vpack.c.bf16 %v563, %v562
      %v589 = vpack.c.bf16 %v565, %v564
      %v590 = vpack.c.bf16 %v567, %v566
      %v591 = vpack.c.bf16 %v569, %v568
      %v592 = vpack.c.bf16 %v571, %v570
      %v593 = vpack.c.bf16 %v573, %v572
      %v594 = vpack.c.bf16 %v575, %v574
      %v595 = vpack.c.bf16 %v577, %v576
      %v596 = vpack.c.bf16 %v579, %v578
      %v597 = vpack.c.bf16 %v581, %v580
      %v598 = vld [vmem:[%s1] sm:$0xf]
      %v599 = vld [vmem:[%s1 + $0x4] sm:$0xf]
      %v600 = vld [vmem:[%s1 + $0x8] sm:$0xf]
      %v601 = vld [vmem:[%s1 + $0xc] sm:$0xf]
      %v602 = vld [vmem:[%s2] sm:$0x1]
      %v604 = vlaneseq
      %v605 = vshrl.u32 %v604, 7
      %v606 = vsub.s32 0, %v605
      %v607 = vrot.slane %v602, %v606
      %v613 = vunpack.c.l.b16 %v598
      %v614 = vunpack.c.l.b16 %v599
      %v615 = vunpack.c.l.b16 %v600
      %v616 = vunpack.c.l.b16 %v601
      %v617 = vpack.c.b16 %v614, %v613
      %v618 = vpack.c.b16 %v616, %v615
      %vm621 = vcmask 261120
      %v623 = vsel %vm621, %v582, 0
      %v626 = vsel %vm621, %v583, 0
      %v629 = vsel %vm621, %v584, 0
      %v632 = vsel %vm621, %v585, 0
      %v635 = vsel %vm621, %v586, 0
      %v638 = vsel %vm621, %v587, 0
      %v641 = vsel %vm621, %v588, 0
      %v644 = vsel %vm621, %v589, 0
      %v647 = vsel %vm621, %v590, 0
      %v650 = vsel %vm621, %v591, 0
      %v653 = vsel %vm621, %v592, 0
      %v656 = vsel %vm621, %v593, 0
      %v659 = vsel %vm621, %v594, 0
      %v662 = vsel %vm621, %v595, 0
      %v665 = vsel %vm621, %v596, 0
      %v668 = vsel %vm621, %v597, 0
      %670 = vmatprep.subr.bf16.mxu0 0
      %671 = vmatpush1.bf16.msra.mxu0 0
      %672 = vmatprep.subr.bf16.mxu0 0
      %673 = vmatpush1.bf16.msra.mxu0 0
      %674 = vmatprep.subr.bf16.mxu0 0
      %675 = vmatpush1.bf16.msra.mxu0 0
      %676 = vmatprep.subr.bf16.mxu0 0
      %677 = vmatpush1.bf16.msra.mxu0 0
      %678 = vmatprep.subr.bf16.mxu0 0
      %679 = vmatpush1.bf16.msra.mxu0 0
      %680 = vmatprep.subr.bf16.mxu0 0
      %681 = vmatpush1.bf16.msra.mxu0 0
      %682 = vmatprep.subr.bf16.mxu0 0
      %683 = vmatpush1.bf16.msra.mxu0 %v618
      %684 = vmatprep.subr.bf16.mxu0 0
      %685 = vmatpush1.bf16.msra.mxu0 %v617
      %686 = vmatprep.subr.bf16.mxu0 0
      %687 = vmatpush2.bf16.msra.mxu0 0
      %688 = vmatprep.subr.bf16.mxu0 0
      %689 = vmatpush2.bf16.msra.mxu0 0
      %690 = vmatprep.subr.bf16.mxu0 0
      %691 = vmatpush2.bf16.msra.mxu0 0
      %692 = vmatprep.subr.bf16.mxu0 0
      %693 = vmatpush2.bf16.msra.mxu0 0
      %694 = vmatprep.subr.bf16.mxu0 0
      %695 = vmatpush2.bf16.msra.mxu0 0
      %696 = vmatprep.subr.bf16.mxu0 0
      %697 = vmatpush2.bf16.msra.mxu0 0
      %698 = vmatprep.subr.bf16.mxu0 0
      %699 = vmatpush2.bf16.msra.mxu0 0
      %700 = vmatprep.subr.bf16.mxu0 0
      %701 = vmatpush2.bf16.msra.mxu0 0
      %702 = vmatprep.mubr.bf16.mxu0 0
      %703 = vmatmul.mubr.bf16.gmra.mxu0 %v623
      %v704 = vpop.f32.mrf.mxu0
      %v705 = vadd.f32 %v607, %v704
      %v706 = vpop.f32.mrf.mxu0
      %v707 = vpop.f32.mrf.mxu0
      %v708 = vadd.f32 %v607, %v707
      %v709 = vpop.f32.mrf.mxu0
      %710 = vmatprep.mubr.bf16.mxu0 0
      %711 = vmatmul.mubr.bf16.gmra.mxu0 %v626
      %v712 = vpop.f32.mrf.mxu0
      %v713 = vadd.f32 %v607, %v712
      %v714 = vpop.f32.mrf.mxu0
      %v715 = vpop.f32.mrf.mxu0
      %v716 = vadd.f32 %v607, %v715
      %v717 = vpop.f32.mrf.mxu0
      %718 = vmatprep.mubr.bf16.mxu0 0
      %719 = vmatmul.mubr.bf16.gmra.mxu0 %v629
      %v720 = vpop.f32.mrf.mxu0
      %v721 = vadd.f32 %v607, %v720
      %v722 = vpop.f32.mrf.mxu0
      %v723 = vpop.f32.mrf.mxu0
      %v724 = vadd.f32 %v607, %v723
      %v725 = vpop.f32.mrf.mxu0
      %726 = vmatprep.mubr.bf16.mxu0 0
      %727 = vmatmul.mubr.bf16.gmra.mxu0 %v632
      %v728 = vpop.f32.mrf.mxu0
      %v729 = vadd.f32 %v607, %v728
      %v730 = vpop.f32.mrf.mxu0
      %v731 = vpop.f32.mrf.mxu0
      %v732 = vadd.f32 %v607, %v731
      %v733 = vpop.f32.mrf.mxu0
      %734 = vmatprep.mubr.bf16.mxu0 0
      %735 = vmatmul.mubr.bf16.gmra.mxu0 %v635
      %v736 = vpop.f32.mrf.mxu0
      %v737 = vadd.f32 %v607, %v736
      %v738 = vpop.f32.mrf.mxu0
      %v739 = vpop.f32.mrf.mxu0
      %v740 = vadd.f32 %v607, %v739
      %v741 = vpop.f32.mrf.mxu0
      %742 = vmatprep.mubr.bf16.mxu0 0
      %743 = vmatmul.mubr.bf16.gmra.mxu0 %v638
      %v744 = vpop.f32.mrf.mxu0
      %v745 = vadd.f32 %v607, %v744
      %v746 = vpop.f32.mrf.mxu0
      %v747 = vpop.f32.mrf.mxu0
      %v748 = vadd.f32 %v607, %v747
      %v749 = vpop.f32.mrf.mxu0
      %750 = vmatprep.mubr.bf16.mxu0 0
      %751 = vmatmul.mubr.bf16.gmra.mxu0 %v641
      %v752 = vpop.f32.mrf.mxu0
      %v753 = vadd.f32 %v607, %v752
      %v754 = vpop.f32.mrf.mxu0
      %v755 = vpop.f32.mrf.mxu0
      %v756 = vadd.f32 %v607, %v755
      %v757 = vpop.f32.mrf.mxu0
      %758 = vmatprep.mubr.bf16.mxu0 0
      %759 = vmatmul.mubr.bf16.gmra.mxu0 %v644
      %v760 = vpop.f32.mrf.mxu0
      %v761 = vadd.f32 %v607, %v760
      %v762 = vpop.f32.mrf.mxu0
      %v763 = vpop.f32.mrf.mxu0
      %v764 = vadd.f32 %v607, %v763
      %v765 = vpop.f32.mrf.mxu0
      %766 = vmatprep.mubr.bf16.mxu0 0
      %767 = vmatmul.mubr.bf16.gmra.mxu0 %v647
      %v768 = vpop.f32.mrf.mxu0
      %v769 = vadd.f32 %v607, %v768
      %v770 = vpop.f32.mrf.mxu0
      %v771 = vpop.f32.mrf.mxu0
      %v772 = vadd.f32 %v607, %v771
      %v773 = vpop.f32.mrf.mxu0
      %774 = vmatprep.mubr.bf16.mxu0 0
      %775 = vmatmul.mubr.bf16.gmra.mxu0 %v650
      %v776 = vpop.f32.mrf.mxu0
      %v777 = vadd.f32 %v607, %v776
      %v778 = vpop.f32.mrf.mxu0
      %v779 = vpop.f32.mrf.mxu0
      %v780 = vadd.f32 %v607, %v779
      %v781 = vpop.f32.mrf.mxu0
      %782 = vmatprep.mubr.bf16.mxu0 0
      %783 = vmatmul.mubr.bf16.gmra.mxu0 %v653
      %v784 = vpop.f32.mrf.mxu0
      %v785 = vadd.f32 %v607, %v784
      %v786 = vpop.f32.mrf.mxu0
      %v787 = vpop.f32.mrf.mxu0
      %v788 = vadd.f32 %v607, %v787
      %v789 = vpop.f32.mrf.mxu0
      %790 = vmatprep.mubr.bf16.mxu0 0
      %791 = vmatmul.mubr.bf16.gmra.mxu0 %v656
      %v792 = vpop.f32.mrf.mxu0
      %v793 = vadd.f32 %v607, %v792
      %v794 = vpop.f32.mrf.mxu0
      %v795 = vpop.f32.mrf.mxu0
      %v796 = vadd.f32 %v607, %v795
      %v797 = vpop.f32.mrf.mxu0
      %798 = vmatprep.mubr.bf16.mxu0 0
      %799 = vmatmul.mubr.bf16.gmra.mxu0 %v659
      %v800 = vpop.f32.mrf.mxu0
      %v801 = vadd.f32 %v607, %v800
      %v802 = vpop.f32.mrf.mxu0
      %v803 = vpop.f32.mrf.mxu0
      %v804 = vadd.f32 %v607, %v803
      %v805 = vpop.f32.mrf.mxu0
      %806 = vmatprep.mubr.bf16.mxu0 0
      %807 = vmatmul.mubr.bf16.gmra.mxu0 %v662
      %v808 = vpop.f32.mrf.mxu0
      %v809 = vadd.f32 %v607, %v808
      %v810 = vpop.f32.mrf.mxu0
      %v811 = vpop.f32.mrf.mxu0
      %v812 = vadd.f32 %v607, %v811
      %v813 = vpop.f32.mrf.mxu0
      %814 = vmatprep.mubr.bf16.mxu0 0
      %815 = vmatmul.mubr.bf16.gmra.mxu0 %v665
      %v816 = vpop.f32.mrf.mxu0
      %v817 = vadd.f32 %v607, %v816
      %v818 = vpop.f32.mrf.mxu0
      %v819 = vpop.f32.mrf.mxu0
      %v820 = vadd.f32 %v607, %v819
      %v821 = vpop.f32.mrf.mxu0
      %822 = vmatprep.mubr.bf16.mxu0 0
      %823 = vmatmul.mubr.bf16.gmra.mxu0 %v668
      %v824 = vpop.f32.mrf.mxu0
      %v825 = vadd.f32 %v607, %v824
      %v826 = vpop.f32.mrf.mxu0
      %v827 = vpop.f32.mrf.mxu0
      %v828 = vadd.f32 %v607, %v827
      %v829 = vpop.f32.mrf.mxu0
      %830 = vdwg.mxu0
      %v831 = vld [vmem:[%s3] sm:$0xff]
      %v832 = vld [vmem:[%s3 + $0x8] sm:$0x1]
      %v833 = vld [vmem:[%s4] sm:$0x1]
      %v834 = vlaneseq
      %v835 = vshrl.u32 %v834, 7
      %v836 = vadd.s32 %v835, 8
      %v837 = vlaneseq
      %v838 = vshrl.u32 %v837, 7
      %v839 = vsub.s32 0, %v838
      %v840 = vrot.slane %v831, %v839
      %v841 = vmul.f32 %v840, 0.0
      %v842 = vlaneseq
      %v843 = vshrl.u32 %v842, 7
      %v844 = vsub.s32 3, %v843
      %v845 = vrot.slane %v831, %v844
      %v846 = vmul.f32 %v845, %v705
      %v847 = vmul.f32 %v845, %v708
      %v848 = vadd.f32 %v841, %v846
      %v849 = vadd.f32 %v841, %v847
      %v850 = vlaneseq
      %v851 = vshrl.u32 %v850, 7
      %v852 = vsub.s32 6, %v851
      %v853 = vrot.slane %v831, %v852
      %v854 = vmul.f32 %v853, %v713
      %v855 = vmul.f32 %v853, %v716
      %v856 = vadd.f32 %v848, %v854
      %v857 = vadd.f32 %v849, %v855
      %v858 = vlaneseq
      %v859 = vshrl.u32 %v858, 7
      %v860 = vsub.s32 1, %v859
      %v861 = vrot.slane %v831, %v860
      %v862 = vmul.f32 %v861, 0.0
      %v863 = vlaneseq
      %v864 = vshrl.u32 %v863, 7
      %v865 = vsub.s32 4, %v864
      %v866 = vrot.slane %v831, %v865
      %v867 = vmul.f32 %v866, %v705
      %v868 = vmul.f32 %v866, %v708
      %v869 = vadd.f32 %v862, %v867
      %v870 = vadd.f32 %v862, %v868
      %v871 = vlaneseq
      %v872 = vshrl.u32 %v871, 7
      %v873 = vsub.s32 7, %v872
      %v874 = vrot.slane %v831, %v873
      %v875 = vmul.f32 %v874, %v713
      %v876 = vmul.f32 %v874, %v716
      %v877 = vadd.f32 %v869, %v875
      %v878 = vadd.f32 %v870, %v876
      %v879 = vlaneseq
      %v880 = vshrl.u32 %v879, 7
      %v881 = vsub.s32 2, %v880
      %v882 = vrot.slane %v831, %v881
      %v883 = vmul.f32 %v882, 0.0
      %v884 = vlaneseq
      %v885 = vshrl.u32 %v884, 7
      %v886 = vsub.s32 5, %v885
      %v887 = vrot.slane %v831, %v886
      %v888 = vmul.f32 %v887, %v705
      %v889 = vmul.f32 %v887, %v708
      %v890 = vadd.f32 %v883, %v888
      %v891 = vadd.f32 %v883, %v889
      %v892 = vlaneseq
      %v893 = vshrl.u32 %v892, 7
      %v894 = vsub.s32 0, %v893
      %v895 = vrot.slane %v832, %v894
      %v896 = vmul.f32 %v895, %v713
      %v897 = vmul.f32 %v895, %v716
      %v898 = vadd.f32 %v890, %v896
      %v899 = vadd.f32 %v891, %v897
      %vm900 = vcmp.gt.s32.totalorder %v835, 0
      %vm901 = vcmp.gt.s32.totalorder %v836, 0
      %v902 = vrot.slane %v856, 7
      %v903 = vrot.slane %v857, 7
      %vm904 = vcmp.lt.s32.totalorder %v835, 1
      %v905 = vsel %vm904, %v902, %v903
      %v906 = vsel %vm904, %v903, %v902
      %v907 = vsel %vm900, 1, 0
      %v908 = vsel %vm901, 1, 0
      %vm909 = vcmp.eq.s32.totalorder %v907, 1
      %vm910 = vcmp.eq.s32.totalorder %v908, 1
      %v911 = vsel %vm909, %v906, 0.0
      %v912 = vsel %vm910, %v905, 0.0
      %v913 = vadd.f32 %v877, %v911
      %v914 = vadd.f32 %v878, %v912
      %vm915 = vcmp.lt.s32.totalorder %v835, 15
      %vm916 = vcmp.lt.s32.totalorder %v836, 15
      %v917 = vrot.slane %v898, 1
      %v918 = vrot.slane %v899, 1
      %vm919 = vcmp.lt.s32.totalorder %v835, 7
      %v920 = vsel %vm919, %v917, %v918
      %v921 = vsel %vm919, %v918, %v917
      %v922 = vsel %vm915, 1, 0
      %v923 = vsel %vm916, 1, 0
      %vm924 = vcmp.eq.s32.totalorder %v922, 1
      %vm925 = vcmp.eq.s32.totalorder %v923, 1
      %v926 = vsel %vm924, %v920, 0.0
      %v927 = vsel %vm925, %v921, 0.0
      %v928 = vadd.f32 %v913, %v926
      %v929 = vadd.f32 %v914, %v927
      %v931 = vlaneseq
      %v932 = vshrl.u32 %v931, 7
      %v933 = vsub.s32 0, %v932
      %v934 = vrot.slane %v833, %v933
      %v936 = vadd.f32 %v928, %v934
      %v937 = vadd.f32 %v929, %v934
      %v938 = vmax.f32 %v936, 0.0
      %v939 = vmax.f32 %v937, 0.0
      %v940 = vmin.f32 %v938, 6.0
      %v941 = vmin.f32 %v939, 6.0
      %v942 = vpack.c.bf16 %v941, %v940
      %v943 = vmul.f32 %v840, %v705
      %v944 = vmul.f32 %v840, %v708
      %v945 = vmul.f32 %v845, %v713
      %v946 = vmul.f32 %v845, %v716
      %v947 = vadd.f32 %v943, %v945
      %v948 = vadd.f32 %v944, %v946
      %v949 = vmul.f32 %v853, %v721
      %v950 = vmul.f32 %v853, %v724
      %v951 = vadd.f32 %v947, %v949
      %v952 = vadd.f32 %v948, %v950
      %v953 = vmul.f32 %v861, %v705
      %v954 = vmul.f32 %v861, %v708
      %v955 = vmul.f32 %v866, %v713
      %v956 = vmul.f32 %v866, %v716
      %v957 = vadd.f32 %v953, %v955
      %v958 = vadd.f32 %v954, %v956
      %v959 = vmul.f32 %v874, %v721
      %v960 = vmul.f32 %v874, %v724
      %v961 = vadd.f32 %v957, %v959
      %v962 = vadd.f32 %v958, %v960
      %v963 = vmul.f32 %v882, %v705
      %v964 = vmul.f32 %v882, %v708
      %v965 = vmul.f32 %v887, %v713
      %v966 = vmul.f32 %v887, %v716
      %v967 = vadd.f32 %v963, %v965
      %v968 = vadd.f32 %v964, %v966
      %v969 = vmul.f32 %v895, %v721
      %v970 = vmul.f32 %v895, %v724
      %v971 = vadd.f32 %v967, %v969
      %v972 = vadd.f32 %v968, %v970
      %v973 = vrot.slane %v951, 7
      %v974 = vrot.slane %v952, 7
      %v975 = vsel %vm904, %v973, %v974
      %v976 = vsel %vm904, %v974, %v973
      %v977 = vsel %vm909, %v976, 0.0
      %v978 = vsel %vm910, %v975, 0.0
      %v979 = vadd.f32 %v961, %v977
      %v980 = vadd.f32 %v962, %v978
      %v981 = vrot.slane %v971, 1
      %v982 = vrot.slane %v972, 1
      %v983 = vsel %vm919, %v981, %v982
      %v984 = vsel %vm919, %v982, %v981
      %v985 = vsel %vm924, %v983, 0.0
      %v986 = vsel %vm925, %v984, 0.0
      %v987 = vadd.f32 %v979, %v985
      %v988 = vadd.f32 %v980, %v986
      %v989 = vadd.f32 %v987, %v934
      %v990 = vadd.f32 %v988, %v934
      %v991 = vmax.f32 %v989, 0.0
      %v992 = vmax.f32 %v990, 0.0
      %v993 = vmin.f32 %v991, 6.0
      %v994 = vmin.f32 %v992, 6.0
      %v995 = vpack.c.bf16 %v994, %v993
      %v996 = vmul.f32 %v840, %v713
      %v997 = vmul.f32 %v840, %v716
      %v998 = vmul.f32 %v845, %v721
      %v999 = vmul.f32 %v845, %v724
      %v1000 = vadd.f32 %v996, %v998
      %v1001 = vadd.f32 %v997, %v999
      %v1002 = vmul.f32 %v853, %v729
      %v1003 = vmul.f32 %v853, %v732
      %v1004 = vadd.f32 %v1000, %v1002
      %v1005 = vadd.f32 %v1001, %v1003
      %v1006 = vmul.f32 %v861, %v713
      %v1007 = vmul.f32 %v861, %v716
      %v1008 = vmul.f32 %v866, %v721
      %v1009 = vmul.f32 %v866, %v724
      %v1010 = vadd.f32 %v1006, %v1008
      %v1011 = vadd.f32 %v1007, %v1009
      %v1012 = vmul.f32 %v874, %v729
      %v1013 = vmul.f32 %v874, %v732
      %v1014 = vadd.f32 %v1010, %v1012
      %v1015 = vadd.f32 %v1011, %v1013
      %v1016 = vmul.f32 %v882, %v713
      %v1017 = vmul.f32 %v882, %v716
      %v1018 = vmul.f32 %v887, %v721
      %v1019 = vmul.f32 %v887, %v724
      %v1020 = vadd.f32 %v1016, %v1018
      %v1021 = vadd.f32 %v1017, %v1019
      %v1022 = vmul.f32 %v895, %v729
      %v1023 = vmul.f32 %v895, %v732
      %v1024 = vadd.f32 %v1020, %v1022
      %v1025 = vadd.f32 %v1021, %v1023
      %v1026 = vrot.slane %v1004, 7
      %v1027 = vrot.slane %v1005, 7
      %v1028 = vsel %vm904, %v1026, %v1027
      %v1029 = vsel %vm904, %v1027, %v1026
      %v1030 = vsel %vm909, %v1029, 0.0
      %v1031 = vsel %vm910, %v1028, 0.0
      %v1032 = vadd.f32 %v1014, %v1030
      %v1033 = vadd.f32 %v1015, %v1031
      %v1034 = vrot.slane %v1024, 1
      %v1035 = vrot.slane %v1025, 1
      %v1036 = vsel %vm919, %v1034, %v1035
      %v1037 = vsel %vm919, %v1035, %v1034
      %v1038 = vsel %vm924, %v1036, 0.0
      %v1039 = vsel %vm925, %v1037, 0.0
      %v1040 = vadd.f32 %v1032, %v1038
      %v1041 = vadd.f32 %v1033, %v1039
      %v1042 = vadd.f32 %v1040, %v934
      %v1043 = vadd.f32 %v1041, %v934
      %v1044 = vmax.f32 %v1042, 0.0
      %v1045 = vmax.f32 %v1043, 0.0
      %v1046 = vmin.f32 %v1044, 6.0
      %v1047 = vmin.f32 %v1045, 6.0
      %v1048 = vpack.c.bf16 %v1047, %v1046
      %v1049 = vmul.f32 %v840, %v721
      %v1050 = vmul.f32 %v840, %v724
      %v1051 = vmul.f32 %v845, %v729
      %v1052 = vmul.f32 %v845, %v732
      %v1053 = vadd.f32 %v1049, %v1051
      %v1054 = vadd.f32 %v1050, %v1052
      %v1055 = vmul.f32 %v853, %v737
      %v1056 = vmul.f32 %v853, %v740
      %v1057 = vadd.f32 %v1053, %v1055
      %v1058 = vadd.f32 %v1054, %v1056
      %v1059 = vmul.f32 %v861, %v721
      %v1060 = vmul.f32 %v861, %v724
      %v1061 = vmul.f32 %v866, %v729
      %v1062 = vmul.f32 %v866, %v732
      %v1063 = vadd.f32 %v1059, %v1061
      %v1064 = vadd.f32 %v1060, %v1062
      %v1065 = vmul.f32 %v874, %v737
      %v1066 = vmul.f32 %v874, %v740
      %v1067 = vadd.f32 %v1063, %v1065
      %v1068 = vadd.f32 %v1064, %v1066
      %v1069 = vmul.f32 %v882, %v721
      %v1070 = vmul.f32 %v882, %v724
      %v1071 = vmul.f32 %v887, %v729
      %v1072 = vmul.f32 %v887, %v732
      %v1073 = vadd.f32 %v1069, %v1071
      %v1074 = vadd.f32 %v1070, %v1072
      %v1075 = vmul.f32 %v895, %v737
      %v1076 = vmul.f32 %v895, %v740
      %v1077 = vadd.f32 %v1073, %v1075
      %v1078 = vadd.f32 %v1074, %v1076
      %v1079 = vrot.slane %v1057, 7
      %v1080 = vrot.slane %v1058, 7
      %v1081 = vsel %vm904, %v1079, %v1080
      %v1082 = vsel %vm904, %v1080, %v1079
      %v1083 = vsel %vm909, %v1082, 0.0
      %v1084 = vsel %vm910, %v1081, 0.0
      %v1085 = vadd.f32 %v1067, %v1083
      %v1086 = vadd.f32 %v1068, %v1084
      %v1087 = vrot.slane %v1077, 1
      %v1088 = vrot.slane %v1078, 1
      %v1089 = vsel %vm919, %v1087, %v1088
      %v1090 = vsel %vm919, %v1088, %v1087
      %v1091 = vsel %vm924, %v1089, 0.0
      %v1092 = vsel %vm925, %v1090, 0.0
      %v1093 = vadd.f32 %v1085, %v1091
      %v1094 = vadd.f32 %v1086, %v1092
      %v1095 = vadd.f32 %v1093, %v934
      %v1096 = vadd.f32 %v1094, %v934
      %v1097 = vmax.f32 %v1095, 0.0
      %v1098 = vmax.f32 %v1096, 0.0
      %v1099 = vmin.f32 %v1097, 6.0
      %v1100 = vmin.f32 %v1098, 6.0
      %v1101 = vpack.c.bf16 %v1100, %v1099
      %v1102 = vmul.f32 %v840, %v729
      %v1103 = vmul.f32 %v840, %v732
      %v1104 = vmul.f32 %v845, %v737
      %v1105 = vmul.f32 %v845, %v740
      %v1106 = vadd.f32 %v1102, %v1104
      %v1107 = vadd.f32 %v1103, %v1105
      %v1108 = vmul.f32 %v853, %v745
      %v1109 = vmul.f32 %v853, %v748
      %v1110 = vadd.f32 %v1106, %v1108
      %v1111 = vadd.f32 %v1107, %v1109
      %v1112 = vmul.f32 %v861, %v729
      %v1113 = vmul.f32 %v861, %v732
      %v1114 = vmul.f32 %v866, %v737
      %v1115 = vmul.f32 %v866, %v740
      %v1116 = vadd.f32 %v1112, %v1114
      %v1117 = vadd.f32 %v1113, %v1115
      %v1118 = vmul.f32 %v874, %v745
      %v1119 = vmul.f32 %v874, %v748
      %v1120 = vadd.f32 %v1116, %v1118
      %v1121 = vadd.f32 %v1117, %v1119
      %v1122 = vmul.f32 %v882, %v729
      %v1123 = vmul.f32 %v882, %v732
      %v1124 = vmul.f32 %v887, %v737
      %v1125 = vmul.f32 %v887, %v740
      %v1126 = vadd.f32 %v1122, %v1124
      %v1127 = vadd.f32 %v1123, %v1125
      %v1128 = vmul.f32 %v895, %v745
      %v1129 = vmul.f32 %v895, %v748
      %v1130 = vadd.f32 %v1126, %v1128
      %v1131 = vadd.f32 %v1127, %v1129
      %v1132 = vrot.slane %v1110, 7
      %v1133 = vrot.slane %v1111, 7
      %v1134 = vsel %vm904, %v1132, %v1133
      %v1135 = vsel %vm904, %v1133, %v1132
      %v1136 = vsel %vm909, %v1135, 0.0
      %v1137 = vsel %vm910, %v1134, 0.0
      %v1138 = vadd.f32 %v1120, %v1136
      %v1139 = vadd.f32 %v1121, %v1137
      %v1140 = vrot.slane %v1130, 1
      %v1141 = vrot.slane %v1131, 1
      %v1142 = vsel %vm919, %v1140, %v1141
      %v1143 = vsel %vm919, %v1141, %v1140
      %v1144 = vsel %vm924, %v1142, 0.0
      %v1145 = vsel %vm925, %v1143, 0.0
      %v1146 = vadd.f32 %v1138, %v1144
      %v1147 = vadd.f32 %v1139, %v1145
      %v1148 = vadd.f32 %v1146, %v934
      %v1149 = vadd.f32 %v1147, %v934
      %v1150 = vmax.f32 %v1148, 0.0
      %v1151 = vmax.f32 %v1149, 0.0
      %v1152 = vmin.f32 %v1150, 6.0
      %v1153 = vmin.f32 %v1151, 6.0
      %v1154 = vpack.c.bf16 %v1153, %v1152
      %v1155 = vmul.f32 %v840, %v737
      %v1156 = vmul.f32 %v840, %v740
      %v1157 = vmul.f32 %v845, %v745
      %v1158 = vmul.f32 %v845, %v748
      %v1159 = vadd.f32 %v1155, %v1157
      %v1160 = vadd.f32 %v1156, %v1158
      %v1161 = vmul.f32 %v853, %v753
      %v1162 = vmul.f32 %v853, %v756
      %v1163 = vadd.f32 %v1159, %v1161
      %v1164 = vadd.f32 %v1160, %v1162
      %v1165 = vmul.f32 %v861, %v737
      %v1166 = vmul.f32 %v861, %v740
      %v1167 = vmul.f32 %v866, %v745
      %v1168 = vmul.f32 %v866, %v748
      %v1169 = vadd.f32 %v1165, %v1167
      %v1170 = vadd.f32 %v1166, %v1168
      %v1171 = vmul.f32 %v874, %v753
      %v1172 = vmul.f32 %v874, %v756
      %v1173 = vadd.f32 %v1169, %v1171
      %v1174 = vadd.f32 %v1170, %v1172
      %v1175 = vmul.f32 %v882, %v737
      %v1176 = vmul.f32 %v882, %v740
      %v1177 = vmul.f32 %v887, %v745
      %v1178 = vmul.f32 %v887, %v748
      %v1179 = vadd.f32 %v1175, %v1177
      %v1180 = vadd.f32 %v1176, %v1178
      %v1181 = vmul.f32 %v895, %v753
      %v1182 = vmul.f32 %v895, %v756
      %v1183 = vadd.f32 %v1179, %v1181
      %v1184 = vadd.f32 %v1180, %v1182
      %v1185 = vrot.slane %v1163, 7
      %v1186 = vrot.slane %v1164, 7
      %v1187 = vsel %vm904, %v1185, %v1186
      %v1188 = vsel %vm904, %v1186, %v1185
      %v1189 = vsel %vm909, %v1188, 0.0
      %v1190 = vsel %vm910, %v1187, 0.0
      %v1191 = vadd.f32 %v1173, %v1189
      %v1192 = vadd.f32 %v1174, %v1190
      %v1193 = vrot.slane %v1183, 1
      %v1194 = vrot.slane %v1184, 1
      %v1195 = vsel %vm919, %v1193, %v1194
      %v1196 = vsel %vm919, %v1194, %v1193
      %v1197 = vsel %vm924, %v1195, 0.0
      %v1198 = vsel %vm925, %v1196, 0.0
      %v1199 = vadd.f32 %v1191, %v1197
      %v1200 = vadd.f32 %v1192, %v1198
      %v1201 = vadd.f32 %v1199, %v934
      %v1202 = vadd.f32 %v1200, %v934
      %v1203 = vmax.f32 %v1201, 0.0
      %v1204 = vmax.f32 %v1202, 0.0
      %v1205 = vmin.f32 %v1203, 6.0
      %v1206 = vmin.f32 %v1204, 6.0
      %v1207 = vpack.c.bf16 %v1206, %v1205
      %v1208 = vmul.f32 %v840, %v745
      %v1209 = vmul.f32 %v840, %v748
      %v1210 = vmul.f32 %v845, %v753
      %v1211 = vmul.f32 %v845, %v756
      %v1212 = vadd.f32 %v1208, %v1210
      %v1213 = vadd.f32 %v1209, %v1211
      %v1214 = vmul.f32 %v853, %v761
      %v1215 = vmul.f32 %v853, %v764
      %v1216 = vadd.f32 %v1212, %v1214
      %v1217 = vadd.f32 %v1213, %v1215
      %v1218 = vmul.f32 %v861, %v745
      %v1219 = vmul.f32 %v861, %v748
      %v1220 = vmul.f32 %v866, %v753
      %v1221 = vmul.f32 %v866, %v756
      %v1222 = vadd.f32 %v1218, %v1220
      %v1223 = vadd.f32 %v1219, %v1221
      %v1224 = vmul.f32 %v874, %v761
      %v1225 = vmul.f32 %v874, %v764
      %v1226 = vadd.f32 %v1222, %v1224
      %v1227 = vadd.f32 %v1223, %v1225
      %v1228 = vmul.f32 %v882, %v745
      %v1229 = vmul.f32 %v882, %v748
      %v1230 = vmul.f32 %v887, %v753
      %v1231 = vmul.f32 %v887, %v756
      %v1232 = vadd.f32 %v1228, %v1230
      %v1233 = vadd.f32 %v1229, %v1231
      %v1234 = vmul.f32 %v895, %v761
      %v1235 = vmul.f32 %v895, %v764
      %v1236 = vadd.f32 %v1232, %v1234
      %v1237 = vadd.f32 %v1233, %v1235
      %v1238 = vrot.slane %v1216, 7
      %v1239 = vrot.slane %v1217, 7
      %v1240 = vsel %vm904, %v1238, %v1239
      %v1241 = vsel %vm904, %v1239, %v1238
      %v1242 = vsel %vm909, %v1241, 0.0
      %v1243 = vsel %vm910, %v1240, 0.0
      %v1244 = vadd.f32 %v1226, %v1242
      %v1245 = vadd.f32 %v1227, %v1243
      %v1246 = vrot.slane %v1236, 1
      %v1247 = vrot.slane %v1237, 1
      %v1248 = vsel %vm919, %v1246, %v1247
      %v1249 = vsel %vm919, %v1247, %v1246
      %v1250 = vsel %vm924, %v1248, 0.0
      %v1251 = vsel %vm925, %v1249, 0.0
      %v1252 = vadd.f32 %v1244, %v1250
      %v1253 = vadd.f32 %v1245, %v1251
      %v1254 = vadd.f32 %v1252, %v934
      %v1255 = vadd.f32 %v1253, %v934
      %v1256 = vmax.f32 %v1254, 0.0
      %v1257 = vmax.f32 %v1255, 0.0
      %v1258 = vmin.f32 %v1256, 6.0
      %v1259 = vmin.f32 %v1257, 6.0
      %v1260 = vpack.c.bf16 %v1259, %v1258
      %v1261 = vmul.f32 %v840, %v753
      %v1262 = vmul.f32 %v840, %v756
      %v1263 = vmul.f32 %v845, %v761
      %v1264 = vmul.f32 %v845, %v764
      %v1265 = vadd.f32 %v1261, %v1263
      %v1266 = vadd.f32 %v1262, %v1264
      %v1267 = vmul.f32 %v853, %v769
      %v1268 = vmul.f32 %v853, %v772
      %v1269 = vadd.f32 %v1265, %v1267
      %v1270 = vadd.f32 %v1266, %v1268
      %v1271 = vmul.f32 %v861, %v753
      %v1272 = vmul.f32 %v861, %v756
      %v1273 = vmul.f32 %v866, %v761
      %v1274 = vmul.f32 %v866, %v764
      %v1275 = vadd.f32 %v1271, %v1273
      %v1276 = vadd.f32 %v1272, %v1274
      %v1277 = vmul.f32 %v874, %v769
      %v1278 = vmul.f32 %v874, %v772
      %v1279 = vadd.f32 %v1275, %v1277
      %v1280 = vadd.f32 %v1276, %v1278
      %v1281 = vmul.f32 %v882, %v753
      %v1282 = vmul.f32 %v882, %v756
      %v1283 = vmul.f32 %v887, %v761
      %v1284 = vmul.f32 %v887, %v764
      %v1285 = vadd.f32 %v1281, %v1283
      %v1286 = vadd.f32 %v1282, %v1284
      %v1287 = vmul.f32 %v895, %v769
      %v1288 = vmul.f32 %v895, %v772
      %v1289 = vadd.f32 %v1285, %v1287
      %v1290 = vadd.f32 %v1286, %v1288
      %v1291 = vrot.slane %v1269, 7
      %v1292 = vrot.slane %v1270, 7
      %v1293 = vsel %vm904, %v1291, %v1292
      %v1294 = vsel %vm904, %v1292, %v1291
      %v1295 = vsel %vm909, %v1294, 0.0
      %v1296 = vsel %vm910, %v1293, 0.0
      %v1297 = vadd.f32 %v1279, %v1295
      %v1298 = vadd.f32 %v1280, %v1296
      %v1299 = vrot.slane %v1289, 1
      %v1300 = vrot.slane %v1290, 1
      %v1301 = vsel %vm919, %v1299, %v1300
      %v1302 = vsel %vm919, %v1300, %v1299
      %v1303 = vsel %vm924, %v1301, 0.0
      %v1304 = vsel %vm925, %v1302, 0.0
      %v1305 = vadd.f32 %v1297, %v1303
      %v1306 = vadd.f32 %v1298, %v1304
      %v1307 = vadd.f32 %v1305, %v934
      %v1308 = vadd.f32 %v1306, %v934
      %v1309 = vmax.f32 %v1307, 0.0
      %v1310 = vmax.f32 %v1308, 0.0
      %v1311 = vmin.f32 %v1309, 6.0
      %v1312 = vmin.f32 %v1310, 6.0
      %v1313 = vpack.c.bf16 %v1312, %v1311
      %v1314 = vmul.f32 %v840, %v761
      %v1315 = vmul.f32 %v840, %v764
      %v1316 = vmul.f32 %v845, %v769
      %v1317 = vmul.f32 %v845, %v772
      %v1318 = vadd.f32 %v1314, %v1316
      %v1319 = vadd.f32 %v1315, %v1317
      %v1320 = vmul.f32 %v853, %v777
      %v1321 = vmul.f32 %v853, %v780
      %v1322 = vadd.f32 %v1318, %v1320
      %v1323 = vadd.f32 %v1319, %v1321
      %v1324 = vmul.f32 %v861, %v761
      %v1325 = vmul.f32 %v861, %v764
      %v1326 = vmul.f32 %v866, %v769
      %v1327 = vmul.f32 %v866, %v772
      %v1328 = vadd.f32 %v1324, %v1326
      %v1329 = vadd.f32 %v1325, %v1327
      %v1330 = vmul.f32 %v874, %v777
      %v1331 = vmul.f32 %v874, %v780
      %v1332 = vadd.f32 %v1328, %v1330
      %v1333 = vadd.f32 %v1329, %v1331
      %v1334 = vmul.f32 %v882, %v761
      %v1335 = vmul.f32 %v882, %v764
      %v1336 = vmul.f32 %v887, %v769
      %v1337 = vmul.f32 %v887, %v772
      %v1338 = vadd.f32 %v1334, %v1336
      %v1339 = vadd.f32 %v1335, %v1337
      %v1340 = vmul.f32 %v895, %v777
      %v1341 = vmul.f32 %v895, %v780
      %v1342 = vadd.f32 %v1338, %v1340
      %v1343 = vadd.f32 %v1339, %v1341
      %v1344 = vrot.slane %v1322, 7
      %v1345 = vrot.slane %v1323, 7
      %v1346 = vsel %vm904, %v1344, %v1345
      %v1347 = vsel %vm904, %v1345, %v1344
      %v1348 = vsel %vm909, %v1347, 0.0
      %v1349 = vsel %vm910, %v1346, 0.0
      %v1350 = vadd.f32 %v1332, %v1348
      %v1351 = vadd.f32 %v1333, %v1349
      %v1352 = vrot.slane %v1342, 1
      %v1353 = vrot.slane %v1343, 1
      %v1354 = vsel %vm919, %v1352, %v1353
      %v1355 = vsel %vm919, %v1353, %v1352
      %v1356 = vsel %vm924, %v1354, 0.0
      %v1357 = vsel %vm925, %v1355, 0.0
      %v1358 = vadd.f32 %v1350, %v1356
      %v1359 = vadd.f32 %v1351, %v1357
      %v1360 = vadd.f32 %v1358, %v934
      %v1361 = vadd.f32 %v1359, %v934
      %v1362 = vmax.f32 %v1360, 0.0
      %v1363 = vmax.f32 %v1361, 0.0
      %v1364 = vmin.f32 %v1362, 6.0
      %v1365 = vmin.f32 %v1363, 6.0
      %v1366 = vpack.c.bf16 %v1365, %v1364
      %v1367 = vmul.f32 %v840, %v769
      %v1368 = vmul.f32 %v840, %v772
      %v1369 = vmul.f32 %v845, %v777
      %v1370 = vmul.f32 %v845, %v780
      %v1371 = vadd.f32 %v1367, %v1369
      %v1372 = vadd.f32 %v1368, %v1370
      %v1373 = vmul.f32 %v853, %v785
      %v1374 = vmul.f32 %v853, %v788
      %v1375 = vadd.f32 %v1371, %v1373
      %v1376 = vadd.f32 %v1372, %v1374
      %v1377 = vmul.f32 %v861, %v769
      %v1378 = vmul.f32 %v861, %v772
      %v1379 = vmul.f32 %v866, %v777
      %v1380 = vmul.f32 %v866, %v780
      %v1381 = vadd.f32 %v1377, %v1379
      %v1382 = vadd.f32 %v1378, %v1380
      %v1383 = vmul.f32 %v874, %v785
      %v1384 = vmul.f32 %v874, %v788
      %v1385 = vadd.f32 %v1381, %v1383
      %v1386 = vadd.f32 %v1382, %v1384
      %v1387 = vmul.f32 %v882, %v769
      %v1388 = vmul.f32 %v882, %v772
      %v1389 = vmul.f32 %v887, %v777
      %v1390 = vmul.f32 %v887, %v780
      %v1391 = vadd.f32 %v1387, %v1389
      %v1392 = vadd.f32 %v1388, %v1390
      %v1393 = vmul.f32 %v895, %v785
      %v1394 = vmul.f32 %v895, %v788
      %v1395 = vadd.f32 %v1391, %v1393
      %v1396 = vadd.f32 %v1392, %v1394
      %v1397 = vrot.slane %v1375, 7
      %v1398 = vrot.slane %v1376, 7
      %v1399 = vsel %vm904, %v1397, %v1398
      %v1400 = vsel %vm904, %v1398, %v1397
      %v1401 = vsel %vm909, %v1400, 0.0
      %v1402 = vsel %vm910, %v1399, 0.0
      %v1403 = vadd.f32 %v1385, %v1401
      %v1404 = vadd.f32 %v1386, %v1402
      %v1405 = vrot.slane %v1395, 1
      %v1406 = vrot.slane %v1396, 1
      %v1407 = vsel %vm919, %v1405, %v1406
      %v1408 = vsel %vm919, %v1406, %v1405
      %v1409 = vsel %vm924, %v1407, 0.0
      %v1410 = vsel %vm925, %v1408, 0.0
      %v1411 = vadd.f32 %v1403, %v1409
      %v1412 = vadd.f32 %v1404, %v1410
      %v1413 = vadd.f32 %v1411, %v934
      %v1414 = vadd.f32 %v1412, %v934
      %v1415 = vmax.f32 %v1413, 0.0
      %v1416 = vmax.f32 %v1414, 0.0
      %v1417 = vmin.f32 %v1415, 6.0
      %v1418 = vmin.f32 %v1416, 6.0
      %v1419 = vpack.c.bf16 %v1418, %v1417
      %v1420 = vmul.f32 %v840, %v777
      %v1421 = vmul.f32 %v840, %v780
      %v1422 = vmul.f32 %v845, %v785
      %v1423 = vmul.f32 %v845, %v788
      %v1424 = vadd.f32 %v1420, %v1422
      %v1425 = vadd.f32 %v1421, %v1423
      %v1426 = vmul.f32 %v853, %v793
      %v1427 = vmul.f32 %v853, %v796
      %v1428 = vadd.f32 %v1424, %v1426
      %v1429 = vadd.f32 %v1425, %v1427
      %v1430 = vmul.f32 %v861, %v777
      %v1431 = vmul.f32 %v861, %v780
      %v1432 = vmul.f32 %v866, %v785
      %v1433 = vmul.f32 %v866, %v788
      %v1434 = vadd.f32 %v1430, %v1432
      %v1435 = vadd.f32 %v1431, %v1433
      %v1436 = vmul.f32 %v874, %v793
      %v1437 = vmul.f32 %v874, %v796
      %v1438 = vadd.f32 %v1434, %v1436
      %v1439 = vadd.f32 %v1435, %v1437
      %v1440 = vmul.f32 %v882, %v777
      %v1441 = vmul.f32 %v882, %v780
      %v1442 = vmul.f32 %v887, %v785
      %v1443 = vmul.f32 %v887, %v788
      %v1444 = vadd.f32 %v1440, %v1442
      %v1445 = vadd.f32 %v1441, %v1443
      %v1446 = vmul.f32 %v895, %v793
      %v1447 = vmul.f32 %v895, %v796
      %v1448 = vadd.f32 %v1444, %v1446
      %v1449 = vadd.f32 %v1445, %v1447
      %v1450 = vrot.slane %v1428, 7
      %v1451 = vrot.slane %v1429, 7
      %v1452 = vsel %vm904, %v1450, %v1451
      %v1453 = vsel %vm904, %v1451, %v1450
      %v1454 = vsel %vm909, %v1453, 0.0
      %v1455 = vsel %vm910, %v1452, 0.0
      %v1456 = vadd.f32 %v1438, %v1454
      %v1457 = vadd.f32 %v1439, %v1455
      %v1458 = vrot.slane %v1448, 1
      %v1459 = vrot.slane %v1449, 1
      %v1460 = vsel %vm919, %v1458, %v1459
      %v1461 = vsel %vm919, %v1459, %v1458
      %v1462 = vsel %vm924, %v1460, 0.0
      %v1463 = vsel %vm925, %v1461, 0.0
      %v1464 = vadd.f32 %v1456, %v1462
      %v1465 = vadd.f32 %v1457, %v1463
      %v1466 = vadd.f32 %v1464, %v934
      %v1467 = vadd.f32 %v1465, %v934
      %v1468 = vmax.f32 %v1466, 0.0
      %v1469 = vmax.f32 %v1467, 0.0
      %v1470 = vmin.f32 %v1468, 6.0
      %v1471 = vmin.f32 %v1469, 6.0
      %v1472 = vpack.c.bf16 %v1471, %v1470
      %v1473 = vmul.f32 %v840, %v785
      %v1474 = vmul.f32 %v840, %v788
      %v1475 = vmul.f32 %v845, %v793
      %v1476 = vmul.f32 %v845, %v796
      %v1477 = vadd.f32 %v1473, %v1475
      %v1478 = vadd.f32 %v1474, %v1476
      %v1479 = vmul.f32 %v853, %v801
      %v1480 = vmul.f32 %v853, %v804
      %v1481 = vadd.f32 %v1477, %v1479
      %v1482 = vadd.f32 %v1478, %v1480
      %v1483 = vmul.f32 %v861, %v785
      %v1484 = vmul.f32 %v861, %v788
      %v1485 = vmul.f32 %v866, %v793
      %v1486 = vmul.f32 %v866, %v796
      %v1487 = vadd.f32 %v1483, %v1485
      %v1488 = vadd.f32 %v1484, %v1486
      %v1489 = vmul.f32 %v874, %v801
      %v1490 = vmul.f32 %v874, %v804
      %v1491 = vadd.f32 %v1487, %v1489
      %v1492 = vadd.f32 %v1488, %v1490
      %v1493 = vmul.f32 %v882, %v785
      %v1494 = vmul.f32 %v882, %v788
      %v1495 = vmul.f32 %v887, %v793
      %v1496 = vmul.f32 %v887, %v796
      %v1497 = vadd.f32 %v1493, %v1495
      %v1498 = vadd.f32 %v1494, %v1496
      %v1499 = vmul.f32 %v895, %v801
      %v1500 = vmul.f32 %v895, %v804
      %v1501 = vadd.f32 %v1497, %v1499
      %v1502 = vadd.f32 %v1498, %v1500
      %v1503 = vrot.slane %v1481, 7
      %v1504 = vrot.slane %v1482, 7
      %v1505 = vsel %vm904, %v1503, %v1504
      %v1506 = vsel %vm904, %v1504, %v1503
      %v1507 = vsel %vm909, %v1506, 0.0
      %v1508 = vsel %vm910, %v1505, 0.0
      %v1509 = vadd.f32 %v1491, %v1507
      %v1510 = vadd.f32 %v1492, %v1508
      %v1511 = vrot.slane %v1501, 1
      %v1512 = vrot.slane %v1502, 1
      %v1513 = vsel %vm919, %v1511, %v1512
      %v1514 = vsel %vm919, %v1512, %v1511
      %v1515 = vsel %vm924, %v1513, 0.0
      %v1516 = vsel %vm925, %v1514, 0.0
      %v1517 = vadd.f32 %v1509, %v1515
      %v1518 = vadd.f32 %v1510, %v1516
      %v1519 = vadd.f32 %v1517, %v934
      %v1520 = vadd.f32 %v1518, %v934
      %v1521 = vmax.f32 %v1519, 0.0
      %v1522 = vmax.f32 %v1520, 0.0
      %v1523 = vmin.f32 %v1521, 6.0
      %v1524 = vmin.f32 %v1522, 6.0
      %v1525 = vpack.c.bf16 %v1524, %v1523
      %v1526 = vmul.f32 %v840, %v793
      %v1527 = vmul.f32 %v840, %v796
      %v1528 = vmul.f32 %v845, %v801
      %v1529 = vmul.f32 %v845, %v804
      %v1530 = vadd.f32 %v1526, %v1528
      %v1531 = vadd.f32 %v1527, %v1529
      %v1532 = vmul.f32 %v853, %v809
      %v1533 = vmul.f32 %v853, %v812
      %v1534 = vadd.f32 %v1530, %v1532
      %v1535 = vadd.f32 %v1531, %v1533
      %v1536 = vmul.f32 %v861, %v793
      %v1537 = vmul.f32 %v861, %v796
      %v1538 = vmul.f32 %v866, %v801
      %v1539 = vmul.f32 %v866, %v804
      %v1540 = vadd.f32 %v1536, %v1538
      %v1541 = vadd.f32 %v1537, %v1539
      %v1542 = vmul.f32 %v874, %v809
      %v1543 = vmul.f32 %v874, %v812
      %v1544 = vadd.f32 %v1540, %v1542
      %v1545 = vadd.f32 %v1541, %v1543
      %v1546 = vmul.f32 %v882, %v793
      %v1547 = vmul.f32 %v882, %v796
      %v1548 = vmul.f32 %v887, %v801
      %v1549 = vmul.f32 %v887, %v804
      %v1550 = vadd.f32 %v1546, %v1548
      %v1551 = vadd.f32 %v1547, %v1549
      %v1552 = vmul.f32 %v895, %v809
      %v1553 = vmul.f32 %v895, %v812
      %v1554 = vadd.f32 %v1550, %v1552
      %v1555 = vadd.f32 %v1551, %v1553
      %v1556 = vrot.slane %v1534, 7
      %v1557 = vrot.slane %v1535, 7
      %v1558 = vsel %vm904, %v1556, %v1557
      %v1559 = vsel %vm904, %v1557, %v1556
      %v1560 = vsel %vm909, %v1559, 0.0
      %v1561 = vsel %vm910, %v1558, 0.0
      %v1562 = vadd.f32 %v1544, %v1560
      %v1563 = vadd.f32 %v1545, %v1561
      %v1564 = vrot.slane %v1554, 1
      %v1565 = vrot.slane %v1555, 1
      %v1566 = vsel %vm919, %v1564, %v1565
      %v1567 = vsel %vm919, %v1565, %v1564
      %v1568 = vsel %vm924, %v1566, 0.0
      %v1569 = vsel %vm925, %v1567, 0.0
      %v1570 = vadd.f32 %v1562, %v1568
      %v1571 = vadd.f32 %v1563, %v1569
      %v1572 = vadd.f32 %v1570, %v934
      %v1573 = vadd.f32 %v1571, %v934
      %v1574 = vmax.f32 %v1572, 0.0
      %v1575 = vmax.f32 %v1573, 0.0
      %v1576 = vmin.f32 %v1574, 6.0
      %v1577 = vmin.f32 %v1575, 6.0
      %v1578 = vpack.c.bf16 %v1577, %v1576
      %v1579 = vmul.f32 %v840, %v801
      %v1580 = vmul.f32 %v840, %v804
      %v1581 = vmul.f32 %v845, %v809
      %v1582 = vmul.f32 %v845, %v812
      %v1583 = vadd.f32 %v1579, %v1581
      %v1584 = vadd.f32 %v1580, %v1582
      %v1585 = vmul.f32 %v853, %v817
      %v1586 = vmul.f32 %v853, %v820
      %v1587 = vadd.f32 %v1583, %v1585
      %v1588 = vadd.f32 %v1584, %v1586
      %v1589 = vmul.f32 %v861, %v801
      %v1590 = vmul.f32 %v861, %v804
      %v1591 = vmul.f32 %v866, %v809
      %v1592 = vmul.f32 %v866, %v812
      %v1593 = vadd.f32 %v1589, %v1591
      %v1594 = vadd.f32 %v1590, %v1592
      %v1595 = vmul.f32 %v874, %v817
      %v1596 = vmul.f32 %v874, %v820
      %v1597 = vadd.f32 %v1593, %v1595
      %v1598 = vadd.f32 %v1594, %v1596
      %v1599 = vmul.f32 %v882, %v801
      %v1600 = vmul.f32 %v882, %v804
      %v1601 = vmul.f32 %v887, %v809
      %v1602 = vmul.f32 %v887, %v812
      %v1603 = vadd.f32 %v1599, %v1601
      %v1604 = vadd.f32 %v1600, %v1602
      %v1605 = vmul.f32 %v895, %v817
      %v1606 = vmul.f32 %v895, %v820
      %v1607 = vadd.f32 %v1603, %v1605
      %v1608 = vadd.f32 %v1604, %v1606
      %v1609 = vrot.slane %v1587, 7
      %v1610 = vrot.slane %v1588, 7
      %v1611 = vsel %vm904, %v1609, %v1610
      %v1612 = vsel %vm904, %v1610, %v1609
      %v1613 = vsel %vm909, %v1612, 0.0
      %v1614 = vsel %vm910, %v1611, 0.0
      %v1615 = vadd.f32 %v1597, %v1613
      %v1616 = vadd.f32 %v1598, %v1614
      %v1617 = vrot.slane %v1607, 1
      %v1618 = vrot.slane %v1608, 1
      %v1619 = vsel %vm919, %v1617, %v1618
      %v1620 = vsel %vm919, %v1618, %v1617
      %v1621 = vsel %vm924, %v1619, 0.0
      %v1622 = vsel %vm925, %v1620, 0.0
      %v1623 = vadd.f32 %v1615, %v1621
      %v1624 = vadd.f32 %v1616, %v1622
      %v1625 = vadd.f32 %v1623, %v934
      %v1626 = vadd.f32 %v1624, %v934
      %v1627 = vmax.f32 %v1625, 0.0
      %v1628 = vmax.f32 %v1626, 0.0
      %v1629 = vmin.f32 %v1627, 6.0
      %v1630 = vmin.f32 %v1628, 6.0
      %v1631 = vpack.c.bf16 %v1630, %v1629
      %v1632 = vmul.f32 %v840, %v809
      %v1633 = vmul.f32 %v840, %v812
      %v1634 = vmul.f32 %v845, %v817
      %v1635 = vmul.f32 %v845, %v820
      %v1636 = vadd.f32 %v1632, %v1634
      %v1637 = vadd.f32 %v1633, %v1635
      %v1638 = vmul.f32 %v853, %v825
      %v1639 = vmul.f32 %v853, %v828
      %v1640 = vadd.f32 %v1636, %v1638
      %v1641 = vadd.f32 %v1637, %v1639
      %v1642 = vmul.f32 %v861, %v809
      %v1643 = vmul.f32 %v861, %v812
      %v1644 = vmul.f32 %v866, %v817
      %v1645 = vmul.f32 %v866, %v820
      %v1646 = vadd.f32 %v1642, %v1644
      %v1647 = vadd.f32 %v1643, %v1645
      %v1648 = vmul.f32 %v874, %v825
      %v1649 = vmul.f32 %v874, %v828
      %v1650 = vadd.f32 %v1646, %v1648
      %v1651 = vadd.f32 %v1647, %v1649
      %v1652 = vmul.f32 %v882, %v809
      %v1653 = vmul.f32 %v882, %v812
      %v1654 = vmul.f32 %v887, %v817
      %v1655 = vmul.f32 %v887, %v820
      %v1656 = vadd.f32 %v1652, %v1654
      %v1657 = vadd.f32 %v1653, %v1655
      %v1658 = vmul.f32 %v895, %v825
      %v1659 = vmul.f32 %v895, %v828
      %v1660 = vadd.f32 %v1656, %v1658
      %v1661 = vadd.f32 %v1657, %v1659
      %v1662 = vrot.slane %v1640, 7
      %v1663 = vrot.slane %v1641, 7
      %v1664 = vsel %vm904, %v1662, %v1663
      %v1665 = vsel %vm904, %v1663, %v1662
      %v1666 = vsel %vm909, %v1665, 0.0
      %v1667 = vsel %vm910, %v1664, 0.0
      %v1668 = vadd.f32 %v1650, %v1666
      %v1669 = vadd.f32 %v1651, %v1667
      %v1670 = vrot.slane %v1660, 1
      %v1671 = vrot.slane %v1661, 1
      %v1672 = vsel %vm919, %v1670, %v1671
      %v1673 = vsel %vm919, %v1671, %v1670
      %v1674 = vsel %vm924, %v1672, 0.0
      %v1675 = vsel %vm925, %v1673, 0.0
      %v1676 = vadd.f32 %v1668, %v1674
      %v1677 = vadd.f32 %v1669, %v1675
      %v1678 = vadd.f32 %v1676, %v934
      %v1679 = vadd.f32 %v1677, %v934
      %v1680 = vmax.f32 %v1678, 0.0
      %v1681 = vmax.f32 %v1679, 0.0
      %v1682 = vmin.f32 %v1680, 6.0
      %v1683 = vmin.f32 %v1681, 6.0
      %v1684 = vpack.c.bf16 %v1683, %v1682
      %v1685 = vmul.f32 %v840, %v817
      %v1686 = vmul.f32 %v840, %v820
      %v1687 = vmul.f32 %v845, %v825
      %v1688 = vmul.f32 %v845, %v828
      %v1689 = vadd.f32 %v1685, %v1687
      %v1690 = vadd.f32 %v1686, %v1688
      %v1691 = vmul.f32 %v853, 0.0
      %v1692 = vadd.f32 %v1689, %v1691
      %v1693 = vadd.f32 %v1690, %v1691
      %v1694 = vmul.f32 %v861, %v817
      %v1695 = vmul.f32 %v861, %v820
      %v1696 = vmul.f32 %v866, %v825
      %v1697 = vmul.f32 %v866, %v828
      %v1698 = vadd.f32 %v1694, %v1696
      %v1699 = vadd.f32 %v1695, %v1697
      %v1700 = vmul.f32 %v874, 0.0
      %v1701 = vadd.f32 %v1698, %v1700
      %v1702 = vadd.f32 %v1699, %v1700
      %v1703 = vmul.f32 %v882, %v817
      %v1704 = vmul.f32 %v882, %v820
      %v1705 = vmul.f32 %v887, %v825
      %v1706 = vmul.f32 %v887, %v828
      %v1707 = vadd.f32 %v1703, %v1705
      %v1708 = vadd.f32 %v1704, %v1706
      %v1709 = vmul.f32 %v895, 0.0
      %v1710 = vadd.f32 %v1707, %v1709
      %v1711 = vadd.f32 %v1708, %v1709
      %v1712 = vrot.slane %v1692, 7
      %v1713 = vrot.slane %v1693, 7
      %v1714 = vsel %vm904, %v1712, %v1713
      %v1715 = vsel %vm904, %v1713, %v1712
      %v1716 = vsel %vm909, %v1715, 0.0
      %v1717 = vsel %vm910, %v1714, 0.0
      %v1718 = vadd.f32 %v1701, %v1716
      %v1719 = vadd.f32 %v1702, %v1717
      %v1720 = vrot.slane %v1710, 1
      %v1721 = vrot.slane %v1711, 1
      %v1722 = vsel %vm919, %v1720, %v1721
      %v1723 = vsel %vm919, %v1721, %v1720
      %v1724 = vsel %vm924, %v1722, 0.0
      %v1725 = vsel %vm925, %v1723, 0.0
      %v1726 = vadd.f32 %v1718, %v1724
      %v1727 = vadd.f32 %v1719, %v1725
      %v1728 = vadd.f32 %v1726, %v934
      %v1729 = vadd.f32 %v1727, %v934
      %v1730 = vmax.f32 %v1728, 0.0
      %v1731 = vmax.f32 %v1729, 0.0
      %v1732 = vmin.f32 %v1730, 6.0
      %v1733 = vmin.f32 %v1731, 6.0
      %v1734 = vpack.c.bf16 %v1733, %v1732
      %v1735 = vld [vmem:[%s5] sm:$0xf]
      %v1736 = vld [vmem:[%s5 + $0x4] sm:$0xf]
      %v1737 = vld [vmem:[%s5 + $0x8] sm:$0xf]
      %v1738 = vld [vmem:[%s5 + $0xc] sm:$0xf]
      %v1739 = vld [vmem:[%s6] sm:$0xff]
      %v1740 = vld [vmem:[%s6 + $0x8] sm:$0xff]
      %v1741 = vld [vmem:[%s6 + $0x10] sm:$0xff]
      %v1742 = vld [vmem:[%s6 + $0x18] sm:$0xff]
      %1744 = vset.pattern.permute.xlu0 0
      %1745 = vperm.xlu0 %1744, %v1739
      %v1746 = vpop.permute.xlu0 %1745
      %1749 = vset.pattern.permute.xlu0 0
      %1750 = vperm.xlu0 %1749, %v1740
      %v1751 = vpop.permute.xlu0 %1750
      %1754 = vset.pattern.permute.xlu0 0
      %1755 = vperm.xlu0 %1754, %v1741
      %v1756 = vpop.permute.xlu0 %1755
      %1759 = vset.pattern.permute.xlu0 0
      %1760 = vperm.xlu0 %1759, %v1742
      %v1761 = vpop.permute.xlu0 %1760
      %v1767 = vunpack.c.l.b16 %v1735
      %v1768 = vunpack.c.l.b16 %v1736
      %v1769 = vunpack.c.l.b16 %v1737
      %v1770 = vunpack.c.l.b16 %v1738
      %v1771 = vpack.c.b16 %v1768, %v1767
      %v1772 = vpack.c.b16 %v1770, %v1769
      %1775 = vmatprep.subr.bf16.mxu0 0
      %1776 = vmatpush1.bf16.xpose.msra.mxu0 %v1313
      %1777 = vmatprep.subr.bf16.mxu0 0
      %1778 = vmatpush1.bf16.xpose.msra.mxu0 %v1260
      %1779 = vmatprep.subr.bf16.mxu0 0
      %1780 = vmatpush1.bf16.xpose.msra.mxu0 %v1207
      %1781 = vmatprep.subr.bf16.mxu0 0
      %1782 = vmatpush1.bf16.xpose.msra.mxu0 %v1154
      %1783 = vmatprep.subr.bf16.mxu0 0
      %1784 = vmatpush1.bf16.xpose.msra.mxu0 %v1101
      %1785 = vmatprep.subr.bf16.mxu0 0
      %1786 = vmatpush1.bf16.xpose.msra.mxu0 %v1048
      %1787 = vmatprep.subr.bf16.mxu0 0
      %1788 = vmatpush1.bf16.xpose.msra.mxu0 %v995
      %1789 = vmatprep.subr.bf16.mxu0 0
      %1790 = vmatpush1.bf16.xpose.msra.mxu0 %v942
      %1791 = vmatprep.subr.bf16.mxu0 0
      %1792 = vmatpush2.bf16.xpose.msra.mxu0 %v1734
      %1793 = vmatprep.subr.bf16.mxu0 0
      %1794 = vmatpush2.bf16.xpose.msra.mxu0 %v1684
      %1795 = vmatprep.subr.bf16.mxu0 0
      %1796 = vmatpush2.bf16.xpose.msra.mxu0 %v1631
      %1797 = vmatprep.subr.bf16.mxu0 0
      %1798 = vmatpush2.bf16.xpose.msra.mxu0 %v1578
      %1799 = vmatprep.subr.bf16.mxu0 0
      %1800 = vmatpush2.bf16.xpose.msra.mxu0 %v1525
      %1801 = vmatprep.subr.bf16.mxu0 0
      %1802 = vmatpush2.bf16.xpose.msra.mxu0 %v1472
      %1803 = vmatprep.subr.bf16.mxu0 0
      %1804 = vmatpush2.bf16.xpose.msra.mxu0 %v1419
      %1805 = vmatprep.subr.bf16.mxu0 0
      %1806 = vmatpush2.bf16.xpose.msra.mxu0 %v1366
      %1807 = vmatprep.mubr.bf16.mxu0 0
      %1808 = vmatmul.mubr.bf16.gmra.mxu0 %v1771
      %v1809 = vpop.f32.mrf.mxu0
      %v1810 = vadd.f32 %v1746, %v1809
      %v1811 = vpop.f32.mrf.mxu0
      %v1812 = vadd.f32 %v1746, %v1811
      %v1813 = vpop.f32.mrf.mxu0
      %v1814 = vadd.f32 %v1751, %v1813
      %v1815 = vpop.f32.mrf.mxu0
      %v1816 = vadd.f32 %v1751, %v1815
      %1817 = vmatprep.mubr.bf16.mxu0 0
      %1818 = vmatmul.mubr.bf16.gmra.mxu0 %v1772
      %v1819 = vpop.f32.mrf.mxu0
      %v1820 = vadd.f32 %v1756, %v1819
      %v1821 = vpop.f32.mrf.mxu0
      %v1822 = vadd.f32 %v1756, %v1821
      %v1823 = vpop.f32.mrf.mxu0
      %v1824 = vadd.f32 %v1761, %v1823
      %v1825 = vpop.f32.mrf.mxu0
      %v1826 = vadd.f32 %v1761, %v1825
      %1827 = vdwg.mxu0
      %v1828 = vadd.f32 %v705, %v708
      %v1829 = vrot.slane %v1828, 4
      %v1830 = vadd.f32 %v1828, %v1829
      %v1831 = vrot.slane %v1830, 2
      %v1832 = vadd.f32 %v1830, %v1831
      %v1833 = vrot.slane %v1832, 1
      %v1834 = vadd.f32 %v1832, %v1833
      %v1835 = vadd.f32 %v713, %v716
      %v1836 = vrot.slane %v1835, 4
      %v1837 = vadd.f32 %v1835, %v1836
      %v1838 = vrot.slane %v1837, 2
      %v1839 = vadd.f32 %v1837, %v1838
      %v1840 = vrot.slane %v1839, 1
      %v1841 = vadd.f32 %v1839, %v1840
      %v1842 = vadd.f32 %v721, %v724
      %v1843 = vrot.slane %v1842, 4
      %v1844 = vadd.f32 %v1842, %v1843
      %v1845 = vrot.slane %v1844, 2
      %v1846 = vadd.f32 %v1844, %v1845
      %v1847 = vrot.slane %v1846, 1
      %v1848 = vadd.f32 %v1846, %v1847
      %v1849 = vadd.f32 %v729, %v732
      %v1850 = vrot.slane %v1849, 4
      %v1851 = vadd.f32 %v1849, %v1850
      %v1852 = vrot.slane %v1851, 2
      %v1853 = vadd.f32 %v1851, %v1852
      %v1854 = vrot.slane %v1853, 1
      %v1855 = vadd.f32 %v1853, %v1854
      %v1856 = vadd.f32 %v737, %v740
      %v1857 = vrot.slane %v1856, 4
      %v1858 = vadd.f32 %v1856, %v1857
      %v1859 = vrot.slane %v1858, 2
      %v1860 = vadd.f32 %v1858, %v1859
      %v1861 = vrot.slane %v1860, 1
      %v1862 = vadd.f32 %v1860, %v1861
      %v1863 = vadd.f32 %v745, %v748
      %v1864 = vrot.slane %v1863, 4
      %v1865 = vadd.f32 %v1863, %v1864
      %v1866 = vrot.slane %v1865, 2
      %v1867 = vadd.f32 %v1865, %v1866
      %v1868 = vrot.slane %v1867, 1
      %v1869 = vadd.f32 %v1867, %v1868
      %v1870 = vadd.f32 %v753, %v756
      %v1871 = vrot.slane %v1870, 4
      %v1872 = vadd.f32 %v1870, %v1871
      %v1873 = vrot.slane %v1872, 2
      %v1874 = vadd.f32 %v1872, %v1873
      %v1875 = vrot.slane %v1874, 1
      %v1876 = vadd.f32 %v1874, %v1875
      %v1877 = vadd.f32 %v761, %v764
      %v1878 = vrot.slane %v1877, 4
      %v1879 = vadd.f32 %v1877, %v1878
      %v1880 = vrot.slane %v1879, 2
      %v1881 = vadd.f32 %v1879, %v1880
      %v1882 = vrot.slane %v1881, 1
      %v1883 = vadd.f32 %v1881, %v1882
      %v1884 = vadd.f32 %v769, %v772
      %v1885 = vrot.slane %v1884, 4
      %v1886 = vadd.f32 %v1884, %v1885
      %v1887 = vrot.slane %v1886, 2
      %v1888 = vadd.f32 %v1886, %v1887
      %v1889 = vrot.slane %v1888, 1
      %v1890 = vadd.f32 %v1888, %v1889
      %v1891 = vadd.f32 %v777, %v780
      %v1892 = vrot.slane %v1891, 4
      %v1893 = vadd.f32 %v1891, %v1892
      %v1894 = vrot.slane %v1893, 2
      %v1895 = vadd.f32 %v1893, %v1894
      %v1896 = vrot.slane %v1895, 1
      %v1897 = vadd.f32 %v1895, %v1896
      %v1898 = vadd.f32 %v785, %v788
      %v1899 = vrot.slane %v1898, 4
      %v1900 = vadd.f32 %v1898, %v1899
      %v1901 = vrot.slane %v1900, 2
      %v1902 = vadd.f32 %v1900, %v1901
      %v1903 = vrot.slane %v1902, 1
      %v1904 = vadd.f32 %v1902, %v1903
      %v1905 = vadd.f32 %v793, %v796
      %v1906 = vrot.slane %v1905, 4
      %v1907 = vadd.f32 %v1905, %v1906
      %v1908 = vrot.slane %v1907, 2
      %v1909 = vadd.f32 %v1907, %v1908
      %v1910 = vrot.slane %v1909, 1
      %v1911 = vadd.f32 %v1909, %v1910
      %v1912 = vadd.f32 %v801, %v804
      %v1913 = vrot.slane %v1912, 4
      %v1914 = vadd.f32 %v1912, %v1913
      %v1915 = vrot.slane %v1914, 2
      %v1916 = vadd.f32 %v1914, %v1915
      %v1917 = vrot.slane %v1916, 1
      %v1918 = vadd.f32 %v1916, %v1917
      %v1919 = vadd.f32 %v809, %v812
      %v1920 = vrot.slane %v1919, 4
      %v1921 = vadd.f32 %v1919, %v1920
      %v1922 = vrot.slane %v1921, 2
      %v1923 = vadd.f32 %v1921, %v1922
      %v1924 = vrot.slane %v1923, 1
      %v1925 = vadd.f32 %v1923, %v1924
      %v1926 = vadd.f32 %v817, %v820
      %v1927 = vrot.slane %v1926, 4
      %v1928 = vadd.f32 %v1926, %v1927
      %v1929 = vrot.slane %v1928, 2
      %v1930 = vadd.f32 %v1928, %v1929
      %v1931 = vrot.slane %v1930, 1
      %v1932 = vadd.f32 %v1930, %v1931
      %v1933 = vadd.f32 %v825, %v828
      %v1934 = vrot.slane %v1933, 4
      %v1935 = vadd.f32 %v1933, %v1934
      %v1936 = vrot.slane %v1935, 2
      %v1937 = vadd.f32 %v1935, %v1936
      %v1938 = vrot.slane %v1937, 1
      %v1939 = vadd.f32 %v1937, %v1938
      %v1940 = vrcp.pop 16.0
      %v1941 = vmul.f32 %v1834, %v1940
      %v1942 = vmul.f32 %v1841, %v1940
      %v1943 = vmul.f32 %v1848, %v1940
      %v1944 = vmul.f32 %v1855, %v1940
      %v1945 = vmul.f32 %v1862, %v1940
      %v1946 = vmul.f32 %v1869, %v1940
      %v1947 = vmul.f32 %v1876, %v1940
      %v1948 = vmul.f32 %v1883, %v1940
      %v1949 = vmul.f32 %v1890, %v1940
      %v1950 = vmul.f32 %v1897, %v1940
      %v1951 = vmul.f32 %v1904, %v1940
      %v1952 = vmul.f32 %v1911, %v1940
      %v1953 = vmul.f32 %v1918, %v1940
      %v1954 = vmul.f32 %v1925, %v1940
      %v1955 = vmul.f32 %v1932, %v1940
      %v1956 = vmul.f32 %v1939, %v1940
      %v1957 = vadd.f32 %v705, %v713
      %v1958 = vadd.f32 %v1957, %v721
      %v1959 = vadd.f32 %v1958, %v729
      %v1960 = vadd.f32 %v1959, %v737
      %v1961 = vadd.f32 %v1960, %v745
      %v1962 = vadd.f32 %v1961, %v753
      %v1963 = vadd.f32 %v1962, %v761
      %v1964 = vadd.f32 %v1963, %v769
      %v1965 = vadd.f32 %v1964, %v777
      %v1966 = vadd.f32 %v1965, %v785
      %v1967 = vadd.f32 %v1966, %v793
      %v1968 = vadd.f32 %v1967, %v801
      %v1969 = vadd.f32 %v1968, %v809
      %v1970 = vadd.f32 %v1969, %v817
      %v1971 = vadd.f32 %v1970, %v825
      %v1972 = vadd.f32 %v708, %v716
      %v1973 = vadd.f32 %v1972, %v724
      %v1974 = vadd.f32 %v1973, %v732
      %v1975 = vadd.f32 %v1974, %v740
      %v1976 = vadd.f32 %v1975, %v748
      %v1977 = vadd.f32 %v1976, %v756
      %v1978 = vadd.f32 %v1977, %v764
      %v1979 = vadd.f32 %v1978, %v772
      %v1980 = vadd.f32 %v1979, %v780
      %v1981 = vadd.f32 %v1980, %v788
      %v1982 = vadd.f32 %v1981, %v796
      %v1983 = vadd.f32 %v1982, %v804
      %v1984 = vadd.f32 %v1983, %v812
      %v1985 = vadd.f32 %v1984, %v820
      %v1986 = vadd.f32 %v1985, %v828
      %v1987 = vmul.f32 %v1971, %v1940
      %v1988 = vmul.f32 %v1986, %v1940
      %v1989 = vld [vmem:[%s7] sm:$0xff]
      %v1990 = vld [vmem:[%s7 + $0x8] sm:$0xff]
      %v1991 = vld [vmem:[%s8] sm:$0xff]
      %v1992 = vld [vmem:[%s8 + $0x8] sm:$0xff]
      %v1995 = vrot.slane %v1989, 1
      %v1996 = vrot.slane %v1989, 2
      %v1997 = vrot.slane %v1989, 3
      %v1998 = vrot.slane %v1989, 4
      %v1999 = vrot.slane %v1989, 5
      %v2000 = vrot.slane %v1989, 6
      %v2001 = vrot.slane %v1989, 7
      %v2002 = vrot.slane %v1990, 1
      %v2003 = vrot.slane %v1990, 2
      %v2004 = vrot.slane %v1990, 3
      %v2005 = vrot.slane %v1990, 4
      %v2006 = vrot.slane %v1990, 5
      %v2007 = vrot.slane %v1990, 6
      %v2008 = vrot.slane %v1990, 7
      %v2025 = vadd.f32 %v1941, %v1989
      %v2026 = vadd.f32 %v1942, %v1995
      %v2027 = vadd.f32 %v1943, %v1996
      %v2028 = vadd.f32 %v1944, %v1997
      %v2029 = vadd.f32 %v1945, %v1998
      %v2030 = vadd.f32 %v1946, %v1999
      %v2031 = vadd.f32 %v1947, %v2000
      %v2032 = vadd.f32 %v1948, %v2001
      %v2033 = vadd.f32 %v1949, %v1990
      %v2034 = vadd.f32 %v1950, %v2002
      %v2035 = vadd.f32 %v1951, %v2003
      %v2036 = vadd.f32 %v1952, %v2004
      %v2037 = vadd.f32 %v1953, %v2005
      %v2038 = vadd.f32 %v1954, %v2006
      %v2039 = vadd.f32 %v1955, %v2007
      %v2040 = vadd.f32 %v1956, %v2008
      %v2041 = vpack.c.bf16 %v2025, %v2025
      %v2042 = vpack.c.bf16 %v2026, %v2026
      %v2043 = vpack.c.bf16 %v2027, %v2027
      %v2044 = vpack.c.bf16 %v2028, %v2028
      %v2045 = vpack.c.bf16 %v2029, %v2029
      %v2046 = vpack.c.bf16 %v2030, %v2030
      %v2047 = vpack.c.bf16 %v2031, %v2031
      %v2048 = vpack.c.bf16 %v2032, %v2032
      %v2049 = vpack.c.bf16 %v2033, %v2033
      %v2050 = vpack.c.bf16 %v2034, %v2034
      %v2051 = vpack.c.bf16 %v2035, %v2035
      %v2052 = vpack.c.bf16 %v2036, %v2036
      %v2053 = vpack.c.bf16 %v2037, %v2037
      %v2054 = vpack.c.bf16 %v2038, %v2038
      %v2055 = vpack.c.bf16 %v2039, %v2039
      %v2056 = vpack.c.bf16 %v2040, %v2040
      %v2059 = vrot.slane %v1991, 1
      %v2060 = vrot.slane %v1991, 2
      %v2061 = vrot.slane %v1991, 3
      %v2062 = vrot.slane %v1991, 4
      %v2063 = vrot.slane %v1991, 5
      %v2064 = vrot.slane %v1991, 6
      %v2065 = vrot.slane %v1991, 7
      %v2066 = vrot.slane %v1992, 1
      %v2067 = vrot.slane %v1992, 2
      %v2068 = vrot.slane %v1992, 3
      %v2069 = vrot.slane %v1992, 4
      %v2070 = vrot.slane %v1992, 5
      %v2071 = vrot.slane %v1992, 6
      %v2072 = vrot.slane %v1992, 7
      %2073 = vrot.lane.b32.xlu0 %v1991, 32
      %v2074 = vpop.permute.xlu0 %2073
      %2075 = vrot.lane.b32.xlu0 %v2059, 32
      %v2076 = vpop.permute.xlu0 %2075
      %2077 = vrot.lane.b32.xlu0 %v2060, 32
      %v2078 = vpop.permute.xlu0 %2077
      %2079 = vrot.lane.b32.xlu0 %v2061, 32
      %v2080 = vpop.permute.xlu0 %2079
      %2081 = vrot.lane.b32.xlu0 %v2062, 32
      %v2082 = vpop.permute.xlu0 %2081
      %2083 = vrot.lane.b32.xlu0 %v2063, 32
      %v2084 = vpop.permute.xlu0 %2083
      %2085 = vrot.lane.b32.xlu0 %v2064, 32
      %v2086 = vpop.permute.xlu0 %2085
      %2087 = vrot.lane.b32.xlu0 %v2065, 32
      %v2088 = vpop.permute.xlu0 %2087
      %2089 = vrot.lane.b32.xlu0 %v1992, 32
      %v2090 = vpop.permute.xlu0 %2089
      %2091 = vrot.lane.b32.xlu0 %v2066, 32
      %v2092 = vpop.permute.xlu0 %2091
      %2093 = vrot.lane.b32.xlu0 %v2067, 32
      %v2094 = vpop.permute.xlu0 %2093
      %2095 = vrot.lane.b32.xlu0 %v2068, 32
      %v2096 = vpop.permute.xlu0 %2095
      %2097 = vrot.lane.b32.xlu0 %v2069, 32
      %v2098 = vpop.permute.xlu0 %2097
      %2099 = vrot.lane.b32.xlu0 %v2070, 32
      %v2100 = vpop.permute.xlu0 %2099
      %2101 = vrot.lane.b32.xlu0 %v2071, 32
      %v2102 = vpop.permute.xlu0 %2101
      %2103 = vrot.lane.b32.xlu0 %v2072, 32
      %v2104 = vpop.permute.xlu0 %2103
      %v2121 = vadd.f32 %v1941, %v2074
      %v2122 = vadd.f32 %v1942, %v2076
      %v2123 = vadd.f32 %v1943, %v2078
      %v2124 = vadd.f32 %v1944, %v2080
      %v2125 = vadd.f32 %v1945, %v2082
      %v2126 = vadd.f32 %v1946, %v2084
      %v2127 = vadd.f32 %v1947, %v2086
      %v2128 = vadd.f32 %v1948, %v2088
      %v2129 = vadd.f32 %v1949, %v2090
      %v2130 = vadd.f32 %v1950, %v2092
      %v2131 = vadd.f32 %v1951, %v2094
      %v2132 = vadd.f32 %v1952, %v2096
      %v2133 = vadd.f32 %v1953, %v2098
      %v2134 = vadd.f32 %v1954, %v2100
      %v2135 = vadd.f32 %v1955, %v2102
      %v2136 = vadd.f32 %v1956, %v2104
      %v2137 = vpack.c.bf16 %v2121, %v2121
      %v2138 = vpack.c.bf16 %v2122, %v2122
      %v2139 = vpack.c.bf16 %v2123, %v2123
      %v2140 = vpack.c.bf16 %v2124, %v2124
      %v2141 = vpack.c.bf16 %v2125, %v2125
      %v2142 = vpack.c.bf16 %v2126, %v2126
      %v2143 = vpack.c.bf16 %v2127, %v2127
      %v2144 = vpack.c.bf16 %v2128, %v2128
      %v2145 = vpack.c.bf16 %v2129, %v2129
      %v2146 = vpack.c.bf16 %v2130, %v2130
      %v2147 = vpack.c.bf16 %v2131, %v2131
      %v2148 = vpack.c.bf16 %v2132, %v2132
      %v2149 = vpack.c.bf16 %v2133, %v2133
      %v2150 = vpack.c.bf16 %v2134, %v2134
      %v2151 = vpack.c.bf16 %v2135, %v2135
      %v2152 = vpack.c.bf16 %v2136, %v2136
      %v2153 = vpack.c.bf16 %v1941, %v1941
      %v2154 = vpack.c.bf16 %v1942, %v1942
      %v2155 = vpack.c.bf16 %v1943, %v1943
      %v2156 = vpack.c.bf16 %v1944, %v1944
      %v2157 = vpack.c.bf16 %v1945, %v1945
      %v2158 = vpack.c.bf16 %v1946, %v1946
      %v2159 = vpack.c.bf16 %v1947, %v1947
      %v2160 = vpack.c.bf16 %v1948, %v1948
      %v2161 = vpack.c.bf16 %v1949, %v1949
      %v2162 = vpack.c.bf16 %v1950, %v1950
      %v2163 = vpack.c.bf16 %v1951, %v1951
      %v2164 = vpack.c.bf16 %v1952, %v1952
      %v2165 = vpack.c.bf16 %v1953, %v1953
      %v2166 = vpack.c.bf16 %v1954, %v1954
      %v2167 = vpack.c.bf16 %v1955, %v1955
      %v2168 = vpack.c.bf16 %v1956, %v1956
      %v2185 = vunpack.c.l.b16 %v2041
      %v2186 = vunpack.c.l.b16 %v2042
      %v2187 = vunpack.c.l.b16 %v2043
      %v2188 = vunpack.c.l.b16 %v2044
      %v2189 = vunpack.c.l.b16 %v2045
      %v2190 = vunpack.c.l.b16 %v2046
      %v2191 = vunpack.c.l.b16 %v2047
      %v2192 = vunpack.c.l.b16 %v2048
      %v2193 = vunpack.c.l.b16 %v2049
      %v2194 = vunpack.c.l.b16 %v2050
      %v2195 = vunpack.c.l.b16 %v2051
      %v2196 = vunpack.c.l.b16 %v2052
      %v2197 = vunpack.c.l.b16 %v2053
      %v2198 = vunpack.c.l.b16 %v2054
      %v2199 = vunpack.c.l.b16 %v2055
      %v2200 = vunpack.c.l.b16 %v2056
      %v2201 = vrot.slane %v2186, 7
      %vm2202 = vcmask 1041409
      %v2203 = vsel %vm2202, %v2201, %v2185
      %v2204 = vrot.slane %v2187, 6
      %vm2205 = vcmask 1042434
      %v2206 = vsel %vm2205, %v2204, %v2203
      %v2207 = vrot.slane %v2188, 5
      %vm2208 = vcmask 1043459
      %v2209 = vsel %vm2208, %v2207, %v2206
      %v2210 = vrot.slane %v2189, 4
      %vm2211 = vcmask 1044484
      %v2212 = vsel %vm2211, %v2210, %v2209
      %v2213 = vrot.slane %v2190, 3
      %vm2214 = vcmask 1045509
      %v2215 = vsel %vm2214, %v2213, %v2212
      %v2216 = vrot.slane %v2191, 2
      %vm2217 = vcmask 1046534
      %v2218 = vsel %vm2217, %v2216, %v2215
      %v2219 = vrot.slane %v2192, 1
      %vm2220 = vcmask 1047559
      %v2221 = vsel %vm2220, %v2219, %v2218
      %v2222 = vrot.slane %v2194, 7
      %v2223 = vsel %vm2202, %v2222, %v2193
      %v2224 = vrot.slane %v2195, 6
      %v2225 = vsel %vm2205, %v2224, %v2223
      %v2226 = vrot.slane %v2196, 5
      %v2227 = vsel %vm2208, %v2226, %v2225
      %v2228 = vrot.slane %v2197, 4
      %v2229 = vsel %vm2211, %v2228, %v2227
      %v2230 = vrot.slane %v2198, 3
      %v2231 = vsel %vm2214, %v2230, %v2229
      %v2232 = vrot.slane %v2199, 2
      %v2233 = vsel %vm2217, %v2232, %v2231
      %v2234 = vrot.slane %v2200, 1
      %v2235 = vsel %vm2220, %v2234, %v2233
      %v2236 = vpack.c.b16 %v2235, %v2221
      %v2253 = vunpack.c.l.b16 %v2137
      %v2254 = vunpack.c.l.b16 %v2138
      %v2255 = vunpack.c.l.b16 %v2139
      %v2256 = vunpack.c.l.b16 %v2140
      %v2257 = vunpack.c.l.b16 %v2141
      %v2258 = vunpack.c.l.b16 %v2142
      %v2259 = vunpack.c.l.b16 %v2143
      %v2260 = vunpack.c.l.b16 %v2144
      %v2261 = vunpack.c.l.b16 %v2145
      %v2262 = vunpack.c.l.b16 %v2146
      %v2263 = vunpack.c.l.b16 %v2147
      %v2264 = vunpack.c.l.b16 %v2148
      %v2265 = vunpack.c.l.b16 %v2149
      %v2266 = vunpack.c.l.b16 %v2150
      %v2267 = vunpack.c.l.b16 %v2151
      %v2268 = vunpack.c.l.b16 %v2152
      %v2269 = vrot.slane %v2254, 7
      %v2270 = vsel %vm2202, %v2269, %v2253
      %v2271 = vrot.slane %v2255, 6
      %v2272 = vsel %vm2205, %v2271, %v2270
      %v2273 = vrot.slane %v2256, 5
      %v2274 = vsel %vm2208, %v2273, %v2272
      %v2275 = vrot.slane %v2257, 4
      %v2276 = vsel %vm2211, %v2275, %v2274
      %v2277 = vrot.slane %v2258, 3
      %v2278 = vsel %vm2214, %v2277, %v2276
      %v2279 = vrot.slane %v2259, 2
      %v2280 = vsel %vm2217, %v2279, %v2278
      %v2281 = vrot.slane %v2260, 1
      %v2282 = vsel %vm2220, %v2281, %v2280
      %v2283 = vrot.slane %v2262, 7
      %v2284 = vsel %vm2202, %v2283, %v2261
      %v2285 = vrot.slane %v2263, 6
      %v2286 = vsel %vm2205, %v2285, %v2284
      %v2287 = vrot.slane %v2264, 5
      %v2288 = vsel %vm2208, %v2287, %v2286
      %v2289 = vrot.slane %v2265, 4
      %v2290 = vsel %vm2211, %v2289, %v2288
      %v2291 = vrot.slane %v2266, 3
      %v2292 = vsel %vm2214, %v2291, %v2290
      %v2293 = vrot.slane %v2267, 2
      %v2294 = vsel %vm2217, %v2293, %v2292
      %v2295 = vrot.slane %v2268, 1
      %v2296 = vsel %vm2220, %v2295, %v2294
      %v2297 = vpack.c.b16 %v2296, %v2282
      %2298 = vrot.lane.b32.xlu0 %v2297, 96
      %v2299 = vpop.permute.xlu0 %2298
      %vm2300 = vcmask 130048
      %v2302 = vsel %vm2300, %v2236, 0
      %v2305 = vsel %vm2300, %v2299, 0
      %2307 = vmatprep.subr.bf16.mxu0 0
      %2308 = vmatpush1.bf16.xpose.msra.mxu0 0
      %2309 = vmatprep.subr.bf16.mxu0 0
      %2310 = vmatpush1.bf16.xpose.msra.mxu0 0
      %2311 = vmatprep.subr.bf16.mxu0 0
      %2312 = vmatpush1.bf16.xpose.msra.mxu0 0
      %2313 = vmatprep.subr.bf16.mxu0 0
      %2314 = vmatpush1.bf16.xpose.msra.mxu0 0
      %2315 = vmatprep.subr.bf16.mxu0 0
      %2316 = vmatpush1.bf16.xpose.msra.mxu0 0
      %2317 = vmatprep.subr.bf16.mxu0 0
      %2318 = vmatpush1.bf16.xpose.msra.mxu0 0
      %2319 = vmatprep.subr.bf16.mxu0 0
      %2320 = vmatpush1.bf16.xpose.msra.mxu0 0
      %2321 = vmatprep.subr.bf16.mxu0 0
      %2322 = vmatpush1.bf16.xpose.msra.mxu0 %v2305
      %2323 = vmatprep.subr.bf16.mxu0 0
      %2324 = vmatpush2.bf16.xpose.msra.mxu0 0
      %2325 = vmatprep.subr.bf16.mxu0 0
      %2326 = vmatpush2.bf16.xpose.msra.mxu0 0
      %2327 = vmatprep.subr.bf16.mxu0 0
      %2328 = vmatpush2.bf16.xpose.msra.mxu0 0
      %2329 = vmatprep.subr.bf16.mxu0 0
      %2330 = vmatpush2.bf16.xpose.msra.mxu0 0
      %2331 = vmatprep.subr.bf16.mxu0 0
      %2332 = vmatpush2.bf16.xpose.msra.mxu0 0
      %2333 = vmatprep.subr.bf16.mxu0 0
      %2334 = vmatpush2.bf16.xpose.msra.mxu0 0
      %2335 = vmatprep.subr.bf16.mxu0 0
      %2336 = vmatpush2.bf16.xpose.msra.mxu0 0
      %2337 = vmatprep.subr.bf16.mxu0 0
      %2338 = vmatpush2.bf16.xpose.msra.mxu0 0
      %2339 = vmatprep.mubr.bf16.mxu0 0
      %2340 = vmatmul.mubr.bf16.gmra.mxu0 %v2302
      %v2341 = vpop.f32.mrf.mxu0
      %v2342 = vadd.f32 0.0, %v2341
      %v2343 = vpop.f32.mrf.mxu0
      %v2344 = vpop.f32.mrf.mxu0
      %v2345 = vadd.f32 0.0, %v2344
      %v2346 = vpop.f32.mrf.mxu0
      %2347 = vdwg.mxu0
      %v2348 = vmul.f32 %v2342, 0.25
      %v2349 = vmul.f32 %v2345, 0.25
      %v2350 = vsel %vm2300, %v2348, -inf
      %2351 = vmax.xlane.f32.xlu0 %v2350
      %v2352 = vpop.xlane.xlu0 %2351
      %v2353 = vsel %vm2300, %v2349, -inf
      %2354 = vmax.xlane.f32.xlu0 %v2353
      %v2355 = vpop.xlane.xlu0 %2354
      %v2356 = vsub.f32 %v2348, %v2352
      %v2357 = vsub.f32 %v2349, %v2355
      %v2358 = vmul.f32 %v2356, 1.442695
      %v2359 = vpow.pop %v2358
      %v2360 = vmul.f32 %v2357, 1.442695
      %v2361 = vpow.pop %v2360
      %v2362 = vsel %vm2300, %v2359, 0.0
      %2363 = vadd.xlane.f32.xlu0 %v2362
      %v2364 = vpop.xlane.xlu0 %2363
      %v2365 = vsel %vm2300, %v2361, 0.0
      %2366 = vadd.xlane.f32.xlu0 %v2365
      %v2367 = vpop.xlane.xlu0 %2366
      %v2368 = vrcp.pop %v2364
      %v2369 = vrcp.pop %v2367
      %v2370 = vmul.f32 %v2359, %v2368
      %v2371 = vmul.f32 %v2361, %v2369
      %v2372 = vpack.c.bf16 %v2371, %v2370
      %v2389 = vunpack.c.l.b16 %v2153
      %v2390 = vunpack.c.l.b16 %v2154
      %v2391 = vunpack.c.l.b16 %v2155
      %v2392 = vunpack.c.l.b16 %v2156
      %v2393 = vunpack.c.l.b16 %v2157
      %v2394 = vunpack.c.l.b16 %v2158
      %v2395 = vunpack.c.l.b16 %v2159
      %v2396 = vunpack.c.l.b16 %v2160
      %v2397 = vunpack.c.l.b16 %v2161
      %v2398 = vunpack.c.l.b16 %v2162
      %v2399 = vunpack.c.l.b16 %v2163
      %v2400 = vunpack.c.l.b16 %v2164
      %v2401 = vunpack.c.l.b16 %v2165
      %v2402 = vunpack.c.l.b16 %v2166
      %v2403 = vunpack.c.l.b16 %v2167
      %v2404 = vunpack.c.l.b16 %v2168
      %v2405 = vsel %vm2202, %v2390, %v2389
      %v2406 = vsel %vm2205, %v2391, %v2405
      %v2407 = vsel %vm2208, %v2392, %v2406
      %v2408 = vsel %vm2211, %v2393, %v2407
      %v2409 = vsel %vm2214, %v2394, %v2408
      %v2410 = vsel %vm2217, %v2395, %v2409
      %v2411 = vsel %vm2220, %v2396, %v2410
      %v2412 = vsel %vm2202, %v2398, %v2397
      %v2413 = vsel %vm2205, %v2399, %v2412
      %v2414 = vsel %vm2208, %v2400, %v2413
      %v2415 = vsel %vm2211, %v2401, %v2414
      %v2416 = vsel %vm2214, %v2402, %v2415
      %v2417 = vsel %vm2217, %v2403, %v2416
      %v2418 = vsel %vm2220, %v2404, %v2417
      %v2419 = vpack.c.b16 %v2418, %v2411
      %2420 = vrot.lane.b32.xlu0 %v2419, 64
      %v2421 = vpop.permute.xlu0 %2420
      %v2424 = vsel %vm2300, %v2372, 0
      %2426 = vmatprep.subr.bf16.mxu0 0
      %2427 = vmatpush1.bf16.msra.mxu0 0
      %2428 = vmatprep.subr.bf16.mxu0 0
      %2429 = vmatpush1.bf16.msra.mxu0 0
      %2430 = vmatprep.subr.bf16.mxu0 0
      %2431 = vmatpush1.bf16.msra.mxu0 0
      %2432 = vmatprep.subr.bf16.mxu0 0
      %2433 = vmatpush1.bf16.msra.mxu0 0
      %2434 = vmatprep.subr.bf16.mxu0 0
      %2435 = vmatpush1.bf16.msra.mxu0 0
      %2436 = vmatprep.subr.bf16.mxu0 0
      %2437 = vmatpush1.bf16.msra.mxu0 0
      %2438 = vmatprep.subr.bf16.mxu0 0
      %2439 = vmatpush1.bf16.msra.mxu0 0
      %2440 = vmatprep.subr.bf16.mxu0 0
      %2441 = vmatpush1.bf16.msra.mxu0 %v2421
      %2442 = vmatprep.subr.bf16.mxu0 0
      %2443 = vmatpush2.bf16.msra.mxu0 0
      %2444 = vmatprep.subr.bf16.mxu0 0
      %2445 = vmatpush2.bf16.msra.mxu0 0
      %2446 = vmatprep.subr.bf16.mxu0 0
      %2447 = vmatpush2.bf16.msra.mxu0 0
      %2448 = vmatprep.subr.bf16.mxu0 0
      %2449 = vmatpush2.bf16.msra.mxu0 0
      %2450 = vmatprep.subr.bf16.mxu0 0
      %2451 = vmatpush2.bf16.msra.mxu0 0
      %2452 = vmatprep.subr.bf16.mxu0 0
      %2453 = vmatpush2.bf16.msra.mxu0 0
      %2454 = vmatprep.subr.bf16.mxu0 0
      %2455 = vmatpush2.bf16.msra.mxu0 0
      %2456 = vmatprep.subr.bf16.mxu0 0
      %2457 = vmatpush2.bf16.msra.mxu0 0
      %2458 = vmatprep.mubr.bf16.mxu0 0
      %2459 = vmatmul.mubr.bf16.gmra.mxu0 %v2424
      %v2460 = vpop.f32.mrf.mxu0
      %v2461 = vadd.f32 0.0, %v2460
      %v2462 = vpop.f32.mrf.mxu0
      %v2463 = vpop.f32.mrf.mxu0
      %v2464 = vadd.f32 0.0, %v2463
      %v2465 = vpop.f32.mrf.mxu0
      %2466 = vdwg.mxu0
      %2467 = vrot.lane.b32.xlu0 %v2236, 112
      %v2468 = vpop.permute.xlu0 %2467
      %2469 = vrot.lane.b32.xlu0 %v2297, 80
      %v2470 = vpop.permute.xlu0 %2469
      %v2472 = vsel %vm2300, %v2468, 0
      %v2475 = vsel %vm2300, %v2470, 0
      %2477 = vmatprep.subr.bf16.mxu0 0
      %2478 = vmatpush1.bf16.xpose.msra.mxu0 0
      %2479 = vmatprep.subr.bf16.mxu0 0
      %2480 = vmatpush1.bf16.xpose.msra.mxu0 0
      %2481 = vmatprep.subr.bf16.mxu0 0
      %2482 = vmatpush1.bf16.xpose.msra.mxu0 0
      %2483 = vmatprep.subr.bf16.mxu0 0
      %2484 = vmatpush1.bf16.xpose.msra.mxu0 0
      %2485 = vmatprep.subr.bf16.mxu0 0
      %2486 = vmatpush1.bf16.xpose.msra.mxu0 0
      %2487 = vmatprep.subr.bf16.mxu0 0
      %2488 = vmatpush1.bf16.xpose.msra.mxu0 0
      %2489 = vmatprep.subr.bf16.mxu0 0
      %2490 = vmatpush1.bf16.xpose.msra.mxu0 0
      %2491 = vmatprep.subr.bf16.mxu0 0
      %2492 = vmatpush1.bf16.xpose.msra.mxu0 %v2475
      %2493 = vmatprep.subr.bf16.mxu0 0
      %2494 = vmatpush2.bf16.xpose.msra.mxu0 0
      %2495 = vmatprep.subr.bf16.mxu0 0
      %2496 = vmatpush2.bf16.xpose.msra.mxu0 0
      %2497 = vmatprep.subr.bf16.mxu0 0
      %2498 = vmatpush2.bf16.xpose.msra.mxu0 0
      %2499 = vmatprep.subr.bf16.mxu0 0
      %2500 = vmatpush2.bf16.xpose.msra.mxu0 0
      %2501 = vmatprep.subr.bf16.mxu0 0
      %2502 = vmatpush2.bf16.xpose.msra.mxu0 0
      %2503 = vmatprep.subr.bf16.mxu0 0
      %2504 = vmatpush2.bf16.xpose.msra.mxu0 0
      %2505 = vmatprep.subr.bf16.mxu0 0
      %2506 = vmatpush2.bf16.xpose.msra.mxu0 0
      %2507 = vmatprep.subr.bf16.mxu0 0
      %2508 = vmatpush2.bf16.xpose.msra.mxu0 0
      %2509 = vmatprep.mubr.bf16.mxu0 0
      %2510 = vmatmul.mubr.bf16.gmra.mxu0 %v2472
      %v2511 = vpop.f32.mrf.mxu0
      %v2512 = vadd.f32 0.0, %v2511
      %v2513 = vpop.f32.mrf.mxu0
      %v2514 = vpop.f32.mrf.mxu0
      %v2515 = vadd.f32 0.0, %v2514
      %v2516 = vpop.f32.mrf.mxu0
      %2517 = vdwg.mxu0
      %v2518 = vmul.f32 %v2512, 0.25
      %v2519 = vmul.f32 %v2515, 0.25
      %v2520 = vsel %vm2300, %v2518, -inf
      %2521 = vmax.xlane.f32.xlu0 %v2520
      %v2522 = vpop.xlane.xlu0 %2521
      %v2523 = vsel %vm2300, %v2519, -inf
      %2524 = vmax.xlane.f32.xlu0 %v2523
      %v2525 = vpop.xlane.xlu0 %2524
      %v2526 = vsub.f32 %v2518, %v2522
      %v2527 = vsub.f32 %v2519, %v2525
      %v2528 = vmul.f32 %v2526, 1.442695
      %v2529 = vpow.pop %v2528
      %v2530 = vmul.f32 %v2527, 1.442695
      %v2531 = vpow.pop %v2530
      %v2532 = vsel %vm2300, %v2529, 0.0
      %2533 = vadd.xlane.f32.xlu0 %v2532
      %v2534 = vpop.xlane.xlu0 %2533
      %v2535 = vsel %vm2300, %v2531, 0.0
      %2536 = vadd.xlane.f32.xlu0 %v2535
      %v2537 = vpop.xlane.xlu0 %2536
      %v2538 = vrcp.pop %v2534
      %v2539 = vrcp.pop %v2537
      %v2540 = vmul.f32 %v2529, %v2538
      %v2541 = vmul.f32 %v2531, %v2539
      %v2542 = vpack.c.bf16 %v2541, %v2540
      %2543 = vrot.lane.b32.xlu0 %v2419, 32
      %v2544 = vpop.permute.xlu0 %2543
      %v2547 = vsel %vm2300, %v2542, 0
      %2549 = vmatprep.subr.bf16.mxu0 0
      %2550 = vmatpush1.bf16.msra.mxu0 0
      %2551 = vmatprep.subr.bf16.mxu0 0
      %2552 = vmatpush1.bf16.msra.mxu0 0
      %2553 = vmatprep.subr.bf16.mxu0 0
      %2554 = vmatpush1.bf16.msra.mxu0 0
      %2555 = vmatprep.subr.bf16.mxu0 0
      %2556 = vmatpush1.bf16.msra.mxu0 0
      %2557 = vmatprep.subr.bf16.mxu0 0
      %2558 = vmatpush1.bf16.msra.mxu0 0
      %2559 = vmatprep.subr.bf16.mxu0 0
      %2560 = vmatpush1.bf16.msra.mxu0 0
      %2561 = vmatprep.subr.bf16.mxu0 0
      %2562 = vmatpush1.bf16.msra.mxu0 0
      %2563 = vmatprep.subr.bf16.mxu0 0
      %2564 = vmatpush1.bf16.msra.mxu0 %v2544
      %2565 = vmatprep.subr.bf16.mxu0 0
      %2566 = vmatpush2.bf16.msra.mxu0 0
      %2567 = vmatprep.subr.bf16.mxu0 0
      %2568 = vmatpush2.bf16.msra.mxu0 0
      %2569 = vmatprep.subr.bf16.mxu0 0
      %2570 = vmatpush2.bf16.msra.mxu0 0
      %2571 = vmatprep.subr.bf16.mxu0 0
      %2572 = vmatpush2.bf16.msra.mxu0 0
      %2573 = vmatprep.subr.bf16.mxu0 0
      %2574 = vmatpush2.bf16.msra.mxu0 0
      %2575 = vmatprep.subr.bf16.mxu0 0
      %2576 = vmatpush2.bf16.msra.mxu0 0
      %2577 = vmatprep.subr.bf16.mxu0 0
      %2578 = vmatpush2.bf16.msra.mxu0 0
      %2579 = vmatprep.subr.bf16.mxu0 0
      %2580 = vmatpush2.bf16.msra.mxu0 0
      %2581 = vmatprep.mubr.bf16.mxu0 0
      %2582 = vmatmul.mubr.bf16.gmra.mxu0 %v2547
      %v2583 = vpop.f32.mrf.mxu0
      %v2584 = vadd.f32 0.0, %v2583
      %v2585 = vpop.f32.mrf.mxu0
      %v2586 = vpop.f32.mrf.mxu0
      %v2587 = vadd.f32 0.0, %v2586
      %v2588 = vpop.f32.mrf.mxu0
      %2589 = vdwg.mxu0
      %2592 = vrot.lane.b32.xlu0 %v2584, 32
      %v2593 = vpop.permute.xlu0 %2592
      %2594 = vrot.lane.b32.xlu0 %v2587, 32
      %v2595 = vpop.permute.xlu0 %2594
      %v2598 = vsel %vm621, %v2461, %v2593
      %v2599 = vsel %vm621, %v2464, %v2595
      %v2600 = vmax.f32 %v2598, 0.0
      %v2601 = vmax.f32 %v2599, 0.0
      %v2602 = vmin.f32 %v2600, 6.0
      %v2603 = vmin.f32 %v2601, 6.0
      %v2604 = vpack.c.bf16 %v2603, %v2602
      %v2605 = vld [vmem:[%s11] sm:$0xf]
      %v2606 = vld [vmem:[%s11 + $0x4] sm:$0xf]
      %v2607 = vld [vmem:[%s11 + $0x8] sm:$0xf]
      %v2608 = vld [vmem:[%s11 + $0xc] sm:$0xf]
      %v2609 = vld [vmem:[%s11 + $0x10] sm:$0xf]
      %v2610 = vld [vmem:[%s11 + $0x14] sm:$0xf]
      %v2611 = vld [vmem:[%s11 + $0x18] sm:$0xf]
      %v2612 = vld [vmem:[%s11 + $0x1c] sm:$0xf]
      %v2613 = vld [vmem:[%s12] sm:$0x1]
      %v2615 = vlaneseq
      %v2616 = vshrl.u32 %v2615, 7
      %v2617 = vsub.s32 0, %v2616
      %v2618 = vrot.slane %v2613, %v2617
      %v2628 = vunpack.c.l.b16 %v2605
      %v2629 = vunpack.c.l.b16 %v2606
      %v2630 = vunpack.c.l.b16 %v2607
      %v2631 = vunpack.c.l.b16 %v2608
      %v2632 = vunpack.c.l.b16 %v2609
      %v2633 = vunpack.c.l.b16 %v2610
      %v2634 = vunpack.c.l.b16 %v2611
      %v2635 = vunpack.c.l.b16 %v2612
      %v2636 = vpack.c.b16 %v2629, %v2628
      %v2637 = vpack.c.b16 %v2631, %v2630
      %v2638 = vpack.c.b16 %v2633, %v2632
      %v2639 = vpack.c.b16 %v2635, %v2634
      %vm2644 = vcmask 523264
      %v2646 = vsel %vm2644, %v2604, 0
      %2648 = vmatprep.subr.bf16.mxu0 0
      %2649 = vmatpush1.bf16.msra.mxu0 0
      %2650 = vmatprep.subr.bf16.mxu0 0
      %2651 = vmatpush1.bf16.msra.mxu0 0
      %2652 = vmatprep.subr.bf16.mxu0 0
      %2653 = vmatpush1.bf16.msra.mxu0 0
      %2654 = vmatprep.subr.bf16.mxu0 0
      %2655 = vmatpush1.bf16.msra.mxu0 0
      %2656 = vmatprep.subr.bf16.mxu0 0
      %2657 = vmatpush1.bf16.msra.mxu0 %v2639
      %2658 = vmatprep.subr.bf16.mxu0 0
      %2659 = vmatpush1.bf16.msra.mxu0 %v2638
      %2660 = vmatprep.subr.bf16.mxu0 0
      %2661 = vmatpush1.bf16.msra.mxu0 %v2637
      %2662 = vmatprep.subr.bf16.mxu0 0
      %2663 = vmatpush1.bf16.msra.mxu0 %v2636
      %2664 = vmatprep.subr.bf16.mxu0 0
      %2665 = vmatpush2.bf16.msra.mxu0 0
      %2666 = vmatprep.subr.bf16.mxu0 0
      %2667 = vmatpush2.bf16.msra.mxu0 0
      %2668 = vmatprep.subr.bf16.mxu0 0
      %2669 = vmatpush2.bf16.msra.mxu0 0
      %2670 = vmatprep.subr.bf16.mxu0 0
      %2671 = vmatpush2.bf16.msra.mxu0 0
      %2672 = vmatprep.subr.bf16.mxu0 0
      %2673 = vmatpush2.bf16.msra.mxu0 0
      %2674 = vmatprep.subr.bf16.mxu0 0
      %2675 = vmatpush2.bf16.msra.mxu0 0
      %2676 = vmatprep.subr.bf16.mxu0 0
      %2677 = vmatpush2.bf16.msra.mxu0 0
      %2678 = vmatprep.subr.bf16.mxu0 0
      %2679 = vmatpush2.bf16.msra.mxu0 0
      %2680 = vmatprep.mubr.bf16.mxu0 0
      %2681 = vmatmul.mubr.bf16.gmra.mxu0 %v2646
      %v2682 = vpop.f32.mrf.mxu0
      %v2683 = vadd.f32 %v2618, %v2682
      %v2684 = vpop.f32.mrf.mxu0
      %v2685 = vpop.f32.mrf.mxu0
      %v2686 = vadd.f32 %v2618, %v2685
      %v2687 = vpop.f32.mrf.mxu0
      %2688 = vdwg.mxu0
      %v2689 = vld [vmem:[%s9] sm:$0xff]
      %v2690 = vld [vmem:[%s9 + $0x8] sm:$0xff]
      %v2691 = vld [vmem:[%s10] sm:$0xff]
      %v2692 = vld [vmem:[%s10 + $0x8] sm:$0xff]
      %v2693 = vadd.f32 %v1987, %v2689
      %v2694 = vadd.f32 %v1988, %v2690
      %v2695 = vpack.c.bf16 %v2694, %v2693
      %2698 = vrot.lane.b32.xlu0 %v2691, 32
      %v2699 = vpop.permute.xlu0 %2698
      %2700 = vrot.lane.b32.xlu0 %v2692, 32
      %v2701 = vpop.permute.xlu0 %2700
      %v2704 = vadd.f32 %v1987, %v2699
      %v2705 = vadd.f32 %v1988, %v2701
      %v2706 = vpack.c.bf16 %v2705, %v2704
      %v2707 = vpack.c.bf16 %v1988, %v1987
      %2709 = vrot.lane.b32.xlu0 %v2706, 96
      %v2710 = vpop.permute.xlu0 %2709
      %v2712 = vsel %vm2300, %v2695, 0
      %v2715 = vsel %vm2300, %v2710, 0
      %2717 = vmatprep.subr.bf16.mxu0 0
      %2718 = vmatpush1.bf16.xpose.msra.mxu0 0
      %2719 = vmatprep.subr.bf16.mxu0 0
      %2720 = vmatpush1.bf16.xpose.msra.mxu0 0
      %2721 = vmatprep.subr.bf16.mxu0 0
      %2722 = vmatpush1.bf16.xpose.msra.mxu0 0
      %2723 = vmatprep.subr.bf16.mxu0 0
      %2724 = vmatpush1.bf16.xpose.msra.mxu0 0
      %2725 = vmatprep.subr.bf16.mxu0 0
      %2726 = vmatpush1.bf16.xpose.msra.mxu0 0
      %2727 = vmatprep.subr.bf16.mxu0 0
      %2728 = vmatpush1.bf16.xpose.msra.mxu0 0
      %2729 = vmatprep.subr.bf16.mxu0 0
      %2730 = vmatpush1.bf16.xpose.msra.mxu0 0
      %2731 = vmatprep.subr.bf16.mxu0 0
      %2732 = vmatpush1.bf16.xpose.msra.mxu0 %v2715
      %2733 = vmatprep.subr.bf16.mxu0 0
      %2734 = vmatpush2.bf16.xpose.msra.mxu0 0
      %2735 = vmatprep.subr.bf16.mxu0 0
      %2736 = vmatpush2.bf16.xpose.msra.mxu0 0
      %2737 = vmatprep.subr.bf16.mxu0 0
      %2738 = vmatpush2.bf16.xpose.msra.mxu0 0
      %2739 = vmatprep.subr.bf16.mxu0 0
      %2740 = vmatpush2.bf16.xpose.msra.mxu0 0
      %2741 = vmatprep.subr.bf16.mxu0 0
      %2742 = vmatpush2.bf16.xpose.msra.mxu0 0
      %2743 = vmatprep.subr.bf16.mxu0 0
      %2744 = vmatpush2.bf16.xpose.msra.mxu0 0
      %2745 = vmatprep.subr.bf16.mxu0 0
      %2746 = vmatpush2.bf16.xpose.msra.mxu0 0
      %2747 = vmatprep.subr.bf16.mxu0 0
      %2748 = vmatpush2.bf16.xpose.msra.mxu0 0
      %2749 = vmatprep.mubr.bf16.mxu0 0
      %2750 = vmatmul.mubr.bf16.gmra.mxu0 %v2712
      %v2751 = vpop.f32.mrf.mxu0
      %v2752 = vadd.f32 0.0, %v2751
      %v2753 = vpop.f32.mrf.mxu0
      %v2754 = vpop.f32.mrf.mxu0
      %v2755 = vadd.f32 0.0, %v2754
      %v2756 = vpop.f32.mrf.mxu0
      %2757 = vdwg.mxu0
      %v2758 = vmul.f32 %v2752, 0.25
      %v2759 = vmul.f32 %v2755, 0.25
      %v2760 = vsel %vm2300, %v2758, -inf
      %2761 = vmax.xlane.f32.xlu0 %v2760
      %v2762 = vpop.xlane.xlu0 %2761
      %v2763 = vsel %vm2300, %v2759, -inf
      %2764 = vmax.xlane.f32.xlu0 %v2763
      %v2765 = vpop.xlane.xlu0 %2764
      %v2766 = vsub.f32 %v2758, %v2762
      %v2767 = vsub.f32 %v2759, %v2765
      %v2768 = vmul.f32 %v2766, 1.442695
      %v2769 = vpow.pop %v2768
      %v2770 = vmul.f32 %v2767, 1.442695
      %v2771 = vpow.pop %v2770
      %v2772 = vsel %vm2300, %v2769, 0.0
      %2773 = vadd.xlane.f32.xlu0 %v2772
      %v2774 = vpop.xlane.xlu0 %2773
      %v2775 = vsel %vm2300, %v2771, 0.0
      %2776 = vadd.xlane.f32.xlu0 %v2775
      %v2777 = vpop.xlane.xlu0 %2776
      %v2778 = vrcp.pop %v2774
      %v2779 = vrcp.pop %v2777
      %v2780 = vmul.f32 %v2769, %v2778
      %v2781 = vmul.f32 %v2771, %v2779
      %v2782 = vpack.c.bf16 %v2781, %v2780
      %2784 = vrot.lane.b32.xlu0 %v2707, 64
      %v2785 = vpop.permute.xlu0 %2784
      %v2788 = vsel %vm2300, %v2782, 0
      %2790 = vmatprep.subr.bf16.mxu0 0
      %2791 = vmatpush1.bf16.msra.mxu0 0
      %2792 = vmatprep.subr.bf16.mxu0 0
      %2793 = vmatpush1.bf16.msra.mxu0 0
      %2794 = vmatprep.subr.bf16.mxu0 0
      %2795 = vmatpush1.bf16.msra.mxu0 0
      %2796 = vmatprep.subr.bf16.mxu0 0
      %2797 = vmatpush1.bf16.msra.mxu0 0
      %2798 = vmatprep.subr.bf16.mxu0 0
      %2799 = vmatpush1.bf16.msra.mxu0 0
      %2800 = vmatprep.subr.bf16.mxu0 0
      %2801 = vmatpush1.bf16.msra.mxu0 0
      %2802 = vmatprep.subr.bf16.mxu0 0
      %2803 = vmatpush1.bf16.msra.mxu0 0
      %2804 = vmatprep.subr.bf16.mxu0 0
      %2805 = vmatpush1.bf16.msra.mxu0 %v2785
      %2806 = vmatprep.subr.bf16.mxu0 0
      %2807 = vmatpush2.bf16.msra.mxu0 0
      %2808 = vmatprep.subr.bf16.mxu0 0
      %2809 = vmatpush2.bf16.msra.mxu0 0
      %2810 = vmatprep.subr.bf16.mxu0 0
      %2811 = vmatpush2.bf16.msra.mxu0 0
      %2812 = vmatprep.subr.bf16.mxu0 0
      %2813 = vmatpush2.bf16.msra.mxu0 0
      %2814 = vmatprep.subr.bf16.mxu0 0
      %2815 = vmatpush2.bf16.msra.mxu0 0
      %2816 = vmatprep.subr.bf16.mxu0 0
      %2817 = vmatpush2.bf16.msra.mxu0 0
      %2818 = vmatprep.subr.bf16.mxu0 0
      %2819 = vmatpush2.bf16.msra.mxu0 0
      %2820 = vmatprep.subr.bf16.mxu0 0
      %2821 = vmatpush2.bf16.msra.mxu0 0
      %2822 = vmatprep.mubr.bf16.mxu0 0
      %2823 = vmatmul.mubr.bf16.gmra.mxu0 %v2788
      %v2824 = vpop.f32.mrf.mxu0
      %v2825 = vadd.f32 0.0, %v2824
      %v2826 = vpop.f32.mrf.mxu0
      %v2827 = vpop.f32.mrf.mxu0
      %v2828 = vadd.f32 0.0, %v2827
      %v2829 = vpop.f32.mrf.mxu0
      %2830 = vdwg.mxu0
      %2832 = vrot.lane.b32.xlu0 %v2695, 112
      %v2833 = vpop.permute.xlu0 %2832
      %2834 = vrot.lane.b32.xlu0 %v2706, 80
      %v2835 = vpop.permute.xlu0 %2834
      %v2837 = vsel %vm2300, %v2833, 0
      %v2840 = vsel %vm2300, %v2835, 0
      %2842 = vmatprep.subr.bf16.mxu0 0
      %2843 = vmatpush1.bf16.xpose.msra.mxu0 0
      %2844 = vmatprep.subr.bf16.mxu0 0
      %2845 = vmatpush1.bf16.xpose.msra.mxu0 0
      %2846 = vmatprep.subr.bf16.mxu0 0
      %2847 = vmatpush1.bf16.xpose.msra.mxu0 0
      %2848 = vmatprep.subr.bf16.mxu0 0
      %2849 = vmatpush1.bf16.xpose.msra.mxu0 0
      %2850 = vmatprep.subr.bf16.mxu0 0
      %2851 = vmatpush1.bf16.xpose.msra.mxu0 0
      %2852 = vmatprep.subr.bf16.mxu0 0
      %2853 = vmatpush1.bf16.xpose.msra.mxu0 0
      %2854 = vmatprep.subr.bf16.mxu0 0
      %2855 = vmatpush1.bf16.xpose.msra.mxu0 0
      %2856 = vmatprep.subr.bf16.mxu0 0
      %2857 = vmatpush1.bf16.xpose.msra.mxu0 %v2840
      %2858 = vmatprep.subr.bf16.mxu0 0
      %2859 = vmatpush2.bf16.xpose.msra.mxu0 0
      %2860 = vmatprep.subr.bf16.mxu0 0
      %2861 = vmatpush2.bf16.xpose.msra.mxu0 0
      %2862 = vmatprep.subr.bf16.mxu0 0
      %2863 = vmatpush2.bf16.xpose.msra.mxu0 0
      %2864 = vmatprep.subr.bf16.mxu0 0
      %2865 = vmatpush2.bf16.xpose.msra.mxu0 0
      %2866 = vmatprep.subr.bf16.mxu0 0
      %2867 = vmatpush2.bf16.xpose.msra.mxu0 0
      %2868 = vmatprep.subr.bf16.mxu0 0
      %2869 = vmatpush2.bf16.xpose.msra.mxu0 0
      %2870 = vmatprep.subr.bf16.mxu0 0
      %2871 = vmatpush2.bf16.xpose.msra.mxu0 0
      %2872 = vmatprep.subr.bf16.mxu0 0
      %2873 = vmatpush2.bf16.xpose.msra.mxu0 0
      %2874 = vmatprep.mubr.bf16.mxu0 0
      %2875 = vmatmul.mubr.bf16.gmra.mxu0 %v2837
      %v2876 = vpop.f32.mrf.mxu0
      %v2877 = vadd.f32 0.0, %v2876
      %v2878 = vpop.f32.mrf.mxu0
      %v2879 = vpop.f32.mrf.mxu0
      %v2880 = vadd.f32 0.0, %v2879
      %v2881 = vpop.f32.mrf.mxu0
      %2882 = vdwg.mxu0
      %v2883 = vmul.f32 %v2877, 0.25
      %v2884 = vmul.f32 %v2880, 0.25
      %v2885 = vsel %vm2300, %v2883, -inf
      %2886 = vmax.xlane.f32.xlu0 %v2885
      %v2887 = vpop.xlane.xlu0 %2886
      %v2888 = vsel %vm2300, %v2884, -inf
      %2889 = vmax.xlane.f32.xlu0 %v2888
      %v2890 = vpop.xlane.xlu0 %2889
      %v2891 = vsub.f32 %v2883, %v2887
      %v2892 = vsub.f32 %v2884, %v2890
      %v2893 = vmul.f32 %v2891, 1.442695
      %v2894 = vpow.pop %v2893
      %v2895 = vmul.f32 %v2892, 1.442695
      %v2896 = vpow.pop %v2895
      %v2897 = vsel %vm2300, %v2894, 0.0
      %2898 = vadd.xlane.f32.xlu0 %v2897
      %v2899 = vpop.xlane.xlu0 %2898
      %v2900 = vsel %vm2300, %v2896, 0.0
      %2901 = vadd.xlane.f32.xlu0 %v2900
      %v2902 = vpop.xlane.xlu0 %2901
      %v2903 = vrcp.pop %v2899
      %v2904 = vrcp.pop %v2902
      %v2905 = vmul.f32 %v2894, %v2903
      %v2906 = vmul.f32 %v2896, %v2904
      %v2907 = vpack.c.bf16 %v2906, %v2905
      %2908 = vrot.lane.b32.xlu0 %v2707, 32
      %v2909 = vpop.permute.xlu0 %2908
      %v2912 = vsel %vm2300, %v2907, 0
      %2914 = vmatprep.subr.bf16.mxu0 0
      %2915 = vmatpush1.bf16.msra.mxu0 0
      %2916 = vmatprep.subr.bf16.mxu0 0
      %2917 = vmatpush1.bf16.msra.mxu0 0
      %2918 = vmatprep.subr.bf16.mxu0 0
      %2919 = vmatpush1.bf16.msra.mxu0 0
      %2920 = vmatprep.subr.bf16.mxu0 0
      %2921 = vmatpush1.bf16.msra.mxu0 0
      %2922 = vmatprep.subr.bf16.mxu0 0
      %2923 = vmatpush1.bf16.msra.mxu0 0
      %2924 = vmatprep.subr.bf16.mxu0 0
      %2925 = vmatpush1.bf16.msra.mxu0 0
      %2926 = vmatprep.subr.bf16.mxu0 0
      %2927 = vmatpush1.bf16.msra.mxu0 0
      %2928 = vmatprep.subr.bf16.mxu0 0
      %2929 = vmatpush1.bf16.msra.mxu0 %v2909
      %2930 = vmatprep.subr.bf16.mxu0 0
      %2931 = vmatpush2.bf16.msra.mxu0 0
      %2932 = vmatprep.subr.bf16.mxu0 0
      %2933 = vmatpush2.bf16.msra.mxu0 0
      %2934 = vmatprep.subr.bf16.mxu0 0
      %2935 = vmatpush2.bf16.msra.mxu0 0
      %2936 = vmatprep.subr.bf16.mxu0 0
      %2937 = vmatpush2.bf16.msra.mxu0 0
      %2938 = vmatprep.subr.bf16.mxu0 0
      %2939 = vmatpush2.bf16.msra.mxu0 0
      %2940 = vmatprep.subr.bf16.mxu0 0
      %2941 = vmatpush2.bf16.msra.mxu0 0
      %2942 = vmatprep.subr.bf16.mxu0 0
      %2943 = vmatpush2.bf16.msra.mxu0 0
      %2944 = vmatprep.subr.bf16.mxu0 0
      %2945 = vmatpush2.bf16.msra.mxu0 0
      %2946 = vmatprep.mubr.bf16.mxu0 0
      %2947 = vmatmul.mubr.bf16.gmra.mxu0 %v2912
      %v2948 = vpop.f32.mrf.mxu0
      %v2949 = vadd.f32 0.0, %v2948
      %v2950 = vpop.f32.mrf.mxu0
      %v2951 = vpop.f32.mrf.mxu0
      %v2952 = vadd.f32 0.0, %v2951
      %v2953 = vpop.f32.mrf.mxu0
      %2954 = vdwg.mxu0
      %2957 = vrot.lane.b32.xlu0 %v2949, 32
      %v2958 = vpop.permute.xlu0 %2957
      %2959 = vrot.lane.b32.xlu0 %v2952, 32
      %v2960 = vpop.permute.xlu0 %2959
      %v2963 = vsel %vm621, %v2825, %v2958
      %v2964 = vsel %vm621, %v2828, %v2960
      %v2965 = vmax.f32 %v2963, 0.0
      %v2966 = vmax.f32 %v2964, 0.0
      %v2967 = vmin.f32 %v2965, 6.0
      %v2968 = vmin.f32 %v2966, 6.0
      %v2969 = vpack.c.bf16 %v2968, %v2967
      %v2970 = vld [vmem:[%s13] sm:$0xf]
      %v2971 = vld [vmem:[%s13 + $0x4] sm:$0xf]
      %v2972 = vld [vmem:[%s13 + $0x8] sm:$0xf]
      %v2973 = vld [vmem:[%s13 + $0xc] sm:$0xf]
      %v2974 = vld [vmem:[%s13 + $0x10] sm:$0xf]
      %v2975 = vld [vmem:[%s13 + $0x14] sm:$0xf]
      %v2976 = vld [vmem:[%s13 + $0x18] sm:$0xf]
      %v2977 = vld [vmem:[%s13 + $0x1c] sm:$0xf]
      %v2978 = vld [vmem:[%s14] sm:$0x1]
      %v2980 = vlaneseq
      %v2981 = vshrl.u32 %v2980, 7
      %v2982 = vsub.s32 0, %v2981
      %v2983 = vrot.slane %v2978, %v2982
      %v2993 = vunpack.c.l.b16 %v2970
      %v2994 = vunpack.c.l.b16 %v2971
      %v2995 = vunpack.c.l.b16 %v2972
      %v2996 = vunpack.c.l.b16 %v2973
      %v2997 = vunpack.c.l.b16 %v2974
      %v2998 = vunpack.c.l.b16 %v2975
      %v2999 = vunpack.c.l.b16 %v2976
      %v3000 = vunpack.c.l.b16 %v2977
      %v3001 = vpack.c.b16 %v2994, %v2993
      %v3002 = vpack.c.b16 %v2996, %v2995
      %v3003 = vpack.c.b16 %v2998, %v2997
      %v3004 = vpack.c.b16 %v3000, %v2999
      %v3010 = vsel %vm2644, %v2969, 0
      %3012 = vmatprep.subr.bf16.mxu0 0
      %3013 = vmatpush1.bf16.msra.mxu0 0
      %3014 = vmatprep.subr.bf16.mxu0 0
      %3015 = vmatpush1.bf16.msra.mxu0 0
      %3016 = vmatprep.subr.bf16.mxu0 0
      %3017 = vmatpush1.bf16.msra.mxu0 0
      %3018 = vmatprep.subr.bf16.mxu0 0
      %3019 = vmatpush1.bf16.msra.mxu0 0
      %3020 = vmatprep.subr.bf16.mxu0 0
      %3021 = vmatpush1.bf16.msra.mxu0 %v3004
      %3022 = vmatprep.subr.bf16.mxu0 0
      %3023 = vmatpush1.bf16.msra.mxu0 %v3003
      %3024 = vmatprep.subr.bf16.mxu0 0
      %3025 = vmatpush1.bf16.msra.mxu0 %v3002
      %3026 = vmatprep.subr.bf16.mxu0 0
      %3027 = vmatpush1.bf16.msra.mxu0 %v3001
      %3028 = vmatprep.subr.bf16.mxu0 0
      %3029 = vmatpush2.bf16.msra.mxu0 0
      %3030 = vmatprep.subr.bf16.mxu0 0
      %3031 = vmatpush2.bf16.msra.mxu0 0
      %3032 = vmatprep.subr.bf16.mxu0 0
      %3033 = vmatpush2.bf16.msra.mxu0 0
      %3034 = vmatprep.subr.bf16.mxu0 0
      %3035 = vmatpush2.bf16.msra.mxu0 0
      %3036 = vmatprep.subr.bf16.mxu0 0
      %3037 = vmatpush2.bf16.msra.mxu0 0
      %3038 = vmatprep.subr.bf16.mxu0 0
      %3039 = vmatpush2.bf16.msra.mxu0 0
      %3040 = vmatprep.subr.bf16.mxu0 0
      %3041 = vmatpush2.bf16.msra.mxu0 0
      %3042 = vmatprep.subr.bf16.mxu0 0
      %3043 = vmatpush2.bf16.msra.mxu0 0
      %3044 = vmatprep.mubr.bf16.mxu0 0
      %3045 = vmatmul.mubr.bf16.gmra.mxu0 %v3010
      %v3046 = vpop.f32.mrf.mxu0
      %v3047 = vadd.f32 %v2983, %v3046
      %v3048 = vpop.f32.mrf.mxu0
      %v3049 = vpop.f32.mrf.mxu0
      %v3050 = vadd.f32 %v2983, %v3049
      %v3051 = vpop.f32.mrf.mxu0
      %3052 = vdwg.mxu0
      %v3055 = vcombine.high %v2683, %v2683
      %v3057 = vunpack.c.l.s4 1966171168
      %v3058 = vunpack.c.0.s8 %v3057
      %v3059 = vlaneseq
      %v3060 = vshrl.u32 %v3059, 7
      %v3061 = vsub.s32 %v3058, %v3060
      %v3062 = vrot.slane %v2683, %v3061
      %v3064 = vunpack.c.l.s4 1966171168
      %v3065 = vunpack.c.0.s8 %v3064
      %v3066 = vlaneseq
      %v3067 = vshrl.u32 %v3066, 7
      %v3068 = vsub.s32 %v3065, %v3067
      %v3069 = vrot.slane %v3055, %v3068
      %v3070 = vcombine.high %v3062, %v3062
      %v3071 = vcombine.high %v3069, %v3069
      %v3073 = vunpack.c.l.s4 1966171168
      %v3074 = vunpack.c.0.s8 %v3073
      %v3075 = vlaneseq
      %v3076 = vshrl.u32 %v3075, 7
      %v3077 = vsub.s32 %v3074, %v3076
      %v3078 = vrot.slane %v3062, %v3077
      %v3080 = vunpack.c.l.s4 1966171168
      %v3081 = vunpack.c.0.s8 %v3080
      %v3082 = vlaneseq
      %v3083 = vshrl.u32 %v3082, 7
      %v3084 = vsub.s32 %v3081, %v3083
      %v3085 = vrot.slane %v3069, %v3084
      %v3087 = vunpack.c.l.s4 1966171168
      %v3088 = vunpack.c.0.s8 %v3087
      %v3089 = vlaneseq
      %v3090 = vshrl.u32 %v3089, 7
      %v3091 = vsub.s32 %v3088, %v3090
      %v3092 = vrot.slane %v3070, %v3091
      %v3094 = vunpack.c.l.s4 1966171168
      %v3095 = vunpack.c.0.s8 %v3094
      %v3096 = vlaneseq
      %v3097 = vshrl.u32 %v3096, 7
      %v3098 = vsub.s32 %v3095, %v3097
      %v3099 = vrot.slane %v3071, %v3098
      %v3100 = vcombine.high %v3078, %v3078
      %v3101 = vcombine.high %v3085, %v3085
      %v3102 = vcombine.high %v3092, %v3092
      %v3103 = vcombine.high %v3099, %v3099
      %v3104 = vcombine.high %v2686, %v2686
      %v3106 = vunpack.c.l.s4 1966171168
      %v3107 = vunpack.c.0.s8 %v3106
      %v3108 = vlaneseq
      %v3109 = vshrl.u32 %v3108, 7
      %v3110 = vsub.s32 %v3107, %v3109
      %v3111 = vrot.slane %v2686, %v3110
      %v3113 = vunpack.c.l.s4 1966171168
      %v3114 = vunpack.c.0.s8 %v3113
      %v3115 = vlaneseq
      %v3116 = vshrl.u32 %v3115, 7
      %v3117 = vsub.s32 %v3114, %v3116
      %v3118 = vrot.slane %v3104, %v3117
      %v3119 = vcombine.high %v3111, %v3111
      %v3120 = vcombine.high %v3118, %v3118
      %v3122 = vunpack.c.l.s4 1966171168
      %v3123 = vunpack.c.0.s8 %v3122
      %v3124 = vlaneseq
      %v3125 = vshrl.u32 %v3124, 7
      %v3126 = vsub.s32 %v3123, %v3125
      %v3127 = vrot.slane %v3111, %v3126
      %v3129 = vunpack.c.l.s4 1966171168
      %v3130 = vunpack.c.0.s8 %v3129
      %v3131 = vlaneseq
      %v3132 = vshrl.u32 %v3131, 7
      %v3133 = vsub.s32 %v3130, %v3132
      %v3134 = vrot.slane %v3118, %v3133
      %v3136 = vunpack.c.l.s4 1966171168
      %v3137 = vunpack.c.0.s8 %v3136
      %v3138 = vlaneseq
      %v3139 = vshrl.u32 %v3138, 7
      %v3140 = vsub.s32 %v3137, %v3139
      %v3141 = vrot.slane %v3119, %v3140
      %v3143 = vunpack.c.l.s4 1966171168
      %v3144 = vunpack.c.0.s8 %v3143
      %v3145 = vlaneseq
      %v3146 = vshrl.u32 %v3145, 7
      %v3147 = vsub.s32 %v3144, %v3146
      %v3148 = vrot.slane %v3120, %v3147
      %v3149 = vcombine.high %v3127, %v3127
      %v3150 = vcombine.high %v3134, %v3134
      %v3151 = vcombine.high %v3141, %v3141
      %v3152 = vcombine.high %v3148, %v3148
      %v3153 = vlaneseq
      %v3154 = vshrl.u32 %v3153, 7
      %v3155 = vsub.s32 0, %v3154
      %v3156 = vrot.slane %v3078, %v3155
      %v3157 = vlaneseq
      %v3158 = vshrl.u32 %v3157, 7
      %v3159 = vsub.s32 0, %v3158
      %v3160 = vrot.slane %v3092, %v3159
      %v3161 = vlaneseq
      %v3162 = vshrl.u32 %v3161, 7
      %v3163 = vsub.s32 0, %v3162
      %v3164 = vrot.slane %v3100, %v3163
      %v3165 = vlaneseq
      %v3166 = vshrl.u32 %v3165, 7
      %v3167 = vsub.s32 0, %v3166
      %v3168 = vrot.slane %v3102, %v3167
      %v3169 = vlaneseq
      %v3170 = vshrl.u32 %v3169, 7
      %v3171 = vsub.s32 0, %v3170
      %v3172 = vrot.slane %v3085, %v3171
      %v3173 = vlaneseq
      %v3174 = vshrl.u32 %v3173, 7
      %v3175 = vsub.s32 0, %v3174
      %v3176 = vrot.slane %v3099, %v3175
      %v3177 = vlaneseq
      %v3178 = vshrl.u32 %v3177, 7
      %v3179 = vsub.s32 0, %v3178
      %v3180 = vrot.slane %v3101, %v3179
      %v3181 = vlaneseq
      %v3182 = vshrl.u32 %v3181, 7
      %v3183 = vsub.s32 0, %v3182
      %v3184 = vrot.slane %v3103, %v3183
      %v3185 = vlaneseq
      %v3186 = vshrl.u32 %v3185, 7
      %v3187 = vsub.s32 0, %v3186
      %v3188 = vrot.slane %v3127, %v3187
      %v3189 = vlaneseq
      %v3190 = vshrl.u32 %v3189, 7
      %v3191 = vsub.s32 0, %v3190
      %v3192 = vrot.slane %v3141, %v3191
      %v3193 = vlaneseq
      %v3194 = vshrl.u32 %v3193, 7
      %v3195 = vsub.s32 0, %v3194
      %v3196 = vrot.slane %v3149, %v3195
      %v3197 = vlaneseq
      %v3198 = vshrl.u32 %v3197, 7
      %v3199 = vsub.s32 0, %v3198
      %v3200 = vrot.slane %v3151, %v3199
      %v3201 = vlaneseq
      %v3202 = vshrl.u32 %v3201, 7
      %v3203 = vsub.s32 0, %v3202
      %v3204 = vrot.slane %v3134, %v3203
      %v3205 = vlaneseq
      %v3206 = vshrl.u32 %v3205, 7
      %v3207 = vsub.s32 0, %v3206
      %v3208 = vrot.slane %v3148, %v3207
      %v3209 = vlaneseq
      %v3210 = vshrl.u32 %v3209, 7
      %v3211 = vsub.s32 0, %v3210
      %v3212 = vrot.slane %v3150, %v3211
      %v3213 = vlaneseq
      %v3214 = vshrl.u32 %v3213, 7
      %v3215 = vsub.s32 0, %v3214
      %v3216 = vrot.slane %v3152, %v3215
      %3217 = vrot.lane.b32.xlu0 %v3156, 64
      %v3218 = vpop.permute.xlu0 %3217
      %3219 = vrot.lane.b32.xlu0 %v3160, 64
      %v3220 = vpop.permute.xlu0 %3219
      %3221 = vrot.lane.b32.xlu0 %v3164, 64
      %v3222 = vpop.permute.xlu0 %3221
      %3223 = vrot.lane.b32.xlu0 %v3168, 64
      %v3224 = vpop.permute.xlu0 %3223
      %3225 = vrot.lane.b32.xlu0 %v3172, 64
      %v3226 = vpop.permute.xlu0 %3225
      %3227 = vrot.lane.b32.xlu0 %v3176, 64
      %v3228 = vpop.permute.xlu0 %3227
      %3229 = vrot.lane.b32.xlu0 %v3180, 64
      %v3230 = vpop.permute.xlu0 %3229
      %3231 = vrot.lane.b32.xlu0 %v3184, 64
      %v3232 = vpop.permute.xlu0 %3231
      %3233 = vrot.lane.b32.xlu0 %v3188, 64
      %v3234 = vpop.permute.xlu0 %3233
      %3235 = vrot.lane.b32.xlu0 %v3192, 64
      %v3236 = vpop.permute.xlu0 %3235
      %3237 = vrot.lane.b32.xlu0 %v3196, 64
      %v3238 = vpop.permute.xlu0 %3237
      %3239 = vrot.lane.b32.xlu0 %v3200, 64
      %v3240 = vpop.permute.xlu0 %3239
      %3241 = vrot.lane.b32.xlu0 %v3204, 64
      %v3242 = vpop.permute.xlu0 %3241
      %3243 = vrot.lane.b32.xlu0 %v3208, 64
      %v3244 = vpop.permute.xlu0 %3243
      %3245 = vrot.lane.b32.xlu0 %v3212, 64
      %v3246 = vpop.permute.xlu0 %3245
      %3247 = vrot.lane.b32.xlu0 %v3216, 64
      %v3248 = vpop.permute.xlu0 %3247
      %v3265 = vadd.f32 %v705, %v3218
      %v3266 = vadd.f32 %v708, %v3218
      %v3267 = vadd.f32 %v713, %v3220
      %v3268 = vadd.f32 %v716, %v3220
      %v3269 = vadd.f32 %v721, %v3222
      %v3270 = vadd.f32 %v724, %v3222
      %v3271 = vadd.f32 %v729, %v3224
      %v3272 = vadd.f32 %v732, %v3224
      %v3273 = vadd.f32 %v737, %v3226
      %v3274 = vadd.f32 %v740, %v3226
      %v3275 = vadd.f32 %v745, %v3228
      %v3276 = vadd.f32 %v748, %v3228
      %v3277 = vadd.f32 %v753, %v3230
      %v3278 = vadd.f32 %v756, %v3230
      %v3279 = vadd.f32 %v761, %v3232
      %v3280 = vadd.f32 %v764, %v3232
      %v3281 = vadd.f32 %v769, %v3234
      %v3282 = vadd.f32 %v772, %v3234
      %v3283 = vadd.f32 %v777, %v3236
      %v3284 = vadd.f32 %v780, %v3236
      %v3285 = vadd.f32 %v785, %v3238
      %v3286 = vadd.f32 %v788, %v3238
      %v3287 = vadd.f32 %v793, %v3240
      %v3288 = vadd.f32 %v796, %v3240
      %v3289 = vadd.f32 %v801, %v3242
      %v3290 = vadd.f32 %v804, %v3242
      %v3291 = vadd.f32 %v809, %v3244
      %v3292 = vadd.f32 %v812, %v3244
      %v3293 = vadd.f32 %v817, %v3246
      %v3294 = vadd.f32 %v820, %v3246
      %v3295 = vadd.f32 %v825, %v3248
      %v3296 = vadd.f32 %v828, %v3248
      %3299 = vrot.lane.b32.xlu0 %v3047, 64
      %v3300 = vpop.permute.xlu0 %3299
      %3301 = vrot.lane.b32.xlu0 %v3050, 64
      %v3302 = vpop.permute.xlu0 %3301
      %v3305 = vadd.f32 %v3265, %v3300
      %v3306 = vadd.f32 %v3266, %v3302
      %v3307 = vadd.f32 %v3267, %v3300
      %v3308 = vadd.f32 %v3268, %v3302
      %v3309 = vadd.f32 %v3269, %v3300
      %v3310 = vadd.f32 %v3270, %v3302
      %v3311 = vadd.f32 %v3271, %v3300
      %v3312 = vadd.f32 %v3272, %v3302
      %v3313 = vadd.f32 %v3273, %v3300
      %v3314 = vadd.f32 %v3274, %v3302
      %v3315 = vadd.f32 %v3275, %v3300
      %v3316 = vadd.f32 %v3276, %v3302
      %v3317 = vadd.f32 %v3277, %v3300
      %v3318 = vadd.f32 %v3278, %v3302
      %v3319 = vadd.f32 %v3279, %v3300
      %v3320 = vadd.f32 %v3280, %v3302
      %v3321 = vadd.f32 %v3281, %v3300
      %v3322 = vadd.f32 %v3282, %v3302
      %v3323 = vadd.f32 %v3283, %v3300
      %v3324 = vadd.f32 %v3284, %v3302
      %v3325 = vadd.f32 %v3285, %v3300
      %v3326 = vadd.f32 %v3286, %v3302
      %v3327 = vadd.f32 %v3287, %v3300
      %v3328 = vadd.f32 %v3288, %v3302
      %v3329 = vadd.f32 %v3289, %v3300
      %v3330 = vadd.f32 %v3290, %v3302
      %v3331 = vadd.f32 %v3291, %v3300
      %v3332 = vadd.f32 %v3292, %v3302
      %v3333 = vadd.f32 %v3293, %v3300
      %v3334 = vadd.f32 %v3294, %v3302
      %v3335 = vadd.f32 %v3295, %v3300
      %v3336 = vadd.f32 %v3296, %v3302
      %v3337 = vmax.f32 %v3305, 0.0
      %v3338 = vmax.f32 %v3306, 0.0
      %v3339 = vmax.f32 %v3307, 0.0
      %v3340 = vmax.f32 %v3308, 0.0
      %v3341 = vmax.f32 %v3309, 0.0
      %v3342 = vmax.f32 %v3310, 0.0
      %v3343 = vmax.f32 %v3311, 0.0
      %v3344 = vmax.f32 %v3312, 0.0
      %v3345 = vmax.f32 %v3313, 0.0
      %v3346 = vmax.f32 %v3314, 0.0
      %v3347 = vmax.f32 %v3315, 0.0
      %v3348 = vmax.f32 %v3316, 0.0
      %v3349 = vmax.f32 %v3317, 0.0
      %v3350 = vmax.f32 %v3318, 0.0
      %v3351 = vmax.f32 %v3319, 0.0
      %v3352 = vmax.f32 %v3320, 0.0
      %v3353 = vmax.f32 %v3321, 0.0
      %v3354 = vmax.f32 %v3322, 0.0
      %v3355 = vmax.f32 %v3323, 0.0
      %v3356 = vmax.f32 %v3324, 0.0
      %v3357 = vmax.f32 %v3325, 0.0
      %v3358 = vmax.f32 %v3326, 0.0
      %v3359 = vmax.f32 %v3327, 0.0
      %v3360 = vmax.f32 %v3328, 0.0
      %v3361 = vmax.f32 %v3329, 0.0
      %v3362 = vmax.f32 %v3330, 0.0
      %v3363 = vmax.f32 %v3331, 0.0
      %v3364 = vmax.f32 %v3332, 0.0
      %v3365 = vmax.f32 %v3333, 0.0
      %v3366 = vmax.f32 %v3334, 0.0
      %v3367 = vmax.f32 %v3335, 0.0
      %v3368 = vmax.f32 %v3336, 0.0
      %v3369 = vmin.f32 %v3337, 6.0
      %v3370 = vmin.f32 %v3338, 6.0
      %v3371 = vmin.f32 %v3339, 6.0
      %v3372 = vmin.f32 %v3340, 6.0
      %v3373 = vmin.f32 %v3341, 6.0
      %v3374 = vmin.f32 %v3342, 6.0
      %v3375 = vmin.f32 %v3343, 6.0
      %v3376 = vmin.f32 %v3344, 6.0
      %v3377 = vmin.f32 %v3345, 6.0
      %v3378 = vmin.f32 %v3346, 6.0
      %v3379 = vmin.f32 %v3347, 6.0
      %v3380 = vmin.f32 %v3348, 6.0
      %v3381 = vmin.f32 %v3349, 6.0
      %v3382 = vmin.f32 %v3350, 6.0
      %v3383 = vmin.f32 %v3351, 6.0
      %v3384 = vmin.f32 %v3352, 6.0
      %v3385 = vmin.f32 %v3353, 6.0
      %v3386 = vmin.f32 %v3354, 6.0
      %v3387 = vmin.f32 %v3355, 6.0
      %v3388 = vmin.f32 %v3356, 6.0
      %v3389 = vmin.f32 %v3357, 6.0
      %v3390 = vmin.f32 %v3358, 6.0
      %v3391 = vmin.f32 %v3359, 6.0
      %v3392 = vmin.f32 %v3360, 6.0
      %v3393 = vmin.f32 %v3361, 6.0
      %v3394 = vmin.f32 %v3362, 6.0
      %v3395 = vmin.f32 %v3363, 6.0
      %v3396 = vmin.f32 %v3364, 6.0
      %v3397 = vmin.f32 %v3365, 6.0
      %v3398 = vmin.f32 %v3366, 6.0
      %v3399 = vmin.f32 %v3367, 6.0
      %v3400 = vmin.f32 %v3368, 6.0
      %v3401 = vpack.c.bf16 %v3370, %v3369
      %v3402 = vpack.c.bf16 %v3372, %v3371
      %v3403 = vpack.c.bf16 %v3374, %v3373
      %v3404 = vpack.c.bf16 %v3376, %v3375
      %v3405 = vpack.c.bf16 %v3378, %v3377
      %v3406 = vpack.c.bf16 %v3380, %v3379
      %v3407 = vpack.c.bf16 %v3382, %v3381
      %v3408 = vpack.c.bf16 %v3384, %v3383
      %v3409 = vpack.c.bf16 %v3386, %v3385
      %v3410 = vpack.c.bf16 %v3388, %v3387
      %v3411 = vpack.c.bf16 %v3390, %v3389
      %v3412 = vpack.c.bf16 %v3392, %v3391
      %v3413 = vpack.c.bf16 %v3394, %v3393
      %v3414 = vpack.c.bf16 %v3396, %v3395
      %v3415 = vpack.c.bf16 %v3398, %v3397
      %v3416 = vpack.c.bf16 %v3400, %v3399
      %v3417 = vld [vmem:[%s15] sm:$0xf]
      %v3418 = vld [vmem:[%s15 + $0x4] sm:$0xf]
      %v3419 = vld [vmem:[%s15 + $0x8] sm:$0xf]
      %v3420 = vld [vmem:[%s15 + $0xc] sm:$0xf]
      %v3421 = vld [vmem:[%s16] sm:$0xff]
      %v3422 = vld [vmem:[%s16 + $0x8] sm:$0xff]
      %v3423 = vld [vmem:[%s16 + $0x10] sm:$0xff]
      %v3424 = vld [vmem:[%s16 + $0x18] sm:$0xff]
      %3426 = vset.pattern.permute.xlu0 0
      %3427 = vperm.xlu0 %3426, %v3421
      %v3428 = vpop.permute.xlu0 %3427
      %3431 = vset.pattern.permute.xlu0 0
      %3432 = vperm.xlu0 %3431, %v3422
      %v3433 = vpop.permute.xlu0 %3432
      %3436 = vset.pattern.permute.xlu0 0
      %3437 = vperm.xlu0 %3436, %v3423
      %v3438 = vpop.permute.xlu0 %3437
      %3441 = vset.pattern.permute.xlu0 0
      %3442 = vperm.xlu0 %3441, %v3424
      %v3443 = vpop.permute.xlu0 %3442
      %v3449 = vunpack.c.l.b16 %v3417
      %v3450 = vunpack.c.l.b16 %v3418
      %v3451 = vunpack.c.l.b16 %v3419
      %v3452 = vunpack.c.l.b16 %v3420
      %v3453 = vpack.c.b16 %v3450, %v3449
      %v3454 = vpack.c.b16 %v3452, %v3451
      %3471 = vrot.lane.b32.xlu0 %v3401, 64
      %v3472 = vpop.permute.xlu0 %3471
      %3473 = vrot.lane.b32.xlu0 %v3402, 64
      %v3474 = vpop.permute.xlu0 %3473
      %3475 = vrot.lane.b32.xlu0 %v3403, 64
      %v3476 = vpop.permute.xlu0 %3475
      %3477 = vrot.lane.b32.xlu0 %v3404, 64
      %v3478 = vpop.permute.xlu0 %3477
      %3479 = vrot.lane.b32.xlu0 %v3405, 64
      %v3480 = vpop.permute.xlu0 %3479
      %3481 = vrot.lane.b32.xlu0 %v3406, 64
      %v3482 = vpop.permute.xlu0 %3481
      %3483 = vrot.lane.b32.xlu0 %v3407, 64
      %v3484 = vpop.permute.xlu0 %3483
      %3485 = vrot.lane.b32.xlu0 %v3408, 64
      %v3486 = vpop.permute.xlu0 %3485
      %3487 = vrot.lane.b32.xlu0 %v3409, 64
      %v3488 = vpop.permute.xlu0 %3487
      %3489 = vrot.lane.b32.xlu0 %v3410, 64
      %v3490 = vpop.permute.xlu0 %3489
      %3491 = vrot.lane.b32.xlu0 %v3411, 64
      %v3492 = vpop.permute.xlu0 %3491
      %3493 = vrot.lane.b32.xlu0 %v3412, 64
      %v3494 = vpop.permute.xlu0 %3493
      %3495 = vrot.lane.b32.xlu0 %v3413, 64
      %v3496 = vpop.permute.xlu0 %3495
      %3497 = vrot.lane.b32.xlu0 %v3414, 64
      %v3498 = vpop.permute.xlu0 %3497
      %3499 = vrot.lane.b32.xlu0 %v3415, 64
      %v3500 = vpop.permute.xlu0 %3499
      %3501 = vrot.lane.b32.xlu0 %v3416, 64
      %v3502 = vpop.permute.xlu0 %3501
      %v3504 = vsel %vm2644, %v3453, 0
      %v3507 = vsel %vm2644, %v3454, 0
      %v3510 = vsel %vm2644, %v3472, 0
      %v3513 = vsel %vm2644, %v3474, 0
      %v3516 = vsel %vm2644, %v3476, 0
      %v3519 = vsel %vm2644, %v3478, 0
      %v3522 = vsel %vm2644, %v3480, 0
      %v3525 = vsel %vm2644, %v3482, 0
      %v3528 = vsel %vm2644, %v3484, 0
      %v3531 = vsel %vm2644, %v3486, 0
      %v3534 = vsel %vm2644, %v3488, 0
      %v3537 = vsel %vm2644, %v3490, 0
      %v3540 = vsel %vm2644, %v3492, 0
      %v3543 = vsel %vm2644, %v3494, 0
      %v3546 = vsel %vm2644, %v3496, 0
      %v3549 = vsel %vm2644, %v3498, 0
      %v3552 = vsel %vm2644, %v3500, 0
      %v3555 = vsel %vm2644, %v3502, 0
      %3557 = vmatprep.subr.bf16.mxu0 0
      %3558 = vmatpush1.bf16.xpose.msra.mxu0 %v3531
      %3559 = vmatprep.subr.bf16.mxu0 0
      %3560 = vmatpush1.bf16.xpose.msra.mxu0 %v3528
      %3561 = vmatprep.subr.bf16.mxu0 0
      %3562 = vmatpush1.bf16.xpose.msra.mxu0 %v3525
      %3563 = vmatprep.subr.bf16.mxu0 0
      %3564 = vmatpush1.bf16.xpose.msra.mxu0 %v3522
      %3565 = vmatprep.subr.bf16.mxu0 0
      %3566 = vmatpush1.bf16.xpose.msra.mxu0 %v3519
      %3567 = vmatprep.subr.bf16.mxu0 0
      %3568 = vmatpush1.bf16.xpose.msra.mxu0 %v3516
      %3569 = vmatprep.subr.bf16.mxu0 0
      %3570 = vmatpush1.bf16.xpose.msra.mxu0 %v3513
      %3571 = vmatprep.subr.bf16.mxu0 0
      %3572 = vmatpush1.bf16.xpose.msra.mxu0 %v3510
      %3573 = vmatprep.subr.bf16.mxu0 0
      %3574 = vmatpush2.bf16.xpose.msra.mxu0 %v3555
      %3575 = vmatprep.subr.bf16.mxu0 0
      %3576 = vmatpush2.bf16.xpose.msra.mxu0 %v3552
      %3577 = vmatprep.subr.bf16.mxu0 0
      %3578 = vmatpush2.bf16.xpose.msra.mxu0 %v3549
      %3579 = vmatprep.subr.bf16.mxu0 0
      %3580 = vmatpush2.bf16.xpose.msra.mxu0 %v3546
      %3581 = vmatprep.subr.bf16.mxu0 0
      %3582 = vmatpush2.bf16.xpose.msra.mxu0 %v3543
      %3583 = vmatprep.subr.bf16.mxu0 0
      %3584 = vmatpush2.bf16.xpose.msra.mxu0 %v3540
      %3585 = vmatprep.subr.bf16.mxu0 0
      %3586 = vmatpush2.bf16.xpose.msra.mxu0 %v3537
      %3587 = vmatprep.subr.bf16.mxu0 0
      %3588 = vmatpush2.bf16.xpose.msra.mxu0 %v3534
      %3589 = vmatprep.mubr.bf16.mxu0 0
      %3590 = vmatmul.mubr.bf16.gmra.mxu0 %v3504
      %v3591 = vpop.f32.mrf.mxu0
      %v3592 = vadd.f32 %v3428, %v3591
      %v3593 = vpop.f32.mrf.mxu0
      %v3594 = vadd.f32 %v3428, %v3593
      %v3595 = vpop.f32.mrf.mxu0
      %v3596 = vadd.f32 %v3433, %v3595
      %v3597 = vpop.f32.mrf.mxu0
      %v3598 = vadd.f32 %v3433, %v3597
      %3599 = vmatprep.mubr.bf16.mxu0 0
      %3600 = vmatmul.mubr.bf16.gmra.mxu0 %v3507
      %v3601 = vpop.f32.mrf.mxu0
      %v3602 = vadd.f32 %v3438, %v3601
      %v3603 = vpop.f32.mrf.mxu0
      %v3604 = vadd.f32 %v3438, %v3603
      %v3605 = vpop.f32.mrf.mxu0
      %v3606 = vadd.f32 %v3443, %v3605
      %v3607 = vpop.f32.mrf.mxu0
      %v3608 = vadd.f32 %v3443, %v3607
      %3609 = vdwg.mxu0
      %v3610 = vadd.f32 %v3592, 3.0
      %v3611 = vadd.f32 %v3594, 3.0
      %v3612 = vadd.f32 %v3596, 3.0
      %v3613 = vadd.f32 %v3598, 3.0
      %v3614 = vadd.f32 %v3602, 3.0
      %v3615 = vadd.f32 %v3604, 3.0
      %v3616 = vadd.f32 %v3606, 3.0
      %v3617 = vadd.f32 %v3608, 3.0
      %v3618 = vmax.f32 %v3610, 0.0
      %v3619 = vmax.f32 %v3611, 0.0
      %v3620 = vmax.f32 %v3612, 0.0
      %v3621 = vmax.f32 %v3613, 0.0
      %v3622 = vmax.f32 %v3614, 0.0
      %v3623 = vmax.f32 %v3615, 0.0
      %v3624 = vmax.f32 %v3616, 0.0
      %v3625 = vmax.f32 %v3617, 0.0
      %v3626 = vmin.f32 %v3618, 6.0
      %v3627 = vmin.f32 %v3619, 6.0
      %v3628 = vmin.f32 %v3620, 6.0
      %v3629 = vmin.f32 %v3621, 6.0
      %v3630 = vmin.f32 %v3622, 6.0
      %v3631 = vmin.f32 %v3623, 6.0
      %v3632 = vmin.f32 %v3624, 6.0
      %v3633 = vmin.f32 %v3625, 6.0
      %v3634 = vmul.f32 %v3626, 0.16666667
      %v3635 = vmul.f32 %v3627, 0.16666667
      %v3636 = vmul.f32 %v3628, 0.16666667
      %v3637 = vmul.f32 %v3629, 0.16666667
      %v3638 = vmul.f32 %v3630, 0.16666667
      %v3639 = vmul.f32 %v3631, 0.16666667
      %v3640 = vmul.f32 %v3632, 0.16666667
      %v3641 = vmul.f32 %v3633, 0.16666667
      %v3642 = vmul.f32 %v3634, %v1810
      %v3643 = vmul.f32 %v3635, %v1812
      %v3644 = vmul.f32 %v3636, %v1814
      %v3645 = vmul.f32 %v3637, %v1816
      %v3646 = vmul.f32 %v3638, %v1820
      %v3647 = vmul.f32 %v3639, %v1822
      %v3648 = vmul.f32 %v3640, %v1824
      %v3649 = vmul.f32 %v3641, %v1826
      %3650 = vst [vmem:[%s548] sm:$0xff] %v3642
      %3651 = vst [vmem:[%s548 + $0x8] sm:$0xff] %v3643
      %3652 = vst [vmem:[%s548 + $0x10] sm:$0xff] %v3644
      %3653 = vst [vmem:[%s548 + $0x18] sm:$0xff] %v3645
      %3654 = vst [vmem:[%s548 + $0x20] sm:$0xff] %v3646
      %3655 = vst [vmem:[%s548 + $0x28] sm:$0xff] %v3647
      %3656 = vst [vmem:[%s548 + $0x30] sm:$0xff] %v3648
      %3657 = vst [vmem:[%s548 + $0x38] sm:$0xff] %v3649
      %p3658 = scmp.lt.s32.totalorder %s28, 1
      %s3659 = scalar_select %p3658, %s28, 1
      %s3660 = smul.addr %s3659, 8
      %s3661 = smul.addr %s3660, 8
      %s3662 = scalar_lea.vmem %s17, %s3661
      // Predicated region
      $region89: #{sea_attention_forward.1} parent=87 // pred_check
        %p3663 = pneg %p408
      $region90: #{sea_attention_forward.1} parent=87 // pred_check_branch
        %3665 = sbr.rel (%p3663) target = $region92
      $region91: #{sea_attention_forward.1} parent=87 // pred_region
        _
      $region92: #{sea_attention_forward.1} parent=87 // pred_fallthru
        _
    $region88: #{sea_attention_forward.1} parent=5 // pred_fallthru
      _
    %p3666 = scmp.le.s32.totalorder 2, %s23
    // Predicated region
    $region93: #{sea_attention_forward.1} parent=5 // pred_check
      %p3667 = pneg %p3666
    $region94: #{sea_attention_forward.1} parent=5 // pred_check_branch
      %3669 = sbr.rel (%p3667) target = $region96
    $region95: #{sea_attention_forward.1} parent=5 // pred_region
      %s3670 = ssub.s32 %s23, 2
      // Predicated region
      $region97: #{sea_attention_forward.1} parent=95 // pred_check
        %p3671 = pneg %p414
      $region98: #{sea_attention_forward.1} parent=95 // pred_check_branch
        %3673 = sbr.rel (%p3671) target = $region100
      $region99: #{sea_attention_forward.1} parent=95 // pred_region
        %p3674 = scmp.lt.s32.totalorder %s29, 1
        %s3675 = scalar_select %p3674, %s29, 1
        %s3676 = smul.addr %s3675, 8
        %s3677 = smul.addr %s3676, 8
        %s3678 = scalar_lea.vmem %s17, %s3677
      $region100: #{sea_attention_forward.1} parent=95 // pred_fallthru
        _
    $region96: #{sea_attention_forward.1} parent=5 // pred_fallthru
      _
  $region6: #{sea_attention_forward.1} parent=0 // loop_footer
    %s27 = sadd.s32 1, %s23
  $region7: #{sea_attention_forward.1} parent=0 // loop_footer_branch
    %22 = sbr.rel target = $region3
  $region8: #{sea_attention_forward.1} parent=0 // loop_exit
    _

</llo_original>
